<compile_context>
chip_gen: v7x
topology: tpu7x:2x2x1
jax: 0.10.0
libtpu: 0.0.40
codegen_flags: <defaults>
</compile_context>

<pallas_src>
import functools

import jax
import jax.numpy as jnp
import numpy as np
from jax import lax
from jax.experimental import pallas as pl
from jax.experimental.pallas import tpu as pltpu


def _round_up(v, m):
  return ((v + m - 1) // m) * m


def _task_encoder_kernel(x_ref, y_ref, w1vm_ref, slab_ref, out_ref, acc_sc,
                         *, n_total, v_size, inv_shot, offs, ragged):
  i = pl.program_id(0)
  last = pl.num_programs(0) - 1
  tile_n, d = x_ref.shape
  ncls, w_fused = acc_sc.shape
  w_tail = w_fused - 2 * d
  s_size = w1vm_ref.shape[1]
  task_dim = out_ref.shape[1]

  def mm_hi(a, b):  # tiny finalize matmuls: full f32 precision
    return jnp.dot(a, b, precision=lax.Precision.HIGHEST,
                   preferred_element_type=jnp.float32)

  @pl.when(i == 0)
  def _init():
    acc_sc[...] = jnp.zeros_like(acc_sc)

  # ---- per-tile accumulation: one fused one-hot matmul into acc_sc ----------
  def _accumulate(masked):
    cls = lax.broadcasted_iota(jnp.int32, (ncls, tile_n), 0)
    tail_lane = lax.broadcasted_iota(jnp.int32, (tile_n, w_tail), 1)
    if masked:
      base = i * tile_n
      valid = (lax.broadcasted_iota(jnp.int32, (tile_n, 1), 0) + base) < n_total
      xv = jnp.where(valid, x_ref[...], 0.0)   # zero padded rows (no NaN leaks)
      tail = jnp.where(jnp.logical_and(tail_lane == 0, valid), 1.0, 0.0)
    else:
      xv = x_ref[...]
      tail = (tail_lane == 0).astype(jnp.float32)
    # Fused RHS [x | x^2 | 1 | 0-pad] stays in vregs feeding the MXU; padded
    # rows are all-zero so garbage labels in the ragged tail contribute nothing.
    rhs = jnp.concatenate([xv, xv * xv, tail], axis=1)            # (tile_n, W)
    # Exact hi/lo bf16 split: 2 bf16 MXU passes instead of a 6-pass f32 matmul;
    # one-hot / ones column are exact in bf16 so the counts stay exact.
    rhs_hi = rhs.astype(jnp.bfloat16)
    rhs_lo = (rhs - rhs_hi.astype(jnp.float32)).astype(jnp.bfloat16)
    onehot = (cls == y_ref[...]).astype(jnp.bfloat16)             # (C, tile_n)
    acc_sc[...] += (
        jnp.dot(onehot, rhs_hi, preferred_element_type=jnp.float32)
        + jnp.dot(onehot, rhs_lo, preferred_element_type=jnp.float32))

  if ragged:
    @pl.when(i != last)
    def _full_tile():
      _accumulate(masked=False)

    @pl.when(i == last)
    def _partial_tile():
      _accumulate(masked=True)
  else:
    _accumulate(masked=False)

  # ---- finalize: class stats, MLPs, weighted cosine term, final linear ------
  @pl.when(i == last)
  def _finalize():
    # NOTE: for D not a multiple of 128 these slices are lane-unaligned, but
    # they run exactly once per call on a tiny (C, W) scratch.
    sum1 = acc_sc[:, 0:d]                                # (C, D)
    sum2 = acc_sc[:, d:2 * d]                            # (C, D)
    n_c = acc_sc[:, 2 * d:2 * d + 1]                     # (C, 1) exact integers
    present = (n_c > 0.0).astype(jnp.float32)
    n_safe = jnp.maximum(n_c, 1.0)
    mean_c = sum1 / n_safe
    var_c = jnp.where(n_c > 1.0,
                      (sum2 - n_c * mean_c * mean_c)
                      / jnp.maximum(n_c - 1.0, 1.0),
                      0.0)                               # 0 when n_c <= 1
    n_shot = (n_c - 1.0) * inv_shot

    def piece(name, rows, cols):                         # static slab slices
      o = offs[name]
      return slab_ref[0:rows, o:o + cols]

    # sta_inter_layer on [var, mean, N_c] with W1 pre-split (no feature concat)
    s_act = jnp.maximum(
        mm_hi(var_c, w1vm_ref[0:d, :]) + mm_hi(mean_c, w1vm_ref[d:2 * d, :])
        + n_shot * piece("w1n", 1, s_size) + piece("b1", 1, s_size), 0.0)

    # en_layer: Linear -> ReLU -> Linear
    v_mid = jnp.maximum(
        mm_hi(s_act, piece("we1", s_size, v_size)) + piece("be1", 1, v_size),
        0.0)
    v = mm_hi(v_mid, piece("we2", v_size, v_size)) + piece("be2", 1, v_size)

    # statistic pooling over PRESENT classes only
    npres = jnp.sum(present, axis=0, keepdims=True)
    npres_safe = jnp.maximum(npres, 1.0)
    v_mean = jnp.sum(v * present, axis=0, keepdims=True) / npres_safe
    dv = v - v_mean
    v_var = jnp.where(npres > 1.0,
                      jnp.sum(present * dv * dv, axis=0, keepdims=True)
                      / jnp.maximum(npres - 1.0, 1.0),
                      0.0)
    v_n = jnp.sum(present * n_shot, axis=0, keepdims=True) / npres_safe

    # weighted cosine-similarity term over present classes in compacted order:
    #   sim = sum_{i<j present} (rank_j - rank_i) * cos_ij
    #       = sum_c p_c * rank_c * (u_c - t_c)
    # rank_c = #present classes before c, u_c = sum_{k<c} p_k cos_kc,
    # t_c = sum_{k>c} p_k cos_ck   (all plain matmuls, static shapes).
    norm = jnp.sqrt(jnp.sum(mean_c * mean_c, axis=1, keepdims=True))
    mean_norm = mean_c / jnp.maximum(norm, 1e-7)
    cos = lax.dot_general(mean_norm, mean_norm, (((1,), (1,)), ((), ())),
                          precision=lax.Precision.HIGHEST,
                          preferred_element_type=jnp.float32)     # (C, C)
    ci = lax.broadcasted_iota(jnp.int32, (ncls, ncls), 0)
    cj = lax.broadcasted_iota(jnp.int32, (ncls, ncls), 1)
    upper = (cj > ci).astype(jnp.float32)
    lower = (ci > cj).astype(jnp.float32)
    rank = mm_hi(lower, present)
    t = mm_hi(upper * cos, present)
    u = mm_hi(lower * cos, present)
    sim = jnp.sum(present * rank * (u - t), axis=0, keepdims=True)  # (1, 1)

    # sta_inter_layer2 on [v_var, v_mean, v_N, sim] (weights pre-split) + ReLU;
    # single direct store.
    out = (mm_hi(v_var, piece("w2v", v_size, task_dim))
           + mm_hi(v_mean, piece("w2m", v_size, task_dim))
           + v_n * piece("w2n", 1, task_dim)
           + sim * piece("w2s", 1, task_dim)
           + piece("b2", 1, task_dim))
    out_ref[...] = jnp.maximum(out, 0.0)


def task_encoder_forward(x, y, w1, b1, we1, be1, we2, be2, w2, b2, *,
                         num_class, max_shot, tile_n=None):
  """x: (N, feat_num*emb_size) f32, y: (N,) int labels. Returns (task_dim,) f32."""
  n, d = x.shape
  s_size = we1.shape[0]
  v_size = we1.shape[1]
  task_dim = w2.shape[1]
  assert w1.shape == (2 * d + 1, s_size)
  assert w2.shape == (2 * v_size + 2, task_dim)
  assert max_shot > 1, "max_shot must be > 1 (reference divides by max_shot-1)"
  assert n >= 1

  w_fused = _round_up(2 * d + 1, 128)   # fused [x | x^2 | 1 | pad] lane width

  # --- weights: keep W1's var/mean rows as one operand, pack the 11 remaining
  #     small pieces into one lane-aligned slab (static slices in finalize). ---
  f32 = lambda a: jnp.asarray(a, jnp.float32)
  w1 = f32(w1)
  w2 = f32(w2)
  w1vm = w1[:2 * d]                      # rows [0,d): var part, [d,2d): mean part
  pieces = {
      "w1n": w1[2 * d:2 * d + 1],
      "b1": f32(b1).reshape(1, -1),
      "we1": f32(we1), "be1": f32(be1).reshape(1, -1),
      "we2": f32(we2), "be2": f32(be2).reshape(1, -1),
      "w2v": w2[:v_size], "w2m": w2[v_size:2 * v_size],
      "w2n": w2[2 * v_size:2 * v_size + 1],
      "w2s": w2[2 * v_size + 1:2 * v_size + 2],
      "b2": f32(b2).reshape(1, -1),
  }
  slab_rows = max(p.shape[0] for p in pieces.values())
  offs, col = {}, 0
  for name, p in pieces.items():
    offs[name] = col
    col += _round_up(p.shape[1], 128)    # every piece starts on a 128-lane boundary
  slab = jnp.zeros((slab_rows, col), jnp.float32)
  for name, p in pieces.items():
    slab = slab.at[:p.shape[0], offs[name]:offs[name] + p.shape[1]].set(p)

  # --- tile sizing: >= ~2 MiB of x per grid step, capped by a VMEM budget -----
  vmem_limit = 48 * 1024 * 1024          # > 16/32 MiB scoped defaults, < v7x 64 MiB
  fixed = 4 * (_round_up(num_class, 8) * w_fused
               + 2 * _round_up(2 * d, 8) * _round_up(s_size, 128)
               + 2 * _round_up(slab_rows, 8) * col) + (8 << 20)
  per_row = 4 * (2 * d + 16 + w_fused + d + _round_up(num_class, 8))
  cap = max(128, ((vmem_limit - fixed) // per_row) // 128 * 128)
  if tile_n is None:
    tile_n = max(512, (2 << 20) // (4 * d))
  tile_n = int(min(int(tile_n), cap))
  if tile_n >= n:
    tile_n = n                            # single grid step, no pipeline
  else:
    tile_n = max(128, (tile_n // 128) * 128)   # labels are lane-blocked
    if tile_n >= n:
      tile_n = n
  grid_n = pl.cdiv(n, tile_n)
  ragged = (n % tile_n) != 0

  x = f32(x)
  y_row = jnp.asarray(y, jnp.int32).reshape(1, n)

  kernel = functools.partial(
      _task_encoder_kernel, n_total=n, v_size=v_size,
      inv_shot=1.0 / (float(max_shot) - 1.0), offs=offs, ragged=ragged)

  out = pl.pallas_call(
      kernel,
      out_shape=jax.ShapeDtypeStruct((1, task_dim), jnp.float32),
      grid=(grid_n,),
      in_specs=[pl.BlockSpec((tile_n, d), lambda i: (i, 0)),   # x tiles
                pl.BlockSpec((1, tile_n), lambda i: (0, i)),   # label tiles
                pl.BlockSpec(w1vm.shape, lambda i: (0, 0)),    # W1 var/mean rows
                pl.BlockSpec(slab.shape, lambda i: (0, 0))],   # packed small weights
      out_specs=pl.BlockSpec((1, task_dim), lambda i: (0, 0)),
      scratch_shapes=[pltpu.VMEM((num_class, w_fused), jnp.float32)],
      compiler_params=pltpu.CompilerParams(
          dimension_semantics=("arbitrary",),
          vmem_limit_bytes=vmem_limit),
  )(x, y_row, w1vm, slab)
  return out.reshape(-1)


def _reference(x, y, w1, b1, we1, be1, we2, be2, w2, b2, num_class, max_shot):
  """Pure-numpy transcription of the PyTorch forward."""
  x = np.asarray(x, np.float32)
  y = np.asarray(y)
  w1, b1, we1, be1, we2, be2, w2, b2 = (
      np.asarray(a, np.float32) for a in (w1, b1, we1, be1, we2, be2, w2, b2))
  s_rows, nc_list, mean_list = [], [], []
  for c in range(num_class):
    m = (y == c)
    if not m.any():
      continue
    cx = x[m]
    n_c = cx.shape[0]
    n_shot = (n_c - 1.0) / (max_shot - 1.0)
    mean = cx.mean(axis=0)
    var = cx.var(axis=0, ddof=1) if n_c > 1 else np.zeros_like(mean)
    s_rows.append(np.concatenate([var, mean, np.array([n_shot], np.float32)]))
    nc_list.append(n_shot)
    mean_list.append(mean)
  s = np.stack(s_rows, 0).astype(np.float32)
  s = np.maximum(s @ w1 + b1, 0.0)
  v = np.maximum(s @ we1 + be1, 0.0) @ we2 + be2
  if v.shape[0] == 1:
    v_var = np.zeros_like(v).reshape(-1)
  else:
    v_var = v.var(axis=0, ddof=1)
  v_mean = v.mean(axis=0)
  v_n = float(np.mean(nc_list))
  mt = np.stack(mean_list, 0)
  mn = mt / np.maximum(np.linalg.norm(mt, axis=-1, keepdims=True), 1e-7)
  cos = mn @ mn.T
  sim = 0.0
  for i in range(mt.shape[0]):
    for j in range(i + 1, mt.shape[0]):
      sim += (j - i) * cos[i, j]
  vec = np.concatenate([v_var, v_mean,
                        np.array([v_n, sim], np.float32)]).astype(np.float32)
  return np.maximum(vec @ w2 + b2, 0.0)


if __name__ == "__main__":
  # Module hyperparameters (small, consistent with __init__).
  feat_num, emb_size = 4, 8
  task_dim, num_class, max_shot = 16, 6, 10
  d_in = feat_num * emb_size            # per-sample feature dim -> layer1 in = 2*d_in+1
  s_size = emb_size                     # 8
  v_size = emb_size // 2                # 4
  n = 200                               # samples

  key = jax.random.PRNGKey(0)
  k = jax.random.split(key, 6)

  x = jax.random.normal(k[0], (n, d_in), jnp.float32)
  # Labels: classes 0, 2, 5 populated; class 3 has exactly one sample (var=0
  # branch); classes 1 and 4 absent (presence-mask / compacted-index branch).
  y = jnp.array([0, 2, 5], jnp.int32)[jax.random.randint(k[1], (n,), 0, 3)]
  y = y.at[7].set(3)

  def linear(key, fan_in, fan_out):
    kw, kb = jax.random.split(key)
    bound = 1.0 / float(np.sqrt(fan_in))
    w = jax.random.uniform(kw, (fan_in, fan_out), jnp.float32, -bound, bound)
    b = jax.random.uniform(kb, (fan_out,), jnp.float32, -bound, bound)
    return w, b

  w1, b1 = linear(k[2], 2 * d_in + 1, s_size)      # sta_inter_layer  (W^T layout)
  we1, be1 = linear(k[3], emb_size, v_size)        # en_layer[0]
  we2, be2 = linear(k[4], v_size, v_size)          # en_layer[2]
  w2, b2 = linear(k[5], 2 * v_size + 2, task_dim)  # sta_inter_layer2 (W^T layout)

  ref = _reference(x, y, w1, b1, we1, be1, we2, be2, w2, b2, num_class, max_shot)

  # Multi-step grid with a ragged tail: exercises the unmasked fast path,
  # the masked last tile, and the accumulator init/finalize branches.
  out_tiled = task_encoder_forward(x, y, w1, b1, we1, be1, we2, be2, w2, b2,
                                   num_class=num_class, max_shot=max_shot,
                                   tile_n=128)
  out_tiled = jax.block_until_ready(out_tiled)

  # Auto tile size: whole batch fits -> single grid step, no masking traced.
  out_auto = task_encoder_forward(x, y, w1, b1, we1, be1, we2, be2, w2, b2,
                                  num_class=num_class, max_shot=max_shot)
  out_auto = jax.block_until_ready(out_auto)

  assert out_tiled.shape == (task_dim,)
  assert out_auto.shape == (task_dim,)
  assert np.allclose(np.asarray(out_tiled), ref, rtol=1e-3, atol=1e-3), \
      "tiled kernel mismatch vs reference"
  assert np.allclose(np.asarray(out_auto), ref, rtol=1e-3, atol=1e-3), \
      "auto-tile kernel mismatch vs reference"
  print("KERNEL_OK")
</pallas_src>

<mosaic_0001>
module attributes {stable_mosaic.version = 11 : i64} {
  func.func @_task_encoder_kernel(%arg0: i32, %arg1: memref<128x32xf32, #tpu.memory_space<vmem>>, %arg2: memref<1x128xi32, #tpu.memory_space<vmem>>, %arg3: memref<64x8xf32, #tpu.memory_space<vmem>>, %arg4: memref<8x1408xf32, #tpu.memory_space<vmem>>, %arg5: memref<1x16xf32, #tpu.memory_space<vmem>>, %arg6: memref<6x128xf32, #tpu.memory_space<vmem>>) attributes {dimension_semantics = [#tpu.dimension_semantics<arbitrary>], iteration_bounds = array<i64: 2>, scalar_prefetch = 0 : i64, scratch_operands = 1 : i64, tpu.core_type = #tpu.core_type<tc>, window_params = [{transform_indices = @transform_0, window_bounds = array<i64: 128, 32>}, {transform_indices = @transform_1, window_bounds = array<i64: 1, 128>}, {pipeline_mode = #tpu.pipeline_mode<synchronous>, transform_indices = @transform_2, window_bounds = array<i64: 64, 8>}, {pipeline_mode = #tpu.pipeline_mode<synchronous>, transform_indices = @transform_3, window_bounds = array<i64: 8, 1408>}, {pipeline_mode = #tpu.pipeline_mode<synchronous>, transform_indices = @transform_4, window_bounds = array<i64: 1, 16>}]} {
    %c0_i32 = arith.constant 0 : i32
    %0 = arith.cmpi eq, %arg0, %c0_i32 : i32
    %1 = arith.extui %0 : i1 to i32
    %c0_i32_0 = arith.constant 0 : i32
    %2 = arith.cmpi ne, %1, %c0_i32_0 : i32
    scf.if %2 {
      %cst = arith.constant 0.000000e+00 : f32
      %12 = vector.broadcast %cst : f32 to vector<6x128xf32>
      %c0 = arith.constant 0 : index
      %c0_6 = arith.constant 0 : index
      %13 = vector.load %arg6[%c0, %c0_6] : memref<6x128xf32, #tpu.memory_space<vmem>>, vector<6x128xf32>
      tpu.vector_store %arg6[%c0, %c0_6], %12 {strides = array<i32>} : memref<6x128xf32, #tpu.memory_space<vmem>>, vector<6x128xf32>,
    } else {
    }
    %c1_i32 = arith.constant 1 : i32
    %3 = arith.cmpi ne, %arg0, %c1_i32 : i32
    %4 = arith.extui %3 : i1 to i32
    %c0_i32_1 = arith.constant 0 : i32
    %5 = arith.cmpi ne, %4, %c0_i32_1 : i32
    scf.if %5 {
      %12 = tpu.iota {dimensions = array<i32: 0>} : vector<6x128xi32>
      %13 = tpu.iota {dimensions = array<i32: 1>} : vector<128x64xi32>
      %c0 = arith.constant 0 : index
      %c0_6 = arith.constant 0 : index
      %14 = vector.load %arg1[%c0, %c0_6] : memref<128x32xf32, #tpu.memory_space<vmem>>, vector<128x32xf32>
      %c0_i32_7 = arith.constant 0 : i32
      %15 = vector.broadcast %c0_i32_7 : i32 to vector<128x64xi32>
      %16 = arith.cmpi eq, %13, %15 : vector<128x64xi32>
      %17 = arith.extui %16 : vector<128x64xi1> to vector<128x64xi32>
      %18 = arith.sitofp %17 : vector<128x64xi32> to vector<128x64xf32>
      %19 = arith.mulf %14, %14 : vector<128x32xf32>
      %20 = tpu.concatenate %14, %19, %18 in 1 : vector<128x32xf32>, vector<128x32xf32>, vector<128x64xf32> -> vector<128x128xf32>
      %21 = arith.truncf %20 : vector<128x128xf32> to vector<128x128xbf16>
      %22 = arith.extf %21 : vector<128x128xbf16> to vector<128x128xf32>
      %23 = arith.subf %20, %22 : vector<128x128xf32>
      %24 = arith.truncf %23 : vector<128x128xf32> to vector<128x128xbf16>
      %c0_8 = arith.constant 0 : index
      %c0_9 = arith.constant 0 : index
      %25 = vector.load %arg2[%c0_8, %c0_9] : memref<1x128xi32, #tpu.memory_space<vmem>>, vector<1x128xi32>
      %26 = vector.broadcast %25 : vector<1x128xi32> to vector<6x128xi32>
      %27 = arith.cmpi eq, %12, %26 : vector<6x128xi32>
      %28 = arith.extui %27 : vector<6x128xi1> to vector<6x128xi32>
      %29 = arith.sitofp %28 : vector<6x128xi32> to vector<6x128xf32>
      %30 = arith.truncf %29 : vector<6x128xf32> to vector<6x128xbf16>
      %c0_10 = arith.constant 0 : index
      %c0_11 = arith.constant 0 : index
      %31 = vector.load %arg6[%c0_10, %c0_11] : memref<6x128xf32, #tpu.memory_space<vmem>>, vector<6x128xf32>
      %cst = arith.constant dense<0.000000e+00> : vector<6x128xf32>
      %32 = tpu.matmul %30, %21, %cst {dimension_numbers = #tpu.dot_dimension_numbers<[1], [0], [0], [1], [0, 0, 1, 1], [], []>} : vector<6x128xbf16>, vector<128x128xbf16>, vector<6x128xf32> -> vector<6x128xf32>
      %cst_12 = arith.constant dense<0.000000e+00> : vector<6x128xf32>
      %33 = tpu.matmul %30, %24, %cst_12 {dimension_numbers = #tpu.dot_dimension_numbers<[1], [0], [0], [1], [0, 0, 1, 1], [], []>} : vector<6x128xbf16>, vector<128x128xbf16>, vector<6x128xf32> -> vector<6x128xf32>
      %34 = arith.addf %32, %33 : vector<6x128xf32>
      %35 = arith.addf %31, %34 : vector<6x128xf32>
      %c0_13 = arith.constant 0 : index
      %c0_14 = arith.constant 0 : index
      %36 = vector.load %arg6[%c0_13, %c0_14] : memref<6x128xf32, #tpu.memory_space<vmem>>, vector<6x128xf32>
      tpu.vector_store %arg6[%c0_13, %c0_14], %35 {strides = array<i32>} : memref<6x128xf32, #tpu.memory_space<vmem>>, vector<6x128xf32>,
    } else {
    }
    %c1_i32_2 = arith.constant 1 : i32
    %6 = arith.cmpi eq, %arg0, %c1_i32_2 : i32
    %7 = arith.extui %6 : i1 to i32
    %c0_i32_3 = arith.constant 0 : i32
    %8 = arith.cmpi ne, %7, %c0_i32_3 : i32
    scf.if %8 {
      %12 = tpu.iota {dimensions = array<i32: 0>} : vector<6x128xi32>
      %13 = tpu.iota {dimensions = array<i32: 1>} : vector<128x64xi32>
      %c128_i32 = arith.constant 128 : i32
      %14 = arith.muli %arg0, %c128_i32 : i32
      %15 = tpu.iota {dimensions = array<i32: 0>} : vector<128x1xi32>
      %16 = vector.broadcast %14 : i32 to vector<128x1xi32>
      %17 = arith.addi %15, %16 : vector<128x1xi32>
      %c200_i32 = arith.constant 200 : i32
      %18 = vector.broadcast %c200_i32 : i32 to vector<128x1xi32>
      %19 = arith.cmpi slt, %17, %18 : vector<128x1xi32>
      %c0 = arith.constant 0 : index
      %c0_6 = arith.constant 0 : index
      %20 = vector.load %arg1[%c0, %c0_6] : memref<128x32xf32, #tpu.memory_space<vmem>>, vector<128x32xf32>
      %cst = arith.constant 0.000000e+00 : f32
      %21 = vector.shape_cast %19 : vector<128x1xi1> to vector<128x1xi1>
      %22 = vector.broadcast %21 : vector<128x1xi1> to vector<128x32xi1>
      %23 = vector.broadcast %cst : f32 to vector<128x32xf32>
      %24 = arith.select %22, %20, %23 : vector<128x32xi1>, vector<128x32xf32>
      %c0_i32_7 = arith.constant 0 : i32
      %25 = vector.broadcast %c0_i32_7 : i32 to vector<128x64xi32>
      %26 = arith.cmpi eq, %13, %25 : vector<128x64xi32>
      %27 = vector.broadcast %19 : vector<128x1xi1> to vector<128x64xi1>
      %28 = arith.andi %26, %27 : vector<128x64xi1>
      %cst_8 = arith.constant 1.000000e+00 : f32
      %cst_9 = arith.constant 0.000000e+00 : f32
      %29 = vector.broadcast %cst_8 : f32 to vector<128x64xf32>
      %30 = vector.broadcast %cst_9 : f32 to vector<128x64xf32>
      %31 = arith.select %28, %29, %30 : vector<128x64xi1>, vector<128x64xf32>
      %32 = arith.mulf %24, %24 : vector<128x32xf32>
      %33 = tpu.concatenate %24, %32, %31 in 1 : vector<128x32xf32>, vector<128x32xf32>, vector<128x64xf32> -> vector<128x128xf32>
      %34 = arith.truncf %33 : vector<128x128xf32> to vector<128x128xbf16>
      %35 = arith.extf %34 : vector<128x128xbf16> to vector<128x128xf32>
      %36 = arith.subf %33, %35 : vector<128x128xf32>
      %37 = arith.truncf %36 : vector<128x128xf32> to vector<128x128xbf16>
      %c0_10 = arith.constant 0 : index
      %c0_11 = arith.constant 0 : index
      %38 = vector.load %arg2[%c0_10, %c0_11] : memref<1x128xi32, #tpu.memory_space<vmem>>, vector<1x128xi32>
      %39 = vector.broadcast %38 : vector<1x128xi32> to vector<6x128xi32>
      %40 = arith.cmpi eq, %12, %39 : vector<6x128xi32>
      %41 = arith.extui %40 : vector<6x128xi1> to vector<6x128xi32>
      %42 = arith.sitofp %41 : vector<6x128xi32> to vector<6x128xf32>
      %43 = arith.truncf %42 : vector<6x128xf32> to vector<6x128xbf16>
      %c0_12 = arith.constant 0 : index
      %c0_13 = arith.constant 0 : index
      %44 = vector.load %arg6[%c0_12, %c0_13] : memref<6x128xf32, #tpu.memory_space<vmem>>, vector<6x128xf32>
      %cst_14 = arith.constant dense<0.000000e+00> : vector<6x128xf32>
      %45 = tpu.matmul %43, %34, %cst_14 {dimension_numbers = #tpu.dot_dimension_numbers<[1], [0], [0], [1], [0, 0, 1, 1], [], []>} : vector<6x128xbf16>, vector<128x128xbf16>, vector<6x128xf32> -> vector<6x128xf32>
      %cst_15 = arith.constant dense<0.000000e+00> : vector<6x128xf32>
      %46 = tpu.matmul %43, %37, %cst_15 {dimension_numbers = #tpu.dot_dimension_numbers<[1], [0], [0], [1], [0, 0, 1, 1], [], []>} : vector<6x128xbf16>, vector<128x128xbf16>, vector<6x128xf32> -> vector<6x128xf32>
      %47 = arith.addf %45, %46 : vector<6x128xf32>
      %48 = arith.addf %44, %47 : vector<6x128xf32>
      %c0_16 = arith.constant 0 : index
      %c0_17 = arith.constant 0 : index
      %49 = vector.load %arg6[%c0_16, %c0_17] : memref<6x128xf32, #tpu.memory_space<vmem>>, vector<6x128xf32>
      tpu.vector_store %arg6[%c0_16, %c0_17], %48 {strides = array<i32>} : memref<6x128xf32, #tpu.memory_space<vmem>>, vector<6x128xf32>,
    } else {
    }
    %c1_i32_4 = arith.constant 1 : i32
    %9 = arith.cmpi eq, %arg0, %c1_i32_4 : i32
    %10 = arith.extui %9 : i1 to i32
    %c0_i32_5 = arith.constant 0 : i32
    %11 = arith.cmpi ne, %10, %c0_i32_5 : i32
    scf.if %11 {
      %c0 = arith.constant 0 : index
      %c0_6 = arith.constant 0 : index
      %12 = vector.load %arg6[%c0, %c0_6] : memref<6x128xf32, #tpu.memory_space<vmem>>, vector<6x32xf32>
      %c0_7 = arith.constant 0 : index
      %c32 = arith.constant 32 : index
      %13 = vector.load %arg6[%c0_7, %c32] : memref<6x128xf32, #tpu.memory_space<vmem>>, vector<6x32xf32>
      %c0_8 = arith.constant 0 : index
      %c64 = arith.constant 64 : index
      %14 = vector.load %arg6[%c0_8, %c64] : memref<6x128xf32, #tpu.memory_space<vmem>>, vector<6x1xf32>
      %cst = arith.constant 0.000000e+00 : f32
      %15 = vector.broadcast %cst : f32 to vector<6x1xf32>
      %16 = arith.cmpf ogt, %14, %15 : vector<6x1xf32>
      %17 = arith.extui %16 : vector<6x1xi1> to vector<6x1xi32>
      %18 = arith.sitofp %17 : vector<6x1xi32> to vector<6x1xf32>
      %cst_9 = arith.constant 1.000000e+00 : f32
      %19 = vector.broadcast %cst_9 : f32 to vector<6x1xf32>
      %20 = arith.maximumf %14, %19 : vector<6x1xf32>
      %21 = vector.broadcast %20 : vector<6x1xf32> to vector<6x32xf32>
      %22 = arith.divf %12, %21 : vector<6x32xf32>
      %cst_10 = arith.constant 1.000000e+00 : f32
      %23 = vector.broadcast %cst_10 : f32 to vector<6x1xf32>
      %24 = arith.cmpf ogt, %14, %23 : vector<6x1xf32>
      %25 = vector.broadcast %14 : vector<6x1xf32> to vector<6x32xf32>
      %26 = arith.mulf %25, %22 : vector<6x32xf32>
      %27 = arith.mulf %26, %22 : vector<6x32xf32>
      %28 = arith.subf %13, %27 : vector<6x32xf32>
      %cst_11 = arith.constant 1.000000e+00 : f32
      %29 = vector.broadcast %cst_11 : f32 to vector<6x1xf32>
      %30 = arith.subf %14, %29 : vector<6x1xf32>
      %cst_12 = arith.constant 1.000000e+00 : f32
      %31 = vector.broadcast %cst_12 : f32 to vector<6x1xf32>
      %32 = arith.maximumf %30, %31 : vector<6x1xf32>
      %33 = vector.broadcast %32 : vector<6x1xf32> to vector<6x32xf32>
      %34 = arith.divf %28, %33 : vector<6x32xf32>
      %cst_13 = arith.constant 0.000000e+00 : f32
      %35 = vector.shape_cast %24 : vector<6x1xi1> to vector<6x1xi1>
      %36 = vector.broadcast %35 : vector<6x1xi1> to vector<6x32xi1>
      %37 = vector.broadcast %cst_13 : f32 to vector<6x32xf32>
      %38 = arith.select %36, %34, %37 : vector<6x32xi1>, vector<6x32xf32>
      %cst_14 = arith.constant 1.000000e+00 : f32
      %39 = vector.broadcast %cst_14 : f32 to vector<6x1xf32>
      %40 = arith.subf %14, %39 : vector<6x1xf32>
      %cst_15 = arith.constant 0.111111112 : f32
      %41 = vector.broadcast %cst_15 : f32 to vector<6x1xf32>
      %42 = arith.mulf %40, %41 : vector<6x1xf32>
      %c0_16 = arith.constant 0 : index
      %c0_17 = arith.constant 0 : index
      %43 = vector.load %arg3[%c0_16, %c0_17] : memref<64x8xf32, #tpu.memory_space<vmem>>, vector<32x8xf32>
      %cst_18 = arith.constant dense<0.000000e+00> : vector<6x8xf32>
      %44 = tpu.matmul %38, %43, %cst_18 {dimension_numbers = #tpu.dot_dimension_numbers<[1], [0], [0], [1], [0, 0, 1, 1], [], []>, precision = #tpu.contract_precision<fp32>} : vector<6x32xf32>, vector<32x8xf32>, vector<6x8xf32> -> vector<6x8xf32>
      %c32_19 = arith.constant 32 : index
      %c0_20 = arith.constant 0 : index
      %45 = vector.load %arg3[%c32_19, %c0_20] : memref<64x8xf32, #tpu.memory_space<vmem>>, vector<32x8xf32>
      %cst_21 = arith.constant dense<0.000000e+00> : vector<6x8xf32>
      %46 = tpu.matmul %22, %45, %cst_21 {dimension_numbers = #tpu.dot_dimension_numbers<[1], [0], [0], [1], [0, 0, 1, 1], [], []>, precision = #tpu.contract_precision<fp32>} : vector<6x32xf32>, vector<32x8xf32>, vector<6x8xf32> -> vector<6x8xf32>
      %47 = arith.addf %44, %46 : vector<6x8xf32>
      %c0_22 = arith.constant 0 : index
      %c0_23 = arith.constant 0 : index
      %48 = vector.load %arg4[%c0_22, %c0_23] : memref<8x1408xf32, #tpu.memory_space<vmem>>, vector<1x8xf32>
      %49 = vector.broadcast %42 : vector<6x1xf32> to vector<6x8xf32>
      %50 = vector.broadcast %48 : vector<1x8xf32> to vector<6x8xf32>
      %51 = arith.mulf %49, %50 : vector<6x8xf32>
      %52 = arith.addf %47, %51 : vector<6x8xf32>
      %c0_24 = arith.constant 0 : index
      %c128 = arith.constant 128 : index
      %53 = vector.load %arg4[%c0_24, %c128] : memref<8x1408xf32, #tpu.memory_space<vmem>>, vector<1x8xf32>
      %54 = vector.broadcast %53 : vector<1x8xf32> to vector<6x8xf32>
      %55 = arith.addf %52, %54 : vector<6x8xf32>
      %cst_25 = arith.constant 0.000000e+00 : f32
      %56 = vector.broadcast %cst_25 : f32 to vector<6x8xf32>
      %57 = arith.maximumf %55, %56 : vector<6x8xf32>
      %c0_26 = arith.constant 0 : index
      %c256 = arith.constant 256 : index
      %58 = vector.load %arg4[%c0_26, %c256] : memref<8x1408xf32, #tpu.memory_space<vmem>>, vector<8x4xf32>
      %cst_27 = arith.constant dense<0.000000e+00> : vector<6x4xf32>
      %59 = tpu.matmul %57, %58, %cst_27 {dimension_numbers = #tpu.dot_dimension_numbers<[1], [0], [0], [1], [0, 0, 1, 1], [], []>, precision = #tpu.contract_precision<fp32>} : vector<6x8xf32>, vector<8x4xf32>, vector<6x4xf32> -> vector<6x4xf32>
      %c0_28 = arith.constant 0 : index
      %c384 = arith.constant 384 : index
      %60 = vector.load %arg4[%c0_28, %c384] : memref<8x1408xf32, #tpu.memory_space<vmem>>, vector<1x4xf32>
      %61 = vector.broadcast %60 : vector<1x4xf32> to vector<6x4xf32>
      %62 = arith.addf %59, %61 : vector<6x4xf32>
      %cst_29 = arith.constant 0.000000e+00 : f32
      %63 = vector.broadcast %cst_29 : f32 to vector<6x4xf32>
      %64 = arith.maximumf %62, %63 : vector<6x4xf32>
      %c0_30 = arith.constant 0 : index
      %c512 = arith.constant 512 : index
      %65 = vector.load %arg4[%c0_30, %c512] : memref<8x1408xf32, #tpu.memory_space<vmem>>, vector<4x4xf32>
      %cst_31 = arith.constant dense<0.000000e+00> : vector<6x4xf32>
      %66 = tpu.matmul %64, %65, %cst_31 {dimension_numbers = #tpu.dot_dimension_numbers<[1], [0], [0], [1], [0, 0, 1, 1], [], []>, precision = #tpu.contract_precision<fp32>} : vector<6x4xf32>, vector<4x4xf32>, vector<6x4xf32> -> vector<6x4xf32>
      %c0_32 = arith.constant 0 : index
      %c640 = arith.constant 640 : index
      %67 = vector.load %arg4[%c0_32, %c640] : memref<8x1408xf32, #tpu.memory_space<vmem>>, vector<1x4xf32>
      %68 = vector.broadcast %67 : vector<1x4xf32> to vector<6x4xf32>
      %69 = arith.addf %66, %68 : vector<6x4xf32>
      %cst_33 = arith.constant dense<0.000000e+00> : vector<1xf32>
      %70 = vector.multi_reduction <add>, %18, %cst_33 [0] : vector<6x1xf32> to vector<1xf32>
      %71 = vector.shape_cast %70 : vector<1xf32> to vector<1x1xf32>
      %cst_34 = arith.constant 1.000000e+00 : f32
      %72 = vector.broadcast %cst_34 : f32 to vector<1x1xf32>
      %73 = arith.maximumf %71, %72 : vector<1x1xf32>
      %74 = vector.broadcast %18 : vector<6x1xf32> to vector<6x4xf32>
      %75 = arith.mulf %69, %74 : vector<6x4xf32>
      %cst_35 = arith.constant dense<0.000000e+00> : vector<4xf32>
      %76 = vector.multi_reduction <add>, %75, %cst_35 [0] : vector<6x4xf32> to vector<4xf32>
      %77 = vector.shape_cast %76 : vector<4xf32> to vector<1x4xf32>
      %78 = vector.broadcast %73 : vector<1x1xf32> to vector<1x4xf32>
      %79 = arith.divf %77, %78 : vector<1x4xf32>
      %80 = vector.broadcast %79 : vector<1x4xf32> to vector<6x4xf32>
      %81 = arith.subf %69, %80 : vector<6x4xf32>
      %cst_36 = arith.constant 1.000000e+00 : f32
      %82 = vector.broadcast %cst_36 : f32 to vector<1x1xf32>
      %83 = arith.cmpf ogt, %71, %82 : vector<1x1xf32>
      %84 = vector.broadcast %18 : vector<6x1xf32> to vector<6x4xf32>
      %85 = arith.mulf %84, %81 : vector<6x4xf32>
      %86 = arith.mulf %85, %81 : vector<6x4xf32>
      %cst_37 = arith.constant dense<0.000000e+00> : vector<4xf32>
      %87 = vector.multi_reduction <add>, %86, %cst_37 [0] : vector<6x4xf32> to vector<4xf32>
      %88 = vector.shape_cast %87 : vector<4xf32> to vector<1x4xf32>
      %cst_38 = arith.constant 1.000000e+00 : f32
      %89 = vector.broadcast %cst_38 : f32 to vector<1x1xf32>
      %90 = arith.subf %71, %89 : vector<1x1xf32>
      %cst_39 = arith.constant 1.000000e+00 : f32
      %91 = vector.broadcast %cst_39 : f32 to vector<1x1xf32>
      %92 = arith.maximumf %90, %91 : vector<1x1xf32>
      %93 = vector.broadcast %92 : vector<1x1xf32> to vector<1x4xf32>
      %94 = arith.divf %88, %93 : vector<1x4xf32>
      %cst_40 = arith.constant 0.000000e+00 : f32
      %95 = vector.shape_cast %83 : vector<1x1xi1> to vector<1x1xi1>
      %96 = vector.broadcast %95 : vector<1x1xi1> to vector<1x4xi1>
      %97 = vector.broadcast %cst_40 : f32 to vector<1x4xf32>
      %98 = arith.select %96, %94, %97 : vector<1x4xi1>, vector<1x4xf32>
      %99 = arith.mulf %18, %42 : vector<6x1xf32>
      %cst_41 = arith.constant dense<0.000000e+00> : vector<1xf32>
      %100 = vector.multi_reduction <add>, %99, %cst_41 [0] : vector<6x1xf32> to vector<1xf32>
      %101 = vector.shape_cast %100 : vector<1xf32> to vector<1x1xf32>
      %102 = arith.divf %101, %73 : vector<1x1xf32>
      %103 = arith.mulf %22, %22 : vector<6x32xf32>
      %cst_42 = arith.constant dense<0.000000e+00> : vector<6xf32>
      %104 = vector.multi_reduction <add>, %103, %cst_42 [1] : vector<6x32xf32> to vector<6xf32>
      %105 = vector.shape_cast %104 : vector<6xf32> to vector<6x1xf32>
      %106 = math.sqrt %105 : vector<6x1xf32>
      %cst_43 = arith.constant 1.000000e-07 : f32
      %107 = vector.broadcast %cst_43 : f32 to vector<6x1xf32>
      %108 = arith.maximumf %106, %107 : vector<6x1xf32>
      %109 = vector.broadcast %108 : vector<6x1xf32> to vector<6x32xf32>
      %110 = arith.divf %22, %109 : vector<6x32xf32>
      %cst_44 = arith.constant dense<0.000000e+00> : vector<6x6xf32>
      %111 = tpu.matmul %110, %110, %cst_44 {dimension_numbers = #tpu.dot_dimension_numbers<[1], [1], [0], [0], [0, 0, 1, 0], [], []>, precision = #tpu.contract_precision<fp32>} : vector<6x32xf32>, vector<6x32xf32>, vector<6x6xf32> -> vector<6x6xf32>
      %112 = tpu.iota {dimensions = array<i32: 0>} : vector<6x6xi32>
      %113 = tpu.iota {dimensions = array<i32: 1>} : vector<6x6xi32>
      %114 = arith.cmpi sgt, %113, %112 : vector<6x6xi32>
      %115 = arith.extui %114 : vector<6x6xi1> to vector<6x6xi32>
      %116 = arith.sitofp %115 : vector<6x6xi32> to vector<6x6xf32>
      %117 = arith.cmpi sgt, %112, %113 : vector<6x6xi32>
      %118 = arith.extui %117 : vector<6x6xi1> to vector<6x6xi32>
      %119 = arith.sitofp %118 : vector<6x6xi32> to vector<6x6xf32>
      %cst_45 = arith.constant dense<0.000000e+00> : vector<6x1xf32>
      %120 = tpu.matmul %119, %18, %cst_45 {dimension_numbers = #tpu.dot_dimension_numbers<[1], [0], [0], [1], [0, 0, 1, 1], [], []>, precision = #tpu.contract_precision<fp32>} : vector<6x6xf32>, vector<6x1xf32>, vector<6x1xf32> -> vector<6x1xf32>
      %121 = arith.mulf %116, %111 : vector<6x6xf32>
      %cst_46 = arith.constant dense<0.000000e+00> : vector<6x1xf32>
      %122 = tpu.matmul %121, %18, %cst_46 {dimension_numbers = #tpu.dot_dimension_numbers<[1], [0], [0], [1], [0, 0, 1, 1], [], []>, precision = #tpu.contract_precision<fp32>} : vector<6x6xf32>, vector<6x1xf32>, vector<6x1xf32> -> vector<6x1xf32>
      %123 = arith.mulf %119, %111 : vector<6x6xf32>
      %cst_47 = arith.constant dense<0.000000e+00> : vector<6x1xf32>
      %124 = tpu.matmul %123, %18, %cst_47 {dimension_numbers = #tpu.dot_dimension_numbers<[1], [0], [0], [1], [0, 0, 1, 1], [], []>, precision = #tpu.contract_precision<fp32>} : vector<6x6xf32>, vector<6x1xf32>, vector<6x1xf32> -> vector<6x1xf32>
      %125 = arith.mulf %18, %120 : vector<6x1xf32>
      %126 = arith.subf %124, %122 : vector<6x1xf32>
      %127 = arith.mulf %125, %126 : vector<6x1xf32>
      %cst_48 = arith.constant dense<0.000000e+00> : vector<1xf32>
      %128 = vector.multi_reduction <add>, %127, %cst_48 [0] : vector<6x1xf32> to vector<1xf32>
      %129 = vector.shape_cast %128 : vector<1xf32> to vector<1x1xf32>
      %c0_49 = arith.constant 0 : index
      %c768 = arith.constant 768 : index
      %130 = vector.load %arg4[%c0_49, %c768] : memref<8x1408xf32, #tpu.memory_space<vmem>>, vector<4x16xf32>
      %cst_50 = arith.constant dense<0.000000e+00> : vector<1x16xf32>
      %131 = tpu.matmul %98, %130, %cst_50 {dimension_numbers = #tpu.dot_dimension_numbers<[1], [0], [0], [1], [0, 0, 1, 1], [], []>, precision = #tpu.contract_precision<fp32>} : vector<1x4xf32>, vector<4x16xf32>, vector<1x16xf32> -> vector<1x16xf32>
      %c0_51 = arith.constant 0 : index
      %c896 = arith.constant 896 : index
      %132 = vector.load %arg4[%c0_51, %c896] : memref<8x1408xf32, #tpu.memory_space<vmem>>, vector<4x16xf32>
      %cst_52 = arith.constant dense<0.000000e+00> : vector<1x16xf32>
      %133 = tpu.matmul %79, %132, %cst_52 {dimension_numbers = #tpu.dot_dimension_numbers<[1], [0], [0], [1], [0, 0, 1, 1], [], []>, precision = #tpu.contract_precision<fp32>} : vector<1x4xf32>, vector<4x16xf32>, vector<1x16xf32> -> vector<1x16xf32>
      %134 = arith.addf %131, %133 : vector<1x16xf32>
      %c0_53 = arith.constant 0 : index
      %c1024 = arith.constant 1024 : index
      %135 = vector.load %arg4[%c0_53, %c1024] : memref<8x1408xf32, #tpu.memory_space<vmem>>, vector<1x16xf32>
      %136 = vector.broadcast %102 : vector<1x1xf32> to vector<1x16xf32>
      %137 = arith.mulf %136, %135 : vector<1x16xf32>
      %138 = arith.addf %134, %137 : vector<1x16xf32>
      %c0_54 = arith.constant 0 : index
      %c1152 = arith.constant 1152 : index
      %139 = vector.load %arg4[%c0_54, %c1152] : memref<8x1408xf32, #tpu.memory_space<vmem>>, vector<1x16xf32>
      %140 = vector.broadcast %129 : vector<1x1xf32> to vector<1x16xf32>
      %141 = arith.mulf %140, %139 : vector<1x16xf32>
      %142 = arith.addf %138, %141 : vector<1x16xf32>
      %c0_55 = arith.constant 0 : index
      %c1280 = arith.constant 1280 : index
      %143 = vector.load %arg4[%c0_55, %c1280] : memref<8x1408xf32, #tpu.memory_space<vmem>>, vector<1x16xf32>
      %144 = arith.addf %142, %143 : vector<1x16xf32>
      %cst_56 = arith.constant 0.000000e+00 : f32
      %145 = vector.broadcast %cst_56 : f32 to vector<1x16xf32>
      %146 = arith.maximumf %144, %145 : vector<1x16xf32>
      %c0_57 = arith.constant 0 : index
      %c0_58 = arith.constant 0 : index
      %147 = vector.load %arg5[%c0_57, %c0_58] : memref<1x16xf32, #tpu.memory_space<vmem>>, vector<1x16xf32>
      tpu.vector_store %arg5[%c0_57, %c0_58], %146 {strides = array<i32>} : memref<1x16xf32, #tpu.memory_space<vmem>>, vector<1x16xf32>,
    } else {
    }
    return
  }
  func.func @transform_0(%arg0: i32) -> (i32, i32) {
    %c0_i32 = arith.constant 0 : i32
    %c0_i32_0 = arith.constant 0 : i32
    return %arg0, %c0_i32 : i32, i32
  }
  func.func @transform_1(%arg0: i32) -> (i32, i32) {
    %c0_i32 = arith.constant 0 : i32
    %c0_i32_0 = arith.constant 0 : i32
    return %c0_i32, %arg0 : i32, i32
  }
  func.func @transform_2(%arg0: i32) -> (i32, i32) {
    %c0_i32 = arith.constant 0 : i32
    %c0_i32_0 = arith.constant 0 : i32
    %c0_i32_1 = arith.constant 0 : i32
    return %c0_i32, %c0_i32_0 : i32, i32
  }
  func.func @transform_3(%arg0: i32) -> (i32, i32) {
    %c0_i32 = arith.constant 0 : i32
    %c0_i32_0 = arith.constant 0 : i32
    %c0_i32_1 = arith.constant 0 : i32
    return %c0_i32, %c0_i32_0 : i32, i32
  }
  func.func @transform_4(%arg0: i32) -> (i32, i32) {
    %c0_i32 = arith.constant 0 : i32
    %c0_i32_0 = arith.constant 0 : i32
    %c0_i32_1 = arith.constant 0 : i32
    return %c0_i32, %c0_i32_0 : i32, i32
  }
}

</mosaic_0001>

<llo_original>
// kernel: tpu_custom_call.1
$region0: #{tpu_custom_call.1}
  #allocation0 [shape = 'u32[]', space=smem, size = 0x4, offset = 0x4, fixed_abs, tag = 'smem constant byte address 0x4 - core index']
  #allocation1 [shape = 'u32[144,128]{1,0:T(1,128)}', space=vmem, size = 0x12000, scoped, tag = 'internal scratch']
  #allocation2 [shape = 'f32[6,128]{1,0:T(8,128)}', space=vmem, size = 0x1000, scoped, tag = 'scratch operand']
  %s0 = inlined_call_operand.vmem [shape: f32[200,32], index: 0, kind: input, shape index: {}]
  %s1 = inlined_call_operand.vmem [shape: s32[1,200], index: 1, kind: input, shape index: {}]
  %s2 = inlined_call_operand.vmem [shape: f32[64,8], index: 2, kind: input, shape index: {}]
  %s3 = inlined_call_operand.vmem [shape: f32[8,1408], index: 3, kind: input, shape index: {}]
  %s4 = inlined_call_operand.hbm [shape: f32[1,16], index: 4, kind: output, shape index: {}]
  %s5 = sld [smem:[#allocation0]]
  $region61: #{tpu_custom_call.1} parent=0
    _
  %s7 = ssub.s32 1, %s5
  %s8 = scalar_select 0, %s7, %s5
  $region1: #{tpu_custom_call.1} parent=0
    #allocation3 [shape = 'u8[512]{0}', space=vmem, size = 0x400, scoped, tag = 'output window, operand 0, single buffered']
    #allocation4 [shape = 's32[2]{0}', space=sflag, size = 0x8, scoped, tag = 'scoped memory for tpu_custom_call.1']
    %9 = vsyncpa [#allocation4], 0
    loop: start=0, step=1, limit=4
    $region2: #{tpu_custom_call.1} parent=1 // loop_pre_header
      _
    $region3: #{tpu_custom_call.1} parent=1 // loop_header
      %s11 = sphi 0, %s15
      %p12 = scmp.ge.s32.totalorder %s11, 4
      %s21 = sphi 0, %s23
      %s24 = sphi 0, %s21
      %s25 = sphi 0, %s24
      %s41 = sphi 0, %s25
      %s47 = sphi 0, %s49
      %s50 = sphi 0, %s47
      %s51 = sphi 0, %s50
      %s67 = sphi 0, %s51
      %s71 = sphi 0, %s71
      %s73 = sphi 0, %s71
      %s74 = sphi 0, %s73
      %s88 = sphi 0, %s74
      %s92 = sphi 0, %s92
      %s94 = sphi 0, %s92
      %s95 = sphi 0, %s94
      %s109 = sphi 0, %s95
      %s113 = sphi 0, %s113
      %s115 = sphi 0, %s113
      %s116 = sphi 0, %s115
      %s130 = sphi 0, %s116
    $region4: #{tpu_custom_call.1} parent=1 // loop_header_branch
      %14 = sbr.rel (%p12) target = $region8
    $region5: #{tpu_custom_call.1} parent=1 // loop_body
      %s16 = ssub.s32 %s11, 1
      %s17 = ssub.s32 %s11, 2
      %s18 = sadd.s32 %s11, 1
      %s19 = ssub.s32 %s11, %s18
      %p20 = scmp.eq.s32.totalorder %s19, 0
      %s22 = sadd.s32 %s21, 1
      %s23 = scalar_select %p20, %s21, %s22
      %p26 = pneg %p20
      %p27 = scmp.eq.s32.totalorder %s11, 1
      %p28 = por %p26, %p27
      %p29 = scmp.ne.s32.totalorder %s21, %s24
      %p30 = scmp.eq.s32.totalorder %s11, 0
      %p31 = por %p29, %p30
      %p32 = scmp.ne.s32.totalorder %s21, %s24
      %p33 = scmp.eq.s32.totalorder %s16, 1
      %p34 = por %p32, %p33
      %p35 = scmp.ne.s32.totalorder %s24, %s25
      %p36 = scmp.eq.s32.totalorder %s16, 0
      %p37 = por %p35, %p36
      %p38 = scmp.ne.s32.totalorder %s24, %s25
      %p39 = scmp.eq.s32.totalorder %s17, 1
      %p40 = por %p38, %p39
      %p42 = scmp.ne.s32.totalorder %s25, %s41
      %p43 = scmp.eq.s32.totalorder %s17, 0
      %p44 = por %p42, %p43
      %s45 = ssub.s32 %s11, %s18
      %p46 = scmp.eq.s32.totalorder %s45, 0
      %s48 = sadd.s32 %s47, 1
      %s49 = scalar_select %p46, %s47, %s48
      %p52 = pneg %p46
      %p53 = scmp.eq.s32.totalorder %s11, 1
      %p54 = por %p52, %p53
      %p55 = scmp.ne.s32.totalorder %s47, %s50
      %p56 = scmp.eq.s32.totalorder %s11, 0
      %p57 = por %p55, %p56
      %p58 = scmp.ne.s32.totalorder %s47, %s50
      %p59 = scmp.eq.s32.totalorder %s16, 1
      %p60 = por %p58, %p59
      %p61 = scmp.ne.s32.totalorder %s50, %s51
      %p62 = scmp.eq.s32.totalorder %s16, 0
      %p63 = por %p61, %p62
      %p64 = scmp.ne.s32.totalorder %s50, %s51
      %p65 = scmp.eq.s32.totalorder %s17, 1
      %p66 = por %p64, %p65
      %p68 = scmp.ne.s32.totalorder %s51, %s67
      %p69 = scmp.eq.s32.totalorder %s17, 0
      %p70 = por %p68, %p69
      %s72 = sadd.s32 %s71, 1
      %p75 = scmp.eq.s32.totalorder %s11, 1
      %p76 = scmp.ne.s32.totalorder %s71, %s73
      %p77 = scmp.eq.s32.totalorder %s11, 0
      %p78 = por %p76, %p77
      %p79 = scmp.ne.s32.totalorder %s71, %s73
      %p80 = scmp.eq.s32.totalorder %s16, 1
      %p81 = por %p79, %p80
      %p82 = scmp.ne.s32.totalorder %s73, %s74
      %p83 = scmp.eq.s32.totalorder %s16, 0
      %p84 = por %p82, %p83
      %p85 = scmp.ne.s32.totalorder %s73, %s74
      %p86 = scmp.eq.s32.totalorder %s17, 1
      %p87 = por %p85, %p86
      %p89 = scmp.ne.s32.totalorder %s74, %s88
      %p90 = scmp.eq.s32.totalorder %s17, 0
      %p91 = por %p89, %p90
      %s93 = sadd.s32 %s92, 1
      %p96 = scmp.eq.s32.totalorder %s11, 1
      %p97 = scmp.ne.s32.totalorder %s92, %s94
      %p98 = scmp.eq.s32.totalorder %s11, 0
      %p99 = por %p97, %p98
      %p100 = scmp.ne.s32.totalorder %s92, %s94
      %p101 = scmp.eq.s32.totalorder %s16, 1
      %p102 = por %p100, %p101
      %p103 = scmp.ne.s32.totalorder %s94, %s95
      %p104 = scmp.eq.s32.totalorder %s16, 0
      %p105 = por %p103, %p104
      %p106 = scmp.ne.s32.totalorder %s94, %s95
      %p107 = scmp.eq.s32.totalorder %s17, 1
      %p108 = por %p106, %p107
      %p110 = scmp.ne.s32.totalorder %s95, %s109
      %p111 = scmp.eq.s32.totalorder %s17, 0
      %p112 = por %p110, %p111
      %s114 = sadd.s32 %s113, 1
      %p117 = scmp.eq.s32.totalorder %s11, 1
      %p118 = scmp.ne.s32.totalorder %s113, %s115
      %p119 = scmp.eq.s32.totalorder %s11, 0
      %p120 = por %p118, %p119
      %p121 = scmp.ne.s32.totalorder %s113, %s115
      %p122 = scmp.eq.s32.totalorder %s16, 1
      %p123 = por %p121, %p122
      %p124 = scmp.ne.s32.totalorder %s115, %s116
      %p125 = scmp.eq.s32.totalorder %s16, 0
      %p126 = por %p124, %p125
      %p127 = scmp.ne.s32.totalorder %s115, %s116
      %p128 = scmp.eq.s32.totalorder %s17, 1
      %p129 = por %p127, %p128
      %p131 = scmp.ne.s32.totalorder %s116, %s130
      %p132 = scmp.eq.s32.totalorder %s17, 0
      %p133 = por %p131, %p132
      %p134 = scmp.le.s32.totalorder 1, %s11
      %p135 = scmp.lt.s32.totalorder %s11, 3
      %p136 = pnand %p134, %p135
      %p137 = pneg %p136
      // Predicated region
      $region9: #{tpu_custom_call.1} parent=5 // pred_check
        _
      $region10: #{tpu_custom_call.1} parent=5 // pred_check_branch
        %139 = sbr.rel (%p136) target = $region12
      $region11: #{tpu_custom_call.1} parent=5 // pred_region
        %s140 = ssub.s32 %s11, 1
        // Predicated region
        $region13: #{tpu_custom_call.1} parent=11 // pred_check
          %p141 = pneg %p84
        $region14: #{tpu_custom_call.1} parent=11 // pred_check_branch
          %143 = sbr.rel (%p141) target = $region16
        $region15: #{tpu_custom_call.1} parent=11 // pred_region
          _
        $region16: #{tpu_custom_call.1} parent=11 // pred_fallthru
          _
        // Predicated region
        $region17: #{tpu_custom_call.1} parent=11 // pred_check
          %p144 = pneg %p105
        $region18: #{tpu_custom_call.1} parent=11 // pred_check_branch
          %146 = sbr.rel (%p144) target = $region20
        $region19: #{tpu_custom_call.1} parent=11 // pred_region
          _
        $region20: #{tpu_custom_call.1} parent=11 // pred_fallthru
          _
      $region12: #{tpu_custom_call.1} parent=5 // pred_fallthru
        _
      %p147 = scmp.lt.s32.totalorder %s11, 2
      // Predicated region
      $region21: #{tpu_custom_call.1} parent=5 // pred_check
        %p148 = pneg %p147
      $region22: #{tpu_custom_call.1} parent=5 // pred_check_branch
        %150 = sbr.rel (%p148) target = $region24
      $region23: #{tpu_custom_call.1} parent=5 // pred_region
        // Predicated region
        $region25: #{tpu_custom_call.1} parent=23 // pred_check
          %p151 = pneg %p31
        $region26: #{tpu_custom_call.1} parent=23 // pred_check_branch
          %153 = sbr.rel (%p151) target = $region28
        $region27: #{tpu_custom_call.1} parent=23 // pred_region
          %s154 = smul.u32 16, %s11
          %s155 = ssub.s32 25, %s154
          %p156 = scmp.lt.s32.totalorder %s155, 16
          %s157 = scalar_select %p156, %s155, 16
          %s158 = smul.u32 128, %s157
          %p159 = scmp.lt.s32.totalorder %s154, 24
          %s160 = scalar_select %p159, %s154, 24
          %s161 = smul.addr %s160, 8
          %s162 = scalar_lea.vmem %s0, %s161
          %s163 = smul.u32 16, %s11
          %s164 = ssub.s32 25, %s163
          %p165 = scmp.lt.s32.totalorder %s164, 16
          %s166 = scalar_select %p165, %s164, 16
          %s167 = smul.u32 128, %s166
        $region28: #{tpu_custom_call.1} parent=23 // pred_fallthru
          _
        // Predicated region
        $region29: #{tpu_custom_call.1} parent=23 // pred_check
          %p168 = pneg %p57
        $region30: #{tpu_custom_call.1} parent=23 // pred_check_branch
          %170 = sbr.rel (%p168) target = $region32
        $region31: #{tpu_custom_call.1} parent=23 // pred_region
          %p171 = scmp.lt.s32.totalorder %s11, 1
          %s172 = scalar_select %p171, %s11, 1
          %s173 = scalar_lea.vmem %s1, %s172
        $region32: #{tpu_custom_call.1} parent=23 // pred_fallthru
          _
      $region24: #{tpu_custom_call.1} parent=5 // pred_fallthru
        _
      %p174 = scmp.le.s32.totalorder 1, %s11
      %p175 = scmp.lt.s32.totalorder %s11, 3
      %p176 = pnand %p174, %p175
      %p177 = pneg %p176
      // Predicated region
      $region33: #{tpu_custom_call.1} parent=5 // pred_check
        _
      $region34: #{tpu_custom_call.1} parent=5 // pred_check_branch
        %179 = sbr.rel (%p176) target = $region36
      $region35: #{tpu_custom_call.1} parent=5 // pred_region
        %s180 = ssub.s32 %s11, 1
        %s181 = smul.u32 16, %s16
        %s182 = ssub.s32 25, %s181
        %p183 = scmp.lt.s32.totalorder %s182, 16
        %s184 = scalar_select %p183, %s182, 16
        %s185 = smul.u32 128, %s184
        %p186 = scmp.lt.s32.totalorder %s181, 24
        %s187 = scalar_select %p186, %s181, 24
        %s188 = smul.addr %s187, 8
        %s189 = scalar_lea.vmem %s0, %s188
        %p190 = pneg %p37
        %p191 = pneg %p34
        %p192 = scmp.lt.s32.totalorder %s16, 1
        %s193 = scalar_select %p192, %s16, 1
        %s194 = scalar_lea.vmem %s1, %s193
        %p195 = pneg %p63
        %p196 = pneg %p60
        %p197 = pneg %p84
        %p198 = pneg %p81
        %p199 = pneg %p105
        %p200 = pneg %p102
        %p201 = pneg %p126
        %p202 = pneg %p123
        %s203 = smul.u32 16, %s16
        %s204 = ssub.s32 25, %s203
        %p205 = scmp.lt.s32.totalorder %s204, 16
        %s206 = scalar_select %p205, %s204, 16
        %s207 = smul.u32 128, %s206
        %p208 = scmp.lt.s32.totalorder %s203, 24
        %s209 = scalar_select %p208, %s203, 24
        %s210 = smul.addr %s209, 8
        %s211 = scalar_lea.vmem %s0, %s210
        %s212 = smul.u32 16, %s16
        %s213 = ssub.s32 25, %s212
        %p214 = scmp.lt.s32.totalorder %s213, 16
        %s215 = scalar_select %p214, %s213, 16
        %s216 = smul.u32 128, %s215
        %p217 = scmp.lt.s32.totalorder %s16, 1
        %s218 = scalar_select %p217, %s16, 1
        %s219 = scalar_lea.vmem %s1, %s218
        %p221 = scmp.eq.s32.totalorder %s16, 0
        // Predicated region
        $region37: #{tpu_custom_call.1} parent=35 // pred_check
          %p222 = pneg %p221
        $region38: #{tpu_custom_call.1} parent=35 // pred_check_branch
          %224 = sbr.rel (%p222) target = $region40
        $region39: #{tpu_custom_call.1} parent=35 // pred_region
          %225 = vst [vmem:[#allocation2] sm:$0x3f] 0.0
        $region40: #{tpu_custom_call.1} parent=35 // pred_fallthru
          _
        %p226 = scmp.ne.s32.totalorder %s16, 1
        // Predicated region
        $region41: #{tpu_custom_call.1} parent=35 // pred_check
          %p227 = pneg %p226
        $region42: #{tpu_custom_call.1} parent=35 // pred_check_branch
          %229 = sbr.rel (%p227) target = $region44
        $region43: #{tpu_custom_call.1} parent=35 // pred_region
          %v230 = vlaneseq
          %v231 = vshrl.u32 %v230, 7
          %v232 = vlaneseq
          %v233 = vand.u32 %v232, 127
          %v234 = vld [vmem:[%s211] sm:$0xff]
          %v235 = vld [vmem:[%s211 + $0x8] sm:$0xff]
          %v236 = vld [vmem:[%s211 + $0x10] sm:$0xff]
          %v237 = vld [vmem:[%s211 + $0x18] sm:$0xff]
          %v238 = vld [vmem:[%s211 + $0x20] sm:$0xff]
          %v239 = vld [vmem:[%s211 + $0x28] sm:$0xff]
          %v240 = vld [vmem:[%s211 + $0x30] sm:$0xff]
          %v241 = vld [vmem:[%s211 + $0x38] sm:$0xff]
          %v242 = vld [vmem:[%s211 + $0x40] sm:$0xff]
          %v243 = vld [vmem:[%s211 + $0x48] sm:$0xff]
          %v244 = vld [vmem:[%s211 + $0x50] sm:$0xff]
          %v245 = vld [vmem:[%s211 + $0x58] sm:$0xff]
          %v246 = vld [vmem:[%s211 + $0x60] sm:$0xff]
          %v247 = vld [vmem:[%s211 + $0x68] sm:$0xff]
          %v248 = vld [vmem:[%s211 + $0x70] sm:$0xff]
          %v249 = vld [vmem:[%s211 + $0x78] sm:$0xff]
          %vm250 = vcmp.eq.s32.totalorder %v233, 0
          %v251 = vsel %vm250, 1, 0
          %v252 = vcvt.s32.f32 %v251
          %v253 = vmul.f32 %v234, %v234
          %v254 = vmul.f32 %v235, %v235
          %v255 = vmul.f32 %v236, %v236
          %v256 = vmul.f32 %v237, %v237
          %v257 = vmul.f32 %v238, %v238
          %v258 = vmul.f32 %v239, %v239
          %v259 = vmul.f32 %v240, %v240
          %v260 = vmul.f32 %v241, %v241
          %v261 = vmul.f32 %v242, %v242
          %v262 = vmul.f32 %v243, %v243
          %v263 = vmul.f32 %v244, %v244
          %v264 = vmul.f32 %v245, %v245
          %v265 = vmul.f32 %v246, %v246
          %v266 = vmul.f32 %v247, %v247
          %v267 = vmul.f32 %v248, %v248
          %v268 = vmul.f32 %v249, %v249
          %285 = vrot.lane.b32.xlu0 %v253, 32
          %v286 = vpop.permute.xlu0 %285
          %287 = vrot.lane.b32.xlu0 %v254, 32
          %v288 = vpop.permute.xlu0 %287
          %289 = vrot.lane.b32.xlu0 %v255, 32
          %v290 = vpop.permute.xlu0 %289
          %291 = vrot.lane.b32.xlu0 %v256, 32
          %v292 = vpop.permute.xlu0 %291
          %293 = vrot.lane.b32.xlu0 %v257, 32
          %v294 = vpop.permute.xlu0 %293
          %295 = vrot.lane.b32.xlu0 %v258, 32
          %v296 = vpop.permute.xlu0 %295
          %297 = vrot.lane.b32.xlu0 %v259, 32
          %v298 = vpop.permute.xlu0 %297
          %299 = vrot.lane.b32.xlu0 %v260, 32
          %v300 = vpop.permute.xlu0 %299
          %301 = vrot.lane.b32.xlu0 %v261, 32
          %v302 = vpop.permute.xlu0 %301
          %303 = vrot.lane.b32.xlu0 %v262, 32
          %v304 = vpop.permute.xlu0 %303
          %305 = vrot.lane.b32.xlu0 %v263, 32
          %v306 = vpop.permute.xlu0 %305
          %307 = vrot.lane.b32.xlu0 %v264, 32
          %v308 = vpop.permute.xlu0 %307
          %309 = vrot.lane.b32.xlu0 %v265, 32
          %v310 = vpop.permute.xlu0 %309
          %311 = vrot.lane.b32.xlu0 %v266, 32
          %v312 = vpop.permute.xlu0 %311
          %313 = vrot.lane.b32.xlu0 %v267, 32
          %v314 = vpop.permute.xlu0 %313
          %315 = vrot.lane.b32.xlu0 %v268, 32
          %v316 = vpop.permute.xlu0 %315
          %334 = vrot.lane.b32.xlu0 %v252, 64
          %v335 = vpop.permute.xlu0 %334
          %vm337 = vcmask 261120
          %v338 = vsel %vm337, %v234, %v286
          %v339 = vsel %vm337, %v235, %v288
          %v340 = vsel %vm337, %v236, %v290
          %v341 = vsel %vm337, %v237, %v292
          %v342 = vsel %vm337, %v238, %v294
          %v343 = vsel %vm337, %v239, %v296
          %v344 = vsel %vm337, %v240, %v298
          %v345 = vsel %vm337, %v241, %v300
          %v346 = vsel %vm337, %v242, %v302
          %v347 = vsel %vm337, %v243, %v304
          %v348 = vsel %vm337, %v244, %v306
          %v349 = vsel %vm337, %v245, %v308
          %v350 = vsel %vm337, %v246, %v310
          %v351 = vsel %vm337, %v247, %v312
          %v352 = vsel %vm337, %v248, %v314
          %v353 = vsel %vm337, %v249, %v316
          %vm354 = vcmask 523264
          %v355 = vsel %vm354, %v338, %v335
          %v356 = vsel %vm354, %v339, %v335
          %v357 = vsel %vm354, %v340, %v335
          %v358 = vsel %vm354, %v341, %v335
          %v359 = vsel %vm354, %v342, %v335
          %v360 = vsel %vm354, %v343, %v335
          %v361 = vsel %vm354, %v344, %v335
          %v362 = vsel %vm354, %v345, %v335
          %v363 = vsel %vm354, %v346, %v335
          %v364 = vsel %vm354, %v347, %v335
          %v365 = vsel %vm354, %v348, %v335
          %v366 = vsel %vm354, %v349, %v335
          %v367 = vsel %vm354, %v350, %v335
          %v368 = vsel %vm354, %v351, %v335
          %v369 = vsel %vm354, %v352, %v335
          %v370 = vsel %vm354, %v353, %v335
          %v371 = vpack.c.bf16 %v356, %v355
          %v372 = vpack.c.bf16 %v358, %v357
          %v373 = vpack.c.bf16 %v360, %v359
          %v374 = vpack.c.bf16 %v362, %v361
          %v375 = vpack.c.bf16 %v364, %v363
          %v376 = vpack.c.bf16 %v366, %v365
          %v377 = vpack.c.bf16 %v368, %v367
          %v378 = vpack.c.bf16 %v370, %v369
          %v379 = vunpack.c.l.bf16 %v371
          %v380 = vunpack.c.h.bf16 %v371
          %v381 = vunpack.c.l.bf16 %v372
          %v382 = vunpack.c.h.bf16 %v372
          %v383 = vunpack.c.l.bf16 %v373
          %v384 = vunpack.c.h.bf16 %v373
          %v385 = vunpack.c.l.bf16 %v374
          %v386 = vunpack.c.h.bf16 %v374
          %v387 = vunpack.c.l.bf16 %v375
          %v388 = vunpack.c.h.bf16 %v375
          %v389 = vunpack.c.l.bf16 %v376
          %v390 = vunpack.c.h.bf16 %v376
          %v391 = vunpack.c.l.bf16 %v377
          %v392 = vunpack.c.h.bf16 %v377
          %v393 = vunpack.c.l.bf16 %v378
          %v394 = vunpack.c.h.bf16 %v378
          %v395 = vsub.f32 %v355, %v379
          %v396 = vsub.f32 %v356, %v380
          %v397 = vsub.f32 %v357, %v381
          %v398 = vsub.f32 %v358, %v382
          %v399 = vsub.f32 %v359, %v383
          %v400 = vsub.f32 %v360, %v384
          %v401 = vsub.f32 %v361, %v385
          %v402 = vsub.f32 %v362, %v386
          %v403 = vsub.f32 %v363, %v387
          %v404 = vsub.f32 %v364, %v388
          %v405 = vsub.f32 %v365, %v389
          %v406 = vsub.f32 %v366, %v390
          %v407 = vsub.f32 %v367, %v391
          %v408 = vsub.f32 %v368, %v392
          %v409 = vsub.f32 %v369, %v393
          %v410 = vsub.f32 %v370, %v394
          %v411 = vpack.c.bf16 %v396, %v395
          %v412 = vpack.c.bf16 %v398, %v397
          %v413 = vpack.c.bf16 %v400, %v399
          %v414 = vpack.c.bf16 %v402, %v401
          %v415 = vpack.c.bf16 %v404, %v403
          %v416 = vpack.c.bf16 %v406, %v405
          %v417 = vpack.c.bf16 %v408, %v407
          %v418 = vpack.c.bf16 %v410, %v409
          %v419 = vld [vmem:[%s219] sm:$0x1]
          %v420 = vlaneseq
          %v421 = vshrl.u32 %v420, 7
          %v422 = vsub.s32 0, %v421
          %v423 = vrot.slane %v419, %v422
          %vm424 = vcmp.eq.s32.totalorder %v231, %v423
          %v425 = vsel %vm424, 1, 0
          %v426 = vcvt.s32.f32 %v425
          %v427 = vpack.c.bf16 %v426, %v426
          %v428 = vld [vmem:[#allocation2] sm:$0x3f]
          %429 = vmatprep.subr.bf16.mxu0 0
          %430 = vmatpush1.bf16.msra.mxu0 %v411
          %431 = vmatprep.subr.bf16.mxu0 0
          %432 = vmatpush1.bf16.msra.mxu0 %v412
          %433 = vmatprep.subr.bf16.mxu0 0
          %434 = vmatpush1.bf16.msra.mxu0 %v413
          %435 = vmatprep.subr.bf16.mxu0 0
          %436 = vmatpush1.bf16.msra.mxu0 %v414
          %437 = vmatprep.subr.bf16.mxu0 0
          %438 = vmatpush1.bf16.msra.mxu0 %v415
          %439 = vmatprep.subr.bf16.mxu0 0
          %440 = vmatpush1.bf16.msra.mxu0 %v416
          %441 = vmatprep.subr.bf16.mxu0 0
          %442 = vmatpush1.bf16.msra.mxu0 %v417
          %443 = vmatprep.subr.bf16.mxu0 0
          %444 = vmatpush1.bf16.msra.mxu0 %v418
          %445 = vmatprep.subr.bf16.mxu0 0
          %446 = vmatpush1.bf16.msra.mxu0 0
          %447 = vmatprep.subr.bf16.mxu0 0
          %448 = vmatpush1.bf16.msra.mxu0 0
          %449 = vmatprep.subr.bf16.mxu0 0
          %450 = vmatpush1.bf16.msra.mxu0 0
          %451 = vmatprep.subr.bf16.mxu0 0
          %452 = vmatpush1.bf16.msra.mxu0 0
          %453 = vmatprep.subr.bf16.mxu0 0
          %454 = vmatpush1.bf16.msra.mxu0 0
          %455 = vmatprep.subr.bf16.mxu0 0
          %456 = vmatpush1.bf16.msra.mxu0 0
          %457 = vmatprep.subr.bf16.mxu0 0
          %458 = vmatpush1.bf16.msra.mxu0 0
          %459 = vmatprep.subr.bf16.mxu0 0
          %460 = vmatpush1.bf16.msra.mxu0 0
          %461 = vmatprep.mubr.bf16.mxu0 0
          %462 = vmatmul.mubr.bf16.gmra.mrb[0].mxu0 %v427
          %v463 = vpop.f32.mrb[0].mxu0
          %v464 = vadd.f32 0.0, %v463
          %v465 = vpop.f32.mrb[0].mxu0
          %v466 = vpop.f32.mrb[0].mxu0
          %v467 = vpop.f32.mrb[0].mxu0
          %468 = vdwg.mxu0
          %469 = vmatprep.subr.bf16.mxu0 0
          %470 = vmatpush1.bf16.msra.mxu0 %v371
          %471 = vmatprep.subr.bf16.mxu0 0
          %472 = vmatpush1.bf16.msra.mxu0 %v372
          %473 = vmatprep.subr.bf16.mxu0 0
          %474 = vmatpush1.bf16.msra.mxu0 %v373
          %475 = vmatprep.subr.bf16.mxu0 0
          %476 = vmatpush1.bf16.msra.mxu0 %v374
          %477 = vmatprep.subr.bf16.mxu0 0
          %478 = vmatpush1.bf16.msra.mxu0 %v375
          %479 = vmatprep.subr.bf16.mxu0 0
          %480 = vmatpush1.bf16.msra.mxu0 %v376
          %481 = vmatprep.subr.bf16.mxu0 0
          %482 = vmatpush1.bf16.msra.mxu0 %v377
          %483 = vmatprep.subr.bf16.mxu0 0
          %484 = vmatpush1.bf16.msra.mxu0 %v378
          %485 = vmatprep.subr.bf16.mxu0 0
          %486 = vmatpush1.bf16.msra.mxu0 0
          %487 = vmatprep.subr.bf16.mxu0 0
          %488 = vmatpush1.bf16.msra.mxu0 0
          %489 = vmatprep.subr.bf16.mxu0 0
          %490 = vmatpush1.bf16.msra.mxu0 0
          %491 = vmatprep.subr.bf16.mxu0 0
          %492 = vmatpush1.bf16.msra.mxu0 0
          %493 = vmatprep.subr.bf16.mxu0 0
          %494 = vmatpush1.bf16.msra.mxu0 0
          %495 = vmatprep.subr.bf16.mxu0 0
          %496 = vmatpush1.bf16.msra.mxu0 0
          %497 = vmatprep.subr.bf16.mxu0 0
          %498 = vmatpush1.bf16.msra.mxu0 0
          %499 = vmatprep.subr.bf16.mxu0 0
          %500 = vmatpush1.bf16.msra.mxu0 0
          %501 = vmatprep.mubr.bf16.mxu0 0
          %502 = vmatmul.mubr.bf16.gmra.mrb[0].mxu0 %v427
          %v503 = vpop.f32.mrb[0].mxu0
          %v504 = vadd.f32 %v464, %v503
          %v505 = vpop.f32.mrb[0].mxu0
          %v506 = vpop.f32.mrb[0].mxu0
          %v507 = vpop.f32.mrb[0].mxu0
          %508 = vdwg.mxu0
          %v509 = vadd.f32 %v428, %v504
          %510 = vst [vmem:[#allocation2] sm:$0x3f] %v509
        $region44: #{tpu_custom_call.1} parent=35 // pred_fallthru
          _
        %p511 = scmp.eq.s32.totalorder %s16, 1
        // Predicated region
        $region45: #{tpu_custom_call.1} parent=35 // pred_check
          %p512 = pneg %p511
        $region46: #{tpu_custom_call.1} parent=35 // pred_check_branch
          %514 = sbr.rel (%p512) target = $region48
        $region47: #{tpu_custom_call.1} parent=35 // pred_region
          %v515 = vlaneseq
          %v516 = vshrl.u32 %v515, 7
          %v517 = vlaneseq
          %v518 = vand.u32 %v517, 127
          %s519 = smul.u32 %s16, 128
          %v520 = vadd.s32 %v516, 8
          %v521 = vadd.s32 %v516, 16
          %v522 = vadd.s32 %v516, 24
          %v523 = vadd.s32 %v516, 32
          %v524 = vadd.s32 %v516, 40
          %v525 = vadd.s32 %v516, 48
          %v526 = vadd.s32 %v516, 56
          %v527 = vadd.s32 %v516, 64
          %v528 = vadd.s32 %v516, 72
          %v529 = vadd.s32 %v516, 80
          %v530 = vadd.s32 %v516, 88
          %v531 = vadd.s32 %v516, 96
          %v532 = vadd.s32 %v516, 104
          %v533 = vadd.s32 %v516, 112
          %v534 = vadd.s32 %v516, 120
          %v535 = vstv %s519
          %v536 = vadd.s32 %v516, %v535
          %v537 = vadd.s32 %v520, %v535
          %v538 = vadd.s32 %v521, %v535
          %v539 = vadd.s32 %v522, %v535
          %v540 = vadd.s32 %v523, %v535
          %v541 = vadd.s32 %v524, %v535
          %v542 = vadd.s32 %v525, %v535
          %v543 = vadd.s32 %v526, %v535
          %v544 = vadd.s32 %v527, %v535
          %v545 = vadd.s32 %v528, %v535
          %v546 = vadd.s32 %v529, %v535
          %v547 = vadd.s32 %v530, %v535
          %v548 = vadd.s32 %v531, %v535
          %v549 = vadd.s32 %v532, %v535
          %v550 = vadd.s32 %v533, %v535
          %v551 = vadd.s32 %v534, %v535
          %vm552 = vcmp.lt.s32.totalorder %v536, 200
          %vm553 = vcmp.lt.s32.totalorder %v537, 200
          %vm554 = vcmp.lt.s32.totalorder %v538, 200
          %vm555 = vcmp.lt.s32.totalorder %v539, 200
          %vm556 = vcmp.lt.s32.totalorder %v540, 200
          %vm557 = vcmp.lt.s32.totalorder %v541, 200
          %vm558 = vcmp.lt.s32.totalorder %v542, 200
          %vm559 = vcmp.lt.s32.totalorder %v543, 200
          %vm560 = vcmp.lt.s32.totalorder %v544, 200
          %vm561 = vcmp.lt.s32.totalorder %v545, 200
          %vm562 = vcmp.lt.s32.totalorder %v546, 200
          %vm563 = vcmp.lt.s32.totalorder %v547, 200
          %vm564 = vcmp.lt.s32.totalorder %v548, 200
          %vm565 = vcmp.lt.s32.totalorder %v549, 200
          %vm566 = vcmp.lt.s32.totalorder %v550, 200
          %vm567 = vcmp.lt.s32.totalorder %v551, 200
          %v568 = vld [vmem:[%s211] sm:$0xff]
          %v569 = vld [vmem:[%s211 + $0x8] sm:$0xff]
          %v570 = vld [vmem:[%s211 + $0x10] sm:$0xff]
          %v571 = vld [vmem:[%s211 + $0x18] sm:$0xff]
          %v572 = vld [vmem:[%s211 + $0x20] sm:$0xff]
          %v573 = vld [vmem:[%s211 + $0x28] sm:$0xff]
          %v574 = vld [vmem:[%s211 + $0x30] sm:$0xff]
          %v575 = vld [vmem:[%s211 + $0x38] sm:$0xff]
          %v576 = vld [vmem:[%s211 + $0x40] sm:$0xff]
          %v577 = vld [vmem:[%s211 + $0x48] sm:$0xff]
          %v578 = vld [vmem:[%s211 + $0x50] sm:$0xff]
          %v579 = vld [vmem:[%s211 + $0x58] sm:$0xff]
          %v580 = vld [vmem:[%s211 + $0x60] sm:$0xff]
          %v581 = vld [vmem:[%s211 + $0x68] sm:$0xff]
          %v582 = vld [vmem:[%s211 + $0x70] sm:$0xff]
          %v583 = vld [vmem:[%s211 + $0x78] sm:$0xff]
          %v584 = vsel %vm552, 1, 0
          %v585 = vsel %vm553, 1, 0
          %v586 = vsel %vm554, 1, 0
          %v587 = vsel %vm555, 1, 0
          %v588 = vsel %vm556, 1, 0
          %v589 = vsel %vm557, 1, 0
          %v590 = vsel %vm558, 1, 0
          %v591 = vsel %vm559, 1, 0
          %v592 = vsel %vm560, 1, 0
          %v593 = vsel %vm561, 1, 0
          %v594 = vsel %vm562, 1, 0
          %v595 = vsel %vm563, 1, 0
          %v596 = vsel %vm564, 1, 0
          %v597 = vsel %vm565, 1, 0
          %v598 = vsel %vm566, 1, 0
          %v599 = vsel %vm567, 1, 0
          %vm600 = vcmp.eq.s32.totalorder %v584, 1
          %vm601 = vcmp.eq.s32.totalorder %v585, 1
          %vm602 = vcmp.eq.s32.totalorder %v586, 1
          %vm603 = vcmp.eq.s32.totalorder %v587, 1
          %vm604 = vcmp.eq.s32.totalorder %v588, 1
          %vm605 = vcmp.eq.s32.totalorder %v589, 1
          %vm606 = vcmp.eq.s32.totalorder %v590, 1
          %vm607 = vcmp.eq.s32.totalorder %v591, 1
          %vm608 = vcmp.eq.s32.totalorder %v592, 1
          %vm609 = vcmp.eq.s32.totalorder %v593, 1
          %vm610 = vcmp.eq.s32.totalorder %v594, 1
          %vm611 = vcmp.eq.s32.totalorder %v595, 1
          %vm612 = vcmp.eq.s32.totalorder %v596, 1
          %vm613 = vcmp.eq.s32.totalorder %v597, 1
          %vm614 = vcmp.eq.s32.totalorder %v598, 1
          %vm615 = vcmp.eq.s32.totalorder %v599, 1
          %v616 = vsel %vm600, %v568, 0.0
          %v617 = vsel %vm601, %v569, 0.0
          %v618 = vsel %vm602, %v570, 0.0
          %v619 = vsel %vm603, %v571, 0.0
          %v620 = vsel %vm604, %v572, 0.0
          %v621 = vsel %vm605, %v573, 0.0
          %v622 = vsel %vm606, %v574, 0.0
          %v623 = vsel %vm607, %v575, 0.0
          %v624 = vsel %vm608, %v576, 0.0
          %v625 = vsel %vm609, %v577, 0.0
          %v626 = vsel %vm610, %v578, 0.0
          %v627 = vsel %vm611, %v579, 0.0
          %v628 = vsel %vm612, %v580, 0.0
          %v629 = vsel %vm613, %v581, 0.0
          %v630 = vsel %vm614, %v582, 0.0
          %v631 = vsel %vm615, %v583, 0.0
          %vm632 = vcmp.eq.s32.totalorder %v518, 0
          %vm633 = vmand %vm632, %vm600
          %vm634 = vmand %vm632, %vm601
          %vm635 = vmand %vm632, %vm602
          %vm636 = vmand %vm632, %vm603
          %vm637 = vmand %vm632, %vm604
          %vm638 = vmand %vm632, %vm605
          %vm639 = vmand %vm632, %vm606
          %vm640 = vmand %vm632, %vm607
          %vm641 = vmand %vm632, %vm608
          %vm642 = vmand %vm632, %vm609
          %vm643 = vmand %vm632, %vm610
          %vm644 = vmand %vm632, %vm611
          %vm645 = vmand %vm632, %vm612
          %vm646 = vmand %vm632, %vm613
          %vm647 = vmand %vm632, %vm614
          %vm648 = vmand %vm632, %vm615
          %v649 = vsel %vm633, 1.0, 0.0
          %v650 = vsel %vm634, 1.0, 0.0
          %v651 = vsel %vm635, 1.0, 0.0
          %v652 = vsel %vm636, 1.0, 0.0
          %v653 = vsel %vm637, 1.0, 0.0
          %v654 = vsel %vm638, 1.0, 0.0
          %v655 = vsel %vm639, 1.0, 0.0
          %v656 = vsel %vm640, 1.0, 0.0
          %v657 = vsel %vm641, 1.0, 0.0
          %v658 = vsel %vm642, 1.0, 0.0
          %v659 = vsel %vm643, 1.0, 0.0
          %v660 = vsel %vm644, 1.0, 0.0
          %v661 = vsel %vm645, 1.0, 0.0
          %v662 = vsel %vm646, 1.0, 0.0
          %v663 = vsel %vm647, 1.0, 0.0
          %v664 = vsel %vm648, 1.0, 0.0
          %v665 = vmul.f32 %v616, %v616
          %v666 = vmul.f32 %v617, %v617
          %v667 = vmul.f32 %v618, %v618
          %v668 = vmul.f32 %v619, %v619
          %v669 = vmul.f32 %v620, %v620
          %v670 = vmul.f32 %v621, %v621
          %v671 = vmul.f32 %v622, %v622
          %v672 = vmul.f32 %v623, %v623
          %v673 = vmul.f32 %v624, %v624
          %v674 = vmul.f32 %v625, %v625
          %v675 = vmul.f32 %v626, %v626
          %v676 = vmul.f32 %v627, %v627
          %v677 = vmul.f32 %v628, %v628
          %v678 = vmul.f32 %v629, %v629
          %v679 = vmul.f32 %v630, %v630
          %v680 = vmul.f32 %v631, %v631
          %697 = vrot.lane.b32.xlu0 %v665, 32
          %v698 = vpop.permute.xlu0 %697
          %699 = vrot.lane.b32.xlu0 %v666, 32
          %v700 = vpop.permute.xlu0 %699
          %701 = vrot.lane.b32.xlu0 %v667, 32
          %v702 = vpop.permute.xlu0 %701
          %703 = vrot.lane.b32.xlu0 %v668, 32
          %v704 = vpop.permute.xlu0 %703
          %705 = vrot.lane.b32.xlu0 %v669, 32
          %v706 = vpop.permute.xlu0 %705
          %707 = vrot.lane.b32.xlu0 %v670, 32
          %v708 = vpop.permute.xlu0 %707
          %709 = vrot.lane.b32.xlu0 %v671, 32
          %v710 = vpop.permute.xlu0 %709
          %711 = vrot.lane.b32.xlu0 %v672, 32
          %v712 = vpop.permute.xlu0 %711
          %713 = vrot.lane.b32.xlu0 %v673, 32
          %v714 = vpop.permute.xlu0 %713
          %715 = vrot.lane.b32.xlu0 %v674, 32
          %v716 = vpop.permute.xlu0 %715
          %717 = vrot.lane.b32.xlu0 %v675, 32
          %v718 = vpop.permute.xlu0 %717
          %719 = vrot.lane.b32.xlu0 %v676, 32
          %v720 = vpop.permute.xlu0 %719
          %721 = vrot.lane.b32.xlu0 %v677, 32
          %v722 = vpop.permute.xlu0 %721
          %723 = vrot.lane.b32.xlu0 %v678, 32
          %v724 = vpop.permute.xlu0 %723
          %725 = vrot.lane.b32.xlu0 %v679, 32
          %v726 = vpop.permute.xlu0 %725
          %727 = vrot.lane.b32.xlu0 %v680, 32
          %v728 = vpop.permute.xlu0 %727
          %761 = vrot.lane.b32.xlu0 %v649, 64
          %v762 = vpop.permute.xlu0 %761
          %763 = vrot.lane.b32.xlu0 %v650, 64
          %v764 = vpop.permute.xlu0 %763
          %765 = vrot.lane.b32.xlu0 %v651, 64
          %v766 = vpop.permute.xlu0 %765
          %767 = vrot.lane.b32.xlu0 %v652, 64
          %v768 = vpop.permute.xlu0 %767
          %769 = vrot.lane.b32.xlu0 %v653, 64
          %v770 = vpop.permute.xlu0 %769
          %771 = vrot.lane.b32.xlu0 %v654, 64
          %v772 = vpop.permute.xlu0 %771
          %773 = vrot.lane.b32.xlu0 %v655, 64
          %v774 = vpop.permute.xlu0 %773
          %775 = vrot.lane.b32.xlu0 %v656, 64
          %v776 = vpop.permute.xlu0 %775
          %777 = vrot.lane.b32.xlu0 %v657, 64
          %v778 = vpop.permute.xlu0 %777
          %779 = vrot.lane.b32.xlu0 %v658, 64
          %v780 = vpop.permute.xlu0 %779
          %781 = vrot.lane.b32.xlu0 %v659, 64
          %v782 = vpop.permute.xlu0 %781
          %783 = vrot.lane.b32.xlu0 %v660, 64
          %v784 = vpop.permute.xlu0 %783
          %785 = vrot.lane.b32.xlu0 %v661, 64
          %v786 = vpop.permute.xlu0 %785
          %787 = vrot.lane.b32.xlu0 %v662, 64
          %v788 = vpop.permute.xlu0 %787
          %789 = vrot.lane.b32.xlu0 %v663, 64
          %v790 = vpop.permute.xlu0 %789
          %791 = vrot.lane.b32.xlu0 %v664, 64
          %v792 = vpop.permute.xlu0 %791
          %vm809 = vcmask 261120
          %v810 = vsel %vm809, %v616, %v698
          %v811 = vsel %vm809, %v617, %v700
          %v812 = vsel %vm809, %v618, %v702
          %v813 = vsel %vm809, %v619, %v704
          %v814 = vsel %vm809, %v620, %v706
          %v815 = vsel %vm809, %v621, %v708
          %v816 = vsel %vm809, %v622, %v710
          %v817 = vsel %vm809, %v623, %v712
          %v818 = vsel %vm809, %v624, %v714
          %v819 = vsel %vm809, %v625, %v716
          %v820 = vsel %vm809, %v626, %v718
          %v821 = vsel %vm809, %v627, %v720
          %v822 = vsel %vm809, %v628, %v722
          %v823 = vsel %vm809, %v629, %v724
          %v824 = vsel %vm809, %v630, %v726
          %v825 = vsel %vm809, %v631, %v728
          %vm826 = vcmask 523264
          %v827 = vsel %vm826, %v810, %v762
          %v828 = vsel %vm826, %v811, %v764
          %v829 = vsel %vm826, %v812, %v766
          %v830 = vsel %vm826, %v813, %v768
          %v831 = vsel %vm826, %v814, %v770
          %v832 = vsel %vm826, %v815, %v772
          %v833 = vsel %vm826, %v816, %v774
          %v834 = vsel %vm826, %v817, %v776
          %v835 = vsel %vm826, %v818, %v778
          %v836 = vsel %vm826, %v819, %v780
          %v837 = vsel %vm826, %v820, %v782
          %v838 = vsel %vm826, %v821, %v784
          %v839 = vsel %vm826, %v822, %v786
          %v840 = vsel %vm826, %v823, %v788
          %v841 = vsel %vm826, %v824, %v790
          %v842 = vsel %vm826, %v825, %v792
          %v843 = vpack.c.bf16 %v828, %v827
          %v844 = vpack.c.bf16 %v830, %v829
          %v845 = vpack.c.bf16 %v832, %v831
          %v846 = vpack.c.bf16 %v834, %v833
          %v847 = vpack.c.bf16 %v836, %v835
          %v848 = vpack.c.bf16 %v838, %v837
          %v849 = vpack.c.bf16 %v840, %v839
          %v850 = vpack.c.bf16 %v842, %v841
          %v851 = vunpack.c.l.bf16 %v843
          %v852 = vunpack.c.h.bf16 %v843
          %v853 = vunpack.c.l.bf16 %v844
          %v854 = vunpack.c.h.bf16 %v844
          %v855 = vunpack.c.l.bf16 %v845
          %v856 = vunpack.c.h.bf16 %v845
          %v857 = vunpack.c.l.bf16 %v846
          %v858 = vunpack.c.h.bf16 %v846
          %v859 = vunpack.c.l.bf16 %v847
          %v860 = vunpack.c.h.bf16 %v847
          %v861 = vunpack.c.l.bf16 %v848
          %v862 = vunpack.c.h.bf16 %v848
          %v863 = vunpack.c.l.bf16 %v849
          %v864 = vunpack.c.h.bf16 %v849
          %v865 = vunpack.c.l.bf16 %v850
          %v866 = vunpack.c.h.bf16 %v850
          %v867 = vsub.f32 %v827, %v851
          %v868 = vsub.f32 %v828, %v852
          %v869 = vsub.f32 %v829, %v853
          %v870 = vsub.f32 %v830, %v854
          %v871 = vsub.f32 %v831, %v855
          %v872 = vsub.f32 %v832, %v856
          %v873 = vsub.f32 %v833, %v857
          %v874 = vsub.f32 %v834, %v858
          %v875 = vsub.f32 %v835, %v859
          %v876 = vsub.f32 %v836, %v860
          %v877 = vsub.f32 %v837, %v861
          %v878 = vsub.f32 %v838, %v862
          %v879 = vsub.f32 %v839, %v863
          %v880 = vsub.f32 %v840, %v864
          %v881 = vsub.f32 %v841, %v865
          %v882 = vsub.f32 %v842, %v866
          %v883 = vpack.c.bf16 %v868, %v867
          %v884 = vpack.c.bf16 %v870, %v869
          %v885 = vpack.c.bf16 %v872, %v871
          %v886 = vpack.c.bf16 %v874, %v873
          %v887 = vpack.c.bf16 %v876, %v875
          %v888 = vpack.c.bf16 %v878, %v877
          %v889 = vpack.c.bf16 %v880, %v879
          %v890 = vpack.c.bf16 %v882, %v881
          %v891 = vld [vmem:[%s219] sm:$0x1]
          %v892 = vlaneseq
          %v893 = vshrl.u32 %v892, 7
          %v894 = vsub.s32 0, %v893
          %v895 = vrot.slane %v891, %v894
          %vm896 = vcmp.eq.s32.totalorder %v516, %v895
          %v897 = vsel %vm896, 1, 0
          %v898 = vcvt.s32.f32 %v897
          %v899 = vpack.c.bf16 %v898, %v898
          %v900 = vld [vmem:[#allocation2] sm:$0x3f]
          %901 = vmatprep.subr.bf16.mxu0 0
          %902 = vmatpush1.bf16.msra.mxu0 %v883
          %903 = vmatprep.subr.bf16.mxu0 0
          %904 = vmatpush1.bf16.msra.mxu0 %v884
          %905 = vmatprep.subr.bf16.mxu0 0
          %906 = vmatpush1.bf16.msra.mxu0 %v885
          %907 = vmatprep.subr.bf16.mxu0 0
          %908 = vmatpush1.bf16.msra.mxu0 %v886
          %909 = vmatprep.subr.bf16.mxu0 0
          %910 = vmatpush1.bf16.msra.mxu0 %v887
          %911 = vmatprep.subr.bf16.mxu0 0
          %912 = vmatpush1.bf16.msra.mxu0 %v888
          %913 = vmatprep.subr.bf16.mxu0 0
          %914 = vmatpush1.bf16.msra.mxu0 %v889
          %915 = vmatprep.subr.bf16.mxu0 0
          %916 = vmatpush1.bf16.msra.mxu0 %v890
          %917 = vmatprep.subr.bf16.mxu0 0
          %918 = vmatpush1.bf16.msra.mxu0 0
          %919 = vmatprep.subr.bf16.mxu0 0
          %920 = vmatpush1.bf16.msra.mxu0 0
          %921 = vmatprep.subr.bf16.mxu0 0
          %922 = vmatpush1.bf16.msra.mxu0 0
          %923 = vmatprep.subr.bf16.mxu0 0
          %924 = vmatpush1.bf16.msra.mxu0 0
          %925 = vmatprep.subr.bf16.mxu0 0
          %926 = vmatpush1.bf16.msra.mxu0 0
          %927 = vmatprep.subr.bf16.mxu0 0
          %928 = vmatpush1.bf16.msra.mxu0 0
          %929 = vmatprep.subr.bf16.mxu0 0
          %930 = vmatpush1.bf16.msra.mxu0 0
          %931 = vmatprep.subr.bf16.mxu0 0
          %932 = vmatpush1.bf16.msra.mxu0 0
          %933 = vmatprep.mubr.bf16.mxu0 0
          %934 = vmatmul.mubr.bf16.gmra.mrb[0].mxu0 %v899
          %v935 = vpop.f32.mrb[0].mxu0
          %v936 = vadd.f32 0.0, %v935
          %v937 = vpop.f32.mrb[0].mxu0
          %v938 = vpop.f32.mrb[0].mxu0
          %v939 = vpop.f32.mrb[0].mxu0
          %940 = vdwg.mxu0
          %941 = vmatprep.subr.bf16.mxu0 0
          %942 = vmatpush1.bf16.msra.mxu0 %v843
          %943 = vmatprep.subr.bf16.mxu0 0
          %944 = vmatpush1.bf16.msra.mxu0 %v844
          %945 = vmatprep.subr.bf16.mxu0 0
          %946 = vmatpush1.bf16.msra.mxu0 %v845
          %947 = vmatprep.subr.bf16.mxu0 0
          %948 = vmatpush1.bf16.msra.mxu0 %v846
          %949 = vmatprep.subr.bf16.mxu0 0
          %950 = vmatpush1.bf16.msra.mxu0 %v847
          %951 = vmatprep.subr.bf16.mxu0 0
          %952 = vmatpush1.bf16.msra.mxu0 %v848
          %953 = vmatprep.subr.bf16.mxu0 0
          %954 = vmatpush1.bf16.msra.mxu0 %v849
          %955 = vmatprep.subr.bf16.mxu0 0
          %956 = vmatpush1.bf16.msra.mxu0 %v850
          %957 = vmatprep.subr.bf16.mxu0 0
          %958 = vmatpush1.bf16.msra.mxu0 0
          %959 = vmatprep.subr.bf16.mxu0 0
          %960 = vmatpush1.bf16.msra.mxu0 0
          %961 = vmatprep.subr.bf16.mxu0 0
          %962 = vmatpush1.bf16.msra.mxu0 0
          %963 = vmatprep.subr.bf16.mxu0 0
          %964 = vmatpush1.bf16.msra.mxu0 0
          %965 = vmatprep.subr.bf16.mxu0 0
          %966 = vmatpush1.bf16.msra.mxu0 0
          %967 = vmatprep.subr.bf16.mxu0 0
          %968 = vmatpush1.bf16.msra.mxu0 0
          %969 = vmatprep.subr.bf16.mxu0 0
          %970 = vmatpush1.bf16.msra.mxu0 0
          %971 = vmatprep.subr.bf16.mxu0 0
          %972 = vmatpush1.bf16.msra.mxu0 0
          %973 = vmatprep.mubr.bf16.mxu0 0
          %974 = vmatmul.mubr.bf16.gmra.mrb[0].mxu0 %v899
          %v975 = vpop.f32.mrb[0].mxu0
          %v976 = vadd.f32 %v936, %v975
          %v977 = vpop.f32.mrb[0].mxu0
          %v978 = vpop.f32.mrb[0].mxu0
          %v979 = vpop.f32.mrb[0].mxu0
          %980 = vdwg.mxu0
          %v981 = vadd.f32 %v900, %v976
          %982 = vst [vmem:[#allocation2] sm:$0x3f] %v981
          %v983 = vld [vmem:[#allocation2] sm:$0x3f]
          %vm984 = vcmp.gt.f32.partialorder %v983, 0.0
          %v985 = vsel %vm984, 1, 0
          %v986 = vcvt.s32.f32 %v985
          %v987 = vmax.f32 %v983, 1.0
          %989 = vset.pattern.permute.xlu0 64
          %990 = vperm.xlu0 %989, %v987
          %v991 = vpop.permute.xlu0 %990
          %v993 = vrcp.pop %v991
          %v994 = vmul.f32 %v983, %v993
          %vm995 = vcmp.gt.f32.partialorder %v983, 1.0
          %997 = vset.pattern.permute.xlu0 64
          %998 = vperm.xlu0 %997, %v983
          %v999 = vpop.permute.xlu0 %998
          %v1001 = vmul.f32 %v999, %v994
          %v1002 = vmul.f32 %v1001, %v994
          %1004 = vrot.lane.b32.xlu0 %v1002, 32
          %v1005 = vpop.permute.xlu0 %1004
          %v1007 = vsub.f32 %v983, %v1005
          %v1008 = vsub.f32 %v983, 1.0
          %v1009 = vmax.f32 %v1008, 1.0
          %1011 = vset.pattern.permute.xlu0 64
          %1012 = vperm.xlu0 %1011, %v1009
          %v1013 = vpop.permute.xlu0 %1012
          %v1015 = vrcp.pop %v1013
          %v1016 = vmul.f32 %v1007, %v1015
          %v1017 = vsel %vm995, 1, 0
          %1018 = vset.pattern.permute.xlu0 64
          %1019 = vperm.xlu0 %1018, %v1017
          %v1020 = vpop.permute.xlu0 %1019
          %vm1021 = vcmp.eq.s32.totalorder %v1020, 1
          %v1022 = vsel %vm1021, %v1016, 0.0
          %v1023 = vmul.f32 %v1008, 0.11111111
          %v1024 = vld [vmem:[%s2] sm:$0xff]
          %v1025 = vld [vmem:[%s2 + $0x8] sm:$0xff]
          %v1026 = vld [vmem:[%s2 + $0x10] sm:$0xff]
          %v1027 = vld [vmem:[%s2 + $0x18] sm:$0xff]
          %v1028 = vld [vmem:[%s2 + $0x20] sm:$0xff]
          %v1029 = vld [vmem:[%s2 + $0x28] sm:$0xff]
          %v1030 = vld [vmem:[%s2 + $0x30] sm:$0xff]
          %v1031 = vld [vmem:[%s2 + $0x38] sm:$0xff]
          %v1033 = vsel %vm809, %v994, 0
          %1035 = vmatprep.subr.mxu0 0.0
          %v1036 = vand.u32 %v1028, 4294901760
          %1037 = vmatpush1.msra.mxu0 %v1036
          %1038 = vmatprep.subr.mxu0 0.0
          %v1039 = vand.u32 %v1029, 4294901760
          %1040 = vmatpush1.msra.mxu0 %v1039
          %1041 = vmatprep.subr.mxu0 0.0
          %v1042 = vand.u32 %v1030, 4294901760
          %1043 = vmatpush1.msra.mxu0 %v1042
          %1044 = vmatprep.subr.mxu0 0.0
          %v1045 = vand.u32 %v1031, 4294901760
          %1046 = vmatpush1.msra.mxu0 %v1045
          %1047 = vmatprep.subr.mxu0 0.0
          %1048 = vmatpush1.msra.mxu0 0.0
          %1049 = vmatprep.subr.mxu0 0.0
          %1050 = vmatpush1.msra.mxu0 0.0
          %1051 = vmatprep.subr.mxu0 0.0
          %1052 = vmatpush1.msra.mxu0 0.0
          %1053 = vmatprep.subr.mxu0 0.0
          %1054 = vmatpush1.msra.mxu0 0.0
          %1055 = vmatprep.subr.mxu0 0.0
          %1056 = vmatpush1.msra.mxu0 0.0
          %1057 = vmatprep.subr.mxu0 0.0
          %1058 = vmatpush1.msra.mxu0 0.0
          %1059 = vmatprep.subr.mxu0 0.0
          %1060 = vmatpush1.msra.mxu0 0.0
          %1061 = vmatprep.subr.mxu0 0.0
          %1062 = vmatpush1.msra.mxu0 0.0
          %1063 = vmatprep.subr.mxu0 0.0
          %1064 = vmatpush1.msra.mxu0 0.0
          %1065 = vmatprep.subr.mxu0 0.0
          %1066 = vmatpush1.msra.mxu0 0.0
          %1067 = vmatprep.subr.mxu0 0.0
          %1068 = vmatpush1.msra.mxu0 0.0
          %1069 = vmatprep.subr.mxu0 0.0
          %1070 = vmatpush1.msra.mxu0 0.0
          %1071 = vmatprep.subr.mxu0 0.0
          %1072 = vmatpush1.msra.mxu0 0.0
          %1073 = vmatprep.subr.mxu0 0.0
          %1074 = vmatpush1.msra.mxu0 0.0
          %1075 = vmatprep.subr.mxu0 0.0
          %1076 = vmatpush1.msra.mxu0 0.0
          %1077 = vmatprep.subr.mxu0 0.0
          %1078 = vmatpush1.msra.mxu0 0.0
          %1079 = vmatprep.subr.mxu0 0.0
          %1080 = vmatpush1.msra.mxu0 0.0
          %1081 = vmatprep.subr.mxu0 0.0
          %1082 = vmatpush1.msra.mxu0 0.0
          %1083 = vmatprep.subr.mxu0 0.0
          %1084 = vmatpush1.msra.mxu0 0.0
          %1085 = vmatprep.subr.mxu0 0.0
          %1086 = vmatpush1.msra.mxu0 0.0
          %1087 = vmatprep.subr.mxu0 0.0
          %1088 = vmatpush1.msra.mxu0 0.0
          %1089 = vmatprep.subr.mxu0 0.0
          %1090 = vmatpush1.msra.mxu0 0.0
          %1091 = vmatprep.subr.mxu0 0.0
          %1092 = vmatpush1.msra.mxu0 0.0
          %1093 = vmatprep.subr.mxu0 0.0
          %1094 = vmatpush1.msra.mxu0 0.0
          %1095 = vmatprep.subr.mxu0 0.0
          %1096 = vmatpush1.msra.mxu0 0.0
          %1097 = vmatprep.subr.mxu0 0.0
          %1098 = vmatpush1.msra.mxu0 0.0
          %1099 = vmatprep.subr.mxu0 0.0
          %1100 = vmatpush1.msra.mxu0 0.0
          %1101 = vmatprep.subr.mxu0 0.0
          %1102 = vmatpush1.msra.mxu0 0.0
          %1103 = vmatprep.mubr.f32.mxu0 0.0
          %v1104 = vand.u32 %v1033, 4294901760
          %v1105 = vsub.f32 %v1033, %v1104
          %v1106 = vand.u32 %v1105, 4294901760
          %v1107 = vsub.f32 %v1105, %v1106
          %v1108 = vand.u32 %v1107, 4294901760
          %1109 = vmatmul.mubr.f32.gmra.mrb[0].mxu0 %v1108
          %v1110 = vpop.f32.mrb[0].mxu0
          %v1111 = vadd.f32 0.0, %v1110
          %v1112 = vpop.f32.mrb[0].mxu0
          %1113 = vdwg.mxu0
          %1114 = vmatprep.subr.mxu0 0.0
          %v1115 = vand.u32 %v1028, 4294901760
          %v1116 = vsub.f32 %v1028, %v1115
          %v1117 = vand.u32 %v1116, 4294901760
          %v1118 = vsub.f32 %v1116, %v1117
          %v1119 = vand.u32 %v1118, 4294901760
          %1120 = vmatpush1.msra.mxu0 %v1119
          %1121 = vmatprep.subr.mxu0 0.0
          %v1122 = vand.u32 %v1029, 4294901760
          %v1123 = vsub.f32 %v1029, %v1122
          %v1124 = vand.u32 %v1123, 4294901760
          %v1125 = vsub.f32 %v1123, %v1124
          %v1126 = vand.u32 %v1125, 4294901760
          %1127 = vmatpush1.msra.mxu0 %v1126
          %1128 = vmatprep.subr.mxu0 0.0
          %v1129 = vand.u32 %v1030, 4294901760
          %v1130 = vsub.f32 %v1030, %v1129
          %v1131 = vand.u32 %v1130, 4294901760
          %v1132 = vsub.f32 %v1130, %v1131
          %v1133 = vand.u32 %v1132, 4294901760
          %1134 = vmatpush1.msra.mxu0 %v1133
          %1135 = vmatprep.subr.mxu0 0.0
          %v1136 = vand.u32 %v1031, 4294901760
          %v1137 = vsub.f32 %v1031, %v1136
          %v1138 = vand.u32 %v1137, 4294901760
          %v1139 = vsub.f32 %v1137, %v1138
          %v1140 = vand.u32 %v1139, 4294901760
          %1141 = vmatpush1.msra.mxu0 %v1140
          %1142 = vmatprep.subr.mxu0 0.0
          %1143 = vmatpush1.msra.mxu0 0.0
          %1144 = vmatprep.subr.mxu0 0.0
          %1145 = vmatpush1.msra.mxu0 0.0
          %1146 = vmatprep.subr.mxu0 0.0
          %1147 = vmatpush1.msra.mxu0 0.0
          %1148 = vmatprep.subr.mxu0 0.0
          %1149 = vmatpush1.msra.mxu0 0.0
          %1150 = vmatprep.subr.mxu0 0.0
          %1151 = vmatpush1.msra.mxu0 0.0
          %1152 = vmatprep.subr.mxu0 0.0
          %1153 = vmatpush1.msra.mxu0 0.0
          %1154 = vmatprep.subr.mxu0 0.0
          %1155 = vmatpush1.msra.mxu0 0.0
          %1156 = vmatprep.subr.mxu0 0.0
          %1157 = vmatpush1.msra.mxu0 0.0
          %1158 = vmatprep.subr.mxu0 0.0
          %1159 = vmatpush1.msra.mxu0 0.0
          %1160 = vmatprep.subr.mxu0 0.0
          %1161 = vmatpush1.msra.mxu0 0.0
          %1162 = vmatprep.subr.mxu0 0.0
          %1163 = vmatpush1.msra.mxu0 0.0
          %1164 = vmatprep.subr.mxu0 0.0
          %1165 = vmatpush1.msra.mxu0 0.0
          %1166 = vmatprep.subr.mxu0 0.0
          %1167 = vmatpush1.msra.mxu0 0.0
          %1168 = vmatprep.subr.mxu0 0.0
          %1169 = vmatpush1.msra.mxu0 0.0
          %1170 = vmatprep.subr.mxu0 0.0
          %1171 = vmatpush1.msra.mxu0 0.0
          %1172 = vmatprep.subr.mxu0 0.0
          %1173 = vmatpush1.msra.mxu0 0.0
          %1174 = vmatprep.subr.mxu0 0.0
          %1175 = vmatpush1.msra.mxu0 0.0
          %1176 = vmatprep.subr.mxu0 0.0
          %1177 = vmatpush1.msra.mxu0 0.0
          %1178 = vmatprep.subr.mxu0 0.0
          %1179 = vmatpush1.msra.mxu0 0.0
          %1180 = vmatprep.subr.mxu0 0.0
          %1181 = vmatpush1.msra.mxu0 0.0
          %1182 = vmatprep.subr.mxu0 0.0
          %1183 = vmatpush1.msra.mxu0 0.0
          %1184 = vmatprep.subr.mxu0 0.0
          %1185 = vmatpush1.msra.mxu0 0.0
          %1186 = vmatprep.subr.mxu0 0.0
          %1187 = vmatpush1.msra.mxu0 0.0
          %1188 = vmatprep.subr.mxu0 0.0
          %1189 = vmatpush1.msra.mxu0 0.0
          %1190 = vmatprep.subr.mxu0 0.0
          %1191 = vmatpush1.msra.mxu0 0.0
          %1192 = vmatprep.subr.mxu0 0.0
          %1193 = vmatpush1.msra.mxu0 0.0
          %1194 = vmatprep.subr.mxu0 0.0
          %1195 = vmatpush1.msra.mxu0 0.0
          %1196 = vmatprep.subr.mxu0 0.0
          %1197 = vmatpush1.msra.mxu0 0.0
          %1198 = vmatprep.mubr.f32.mxu0 0.0
          %v1199 = vand.u32 %v1033, 4294901760
          %1200 = vmatmul.mubr.f32.gmra.mrb[0].mxu0 %v1199
          %v1201 = vpop.f32.mrb[0].mxu0
          %v1202 = vadd.f32 %v1111, %v1201
          %v1203 = vpop.f32.mrb[0].mxu0
          %1204 = vdwg.mxu0
          %1205 = vmatprep.subr.mxu0 0.0
          %v1206 = vand.u32 %v1028, 4294901760
          %v1207 = vsub.f32 %v1028, %v1206
          %1208 = vmatpush1.msra.mxu0 %v1207
          %1209 = vmatprep.subr.mxu0 0.0
          %v1210 = vand.u32 %v1029, 4294901760
          %v1211 = vsub.f32 %v1029, %v1210
          %1212 = vmatpush1.msra.mxu0 %v1211
          %1213 = vmatprep.subr.mxu0 0.0
          %v1214 = vand.u32 %v1030, 4294901760
          %v1215 = vsub.f32 %v1030, %v1214
          %1216 = vmatpush1.msra.mxu0 %v1215
          %1217 = vmatprep.subr.mxu0 0.0
          %v1218 = vand.u32 %v1031, 4294901760
          %v1219 = vsub.f32 %v1031, %v1218
          %1220 = vmatpush1.msra.mxu0 %v1219
          %1221 = vmatprep.subr.mxu0 0.0
          %1222 = vmatpush1.msra.mxu0 0.0
          %1223 = vmatprep.subr.mxu0 0.0
          %1224 = vmatpush1.msra.mxu0 0.0
          %1225 = vmatprep.subr.mxu0 0.0
          %1226 = vmatpush1.msra.mxu0 0.0
          %1227 = vmatprep.subr.mxu0 0.0
          %1228 = vmatpush1.msra.mxu0 0.0
          %1229 = vmatprep.subr.mxu0 0.0
          %1230 = vmatpush1.msra.mxu0 0.0
          %1231 = vmatprep.subr.mxu0 0.0
          %1232 = vmatpush1.msra.mxu0 0.0
          %1233 = vmatprep.subr.mxu0 0.0
          %1234 = vmatpush1.msra.mxu0 0.0
          %1235 = vmatprep.subr.mxu0 0.0
          %1236 = vmatpush1.msra.mxu0 0.0
          %1237 = vmatprep.subr.mxu0 0.0
          %1238 = vmatpush1.msra.mxu0 0.0
          %1239 = vmatprep.subr.mxu0 0.0
          %1240 = vmatpush1.msra.mxu0 0.0
          %1241 = vmatprep.subr.mxu0 0.0
          %1242 = vmatpush1.msra.mxu0 0.0
          %1243 = vmatprep.subr.mxu0 0.0
          %1244 = vmatpush1.msra.mxu0 0.0
          %1245 = vmatprep.subr.mxu0 0.0
          %1246 = vmatpush1.msra.mxu0 0.0
          %1247 = vmatprep.subr.mxu0 0.0
          %1248 = vmatpush1.msra.mxu0 0.0
          %1249 = vmatprep.subr.mxu0 0.0
          %1250 = vmatpush1.msra.mxu0 0.0
          %1251 = vmatprep.subr.mxu0 0.0
          %1252 = vmatpush1.msra.mxu0 0.0
          %1253 = vmatprep.subr.mxu0 0.0
          %1254 = vmatpush1.msra.mxu0 0.0
          %1255 = vmatprep.subr.mxu0 0.0
          %1256 = vmatpush1.msra.mxu0 0.0
          %1257 = vmatprep.subr.mxu0 0.0
          %1258 = vmatpush1.msra.mxu0 0.0
          %1259 = vmatprep.subr.mxu0 0.0
          %1260 = vmatpush1.msra.mxu0 0.0
          %1261 = vmatprep.subr.mxu0 0.0
          %1262 = vmatpush1.msra.mxu0 0.0
          %1263 = vmatprep.subr.mxu0 0.0
          %1264 = vmatpush1.msra.mxu0 0.0
          %1265 = vmatprep.subr.mxu0 0.0
          %1266 = vmatpush1.msra.mxu0 0.0
          %1267 = vmatprep.subr.mxu0 0.0
          %1268 = vmatpush1.msra.mxu0 0.0
          %1269 = vmatprep.subr.mxu0 0.0
          %1270 = vmatpush1.msra.mxu0 0.0
          %1271 = vmatprep.subr.mxu0 0.0
          %1272 = vmatpush1.msra.mxu0 0.0
          %1273 = vmatprep.subr.mxu0 0.0
          %1274 = vmatpush1.msra.mxu0 0.0
          %1275 = vmatprep.subr.mxu0 0.0
          %1276 = vmatpush1.msra.mxu0 0.0
          %1277 = vmatprep.mubr.f32.mxu0 0.0
          %v1278 = vand.u32 %v1033, 4294901760
          %v1279 = vsub.f32 %v1033, %v1278
          %1280 = vmatmul.mubr.f32.gmra.mrb[0].mxu0 %v1279
          %v1281 = vpop.f32.mrb[0].mxu0
          %v1282 = vadd.f32 %v1202, %v1281
          %v1283 = vpop.f32.mrb[0].mxu0
          %1284 = vdwg.mxu0
          %1285 = vmatprep.subr.mxu0 0.0
          %v1286 = vand.u32 %v1028, 4294901760
          %1287 = vmatpush1.msra.mxu0 %v1286
          %1288 = vmatprep.subr.mxu0 0.0
          %v1289 = vand.u32 %v1029, 4294901760
          %1290 = vmatpush1.msra.mxu0 %v1289
          %1291 = vmatprep.subr.mxu0 0.0
          %v1292 = vand.u32 %v1030, 4294901760
          %1293 = vmatpush1.msra.mxu0 %v1292
          %1294 = vmatprep.subr.mxu0 0.0
          %v1295 = vand.u32 %v1031, 4294901760
          %1296 = vmatpush1.msra.mxu0 %v1295
          %1297 = vmatprep.subr.mxu0 0.0
          %1298 = vmatpush1.msra.mxu0 0.0
          %1299 = vmatprep.subr.mxu0 0.0
          %1300 = vmatpush1.msra.mxu0 0.0
          %1301 = vmatprep.subr.mxu0 0.0
          %1302 = vmatpush1.msra.mxu0 0.0
          %1303 = vmatprep.subr.mxu0 0.0
          %1304 = vmatpush1.msra.mxu0 0.0
          %1305 = vmatprep.subr.mxu0 0.0
          %1306 = vmatpush1.msra.mxu0 0.0
          %1307 = vmatprep.subr.mxu0 0.0
          %1308 = vmatpush1.msra.mxu0 0.0
          %1309 = vmatprep.subr.mxu0 0.0
          %1310 = vmatpush1.msra.mxu0 0.0
          %1311 = vmatprep.subr.mxu0 0.0
          %1312 = vmatpush1.msra.mxu0 0.0
          %1313 = vmatprep.subr.mxu0 0.0
          %1314 = vmatpush1.msra.mxu0 0.0
          %1315 = vmatprep.subr.mxu0 0.0
          %1316 = vmatpush1.msra.mxu0 0.0
          %1317 = vmatprep.subr.mxu0 0.0
          %1318 = vmatpush1.msra.mxu0 0.0
          %1319 = vmatprep.subr.mxu0 0.0
          %1320 = vmatpush1.msra.mxu0 0.0
          %1321 = vmatprep.subr.mxu0 0.0
          %1322 = vmatpush1.msra.mxu0 0.0
          %1323 = vmatprep.subr.mxu0 0.0
          %1324 = vmatpush1.msra.mxu0 0.0
          %1325 = vmatprep.subr.mxu0 0.0
          %1326 = vmatpush1.msra.mxu0 0.0
          %1327 = vmatprep.subr.mxu0 0.0
          %1328 = vmatpush1.msra.mxu0 0.0
          %1329 = vmatprep.subr.mxu0 0.0
          %1330 = vmatpush1.msra.mxu0 0.0
          %1331 = vmatprep.subr.mxu0 0.0
          %1332 = vmatpush1.msra.mxu0 0.0
          %1333 = vmatprep.subr.mxu0 0.0
          %1334 = vmatpush1.msra.mxu0 0.0
          %1335 = vmatprep.subr.mxu0 0.0
          %1336 = vmatpush1.msra.mxu0 0.0
          %1337 = vmatprep.subr.mxu0 0.0
          %1338 = vmatpush1.msra.mxu0 0.0
          %1339 = vmatprep.subr.mxu0 0.0
          %1340 = vmatpush1.msra.mxu0 0.0
          %1341 = vmatprep.subr.mxu0 0.0
          %1342 = vmatpush1.msra.mxu0 0.0
          %1343 = vmatprep.subr.mxu0 0.0
          %1344 = vmatpush1.msra.mxu0 0.0
          %1345 = vmatprep.subr.mxu0 0.0
          %1346 = vmatpush1.msra.mxu0 0.0
          %1347 = vmatprep.subr.mxu0 0.0
          %1348 = vmatpush1.msra.mxu0 0.0
          %1349 = vmatprep.subr.mxu0 0.0
          %1350 = vmatpush1.msra.mxu0 0.0
          %1351 = vmatprep.subr.mxu0 0.0
          %1352 = vmatpush1.msra.mxu0 0.0
          %1353 = vmatprep.mubr.f32.mxu0 0.0
          %v1354 = vand.u32 %v1033, 4294901760
          %v1355 = vsub.f32 %v1033, %v1354
          %v1356 = vand.u32 %v1355, 4294901760
          %1357 = vmatmul.mubr.f32.gmra.mrb[0].mxu0 %v1356
          %v1358 = vpop.f32.mrb[0].mxu0
          %v1359 = vadd.f32 %v1282, %v1358
          %v1360 = vpop.f32.mrb[0].mxu0
          %1361 = vdwg.mxu0
          %1362 = vmatprep.subr.mxu0 0.0
          %v1363 = vand.u32 %v1028, 4294901760
          %v1364 = vsub.f32 %v1028, %v1363
          %v1365 = vand.u32 %v1364, 4294901760
          %1366 = vmatpush1.msra.mxu0 %v1365
          %1367 = vmatprep.subr.mxu0 0.0
          %v1368 = vand.u32 %v1029, 4294901760
          %v1369 = vsub.f32 %v1029, %v1368
          %v1370 = vand.u32 %v1369, 4294901760
          %1371 = vmatpush1.msra.mxu0 %v1370
          %1372 = vmatprep.subr.mxu0 0.0
          %v1373 = vand.u32 %v1030, 4294901760
          %v1374 = vsub.f32 %v1030, %v1373
          %v1375 = vand.u32 %v1374, 4294901760
          %1376 = vmatpush1.msra.mxu0 %v1375
          %1377 = vmatprep.subr.mxu0 0.0
          %v1378 = vand.u32 %v1031, 4294901760
          %v1379 = vsub.f32 %v1031, %v1378
          %v1380 = vand.u32 %v1379, 4294901760
          %1381 = vmatpush1.msra.mxu0 %v1380
          %1382 = vmatprep.subr.mxu0 0.0
          %1383 = vmatpush1.msra.mxu0 0.0
          %1384 = vmatprep.subr.mxu0 0.0
          %1385 = vmatpush1.msra.mxu0 0.0
          %1386 = vmatprep.subr.mxu0 0.0
          %1387 = vmatpush1.msra.mxu0 0.0
          %1388 = vmatprep.subr.mxu0 0.0
          %1389 = vmatpush1.msra.mxu0 0.0
          %1390 = vmatprep.subr.mxu0 0.0
          %1391 = vmatpush1.msra.mxu0 0.0
          %1392 = vmatprep.subr.mxu0 0.0
          %1393 = vmatpush1.msra.mxu0 0.0
          %1394 = vmatprep.subr.mxu0 0.0
          %1395 = vmatpush1.msra.mxu0 0.0
          %1396 = vmatprep.subr.mxu0 0.0
          %1397 = vmatpush1.msra.mxu0 0.0
          %1398 = vmatprep.subr.mxu0 0.0
          %1399 = vmatpush1.msra.mxu0 0.0
          %1400 = vmatprep.subr.mxu0 0.0
          %1401 = vmatpush1.msra.mxu0 0.0
          %1402 = vmatprep.subr.mxu0 0.0
          %1403 = vmatpush1.msra.mxu0 0.0
          %1404 = vmatprep.subr.mxu0 0.0
          %1405 = vmatpush1.msra.mxu0 0.0
          %1406 = vmatprep.subr.mxu0 0.0
          %1407 = vmatpush1.msra.mxu0 0.0
          %1408 = vmatprep.subr.mxu0 0.0
          %1409 = vmatpush1.msra.mxu0 0.0
          %1410 = vmatprep.subr.mxu0 0.0
          %1411 = vmatpush1.msra.mxu0 0.0
          %1412 = vmatprep.subr.mxu0 0.0
          %1413 = vmatpush1.msra.mxu0 0.0
          %1414 = vmatprep.subr.mxu0 0.0
          %1415 = vmatpush1.msra.mxu0 0.0
          %1416 = vmatprep.subr.mxu0 0.0
          %1417 = vmatpush1.msra.mxu0 0.0
          %1418 = vmatprep.subr.mxu0 0.0
          %1419 = vmatpush1.msra.mxu0 0.0
          %1420 = vmatprep.subr.mxu0 0.0
          %1421 = vmatpush1.msra.mxu0 0.0
          %1422 = vmatprep.subr.mxu0 0.0
          %1423 = vmatpush1.msra.mxu0 0.0
          %1424 = vmatprep.subr.mxu0 0.0
          %1425 = vmatpush1.msra.mxu0 0.0
          %1426 = vmatprep.subr.mxu0 0.0
          %1427 = vmatpush1.msra.mxu0 0.0
          %1428 = vmatprep.subr.mxu0 0.0
          %1429 = vmatpush1.msra.mxu0 0.0
          %1430 = vmatprep.subr.mxu0 0.0
          %1431 = vmatpush1.msra.mxu0 0.0
          %1432 = vmatprep.subr.mxu0 0.0
          %1433 = vmatpush1.msra.mxu0 0.0
          %1434 = vmatprep.subr.mxu0 0.0
          %1435 = vmatpush1.msra.mxu0 0.0
          %1436 = vmatprep.subr.mxu0 0.0
          %1437 = vmatpush1.msra.mxu0 0.0
          %1438 = vmatprep.mubr.f32.mxu0 0.0
          %v1439 = vand.u32 %v1033, 4294901760
          %1440 = vmatmul.mubr.f32.gmra.mrb[0].mxu0 %v1439
          %v1441 = vpop.f32.mrb[0].mxu0
          %v1442 = vadd.f32 %v1359, %v1441
          %v1443 = vpop.f32.mrb[0].mxu0
          %1444 = vdwg.mxu0
          %1445 = vmatprep.subr.mxu0 0.0
          %v1446 = vand.u32 %v1028, 4294901760
          %1447 = vmatpush1.msra.mxu0 %v1446
          %1448 = vmatprep.subr.mxu0 0.0
          %v1449 = vand.u32 %v1029, 4294901760
          %1450 = vmatpush1.msra.mxu0 %v1449
          %1451 = vmatprep.subr.mxu0 0.0
          %v1452 = vand.u32 %v1030, 4294901760
          %1453 = vmatpush1.msra.mxu0 %v1452
          %1454 = vmatprep.subr.mxu0 0.0
          %v1455 = vand.u32 %v1031, 4294901760
          %1456 = vmatpush1.msra.mxu0 %v1455
          %1457 = vmatprep.subr.mxu0 0.0
          %1458 = vmatpush1.msra.mxu0 0.0
          %1459 = vmatprep.subr.mxu0 0.0
          %1460 = vmatpush1.msra.mxu0 0.0
          %1461 = vmatprep.subr.mxu0 0.0
          %1462 = vmatpush1.msra.mxu0 0.0
          %1463 = vmatprep.subr.mxu0 0.0
          %1464 = vmatpush1.msra.mxu0 0.0
          %1465 = vmatprep.subr.mxu0 0.0
          %1466 = vmatpush1.msra.mxu0 0.0
          %1467 = vmatprep.subr.mxu0 0.0
          %1468 = vmatpush1.msra.mxu0 0.0
          %1469 = vmatprep.subr.mxu0 0.0
          %1470 = vmatpush1.msra.mxu0 0.0
          %1471 = vmatprep.subr.mxu0 0.0
          %1472 = vmatpush1.msra.mxu0 0.0
          %1473 = vmatprep.subr.mxu0 0.0
          %1474 = vmatpush1.msra.mxu0 0.0
          %1475 = vmatprep.subr.mxu0 0.0
          %1476 = vmatpush1.msra.mxu0 0.0
          %1477 = vmatprep.subr.mxu0 0.0
          %1478 = vmatpush1.msra.mxu0 0.0
          %1479 = vmatprep.subr.mxu0 0.0
          %1480 = vmatpush1.msra.mxu0 0.0
          %1481 = vmatprep.subr.mxu0 0.0
          %1482 = vmatpush1.msra.mxu0 0.0
          %1483 = vmatprep.subr.mxu0 0.0
          %1484 = vmatpush1.msra.mxu0 0.0
          %1485 = vmatprep.subr.mxu0 0.0
          %1486 = vmatpush1.msra.mxu0 0.0
          %1487 = vmatprep.subr.mxu0 0.0
          %1488 = vmatpush1.msra.mxu0 0.0
          %1489 = vmatprep.subr.mxu0 0.0
          %1490 = vmatpush1.msra.mxu0 0.0
          %1491 = vmatprep.subr.mxu0 0.0
          %1492 = vmatpush1.msra.mxu0 0.0
          %1493 = vmatprep.subr.mxu0 0.0
          %1494 = vmatpush1.msra.mxu0 0.0
          %1495 = vmatprep.subr.mxu0 0.0
          %1496 = vmatpush1.msra.mxu0 0.0
          %1497 = vmatprep.subr.mxu0 0.0
          %1498 = vmatpush1.msra.mxu0 0.0
          %1499 = vmatprep.subr.mxu0 0.0
          %1500 = vmatpush1.msra.mxu0 0.0
          %1501 = vmatprep.subr.mxu0 0.0
          %1502 = vmatpush1.msra.mxu0 0.0
          %1503 = vmatprep.subr.mxu0 0.0
          %1504 = vmatpush1.msra.mxu0 0.0
          %1505 = vmatprep.subr.mxu0 0.0
          %1506 = vmatpush1.msra.mxu0 0.0
          %1507 = vmatprep.subr.mxu0 0.0
          %1508 = vmatpush1.msra.mxu0 0.0
          %1509 = vmatprep.subr.mxu0 0.0
          %1510 = vmatpush1.msra.mxu0 0.0
          %1511 = vmatprep.subr.mxu0 0.0
          %1512 = vmatpush1.msra.mxu0 0.0
          %1513 = vmatprep.mubr.f32.mxu0 0.0
          %v1514 = vand.u32 %v1033, 4294901760
          %1515 = vmatmul.mubr.f32.gmra.mrb[0].mxu0 %v1514
          %v1516 = vpop.f32.mrb[0].mxu0
          %v1517 = vadd.f32 %v1442, %v1516
          %v1518 = vpop.f32.mrb[0].mxu0
          %1519 = vdwg.mxu0
          %1521 = vrot.lane.b32.xlu0 %v1022, 96
          %v1522 = vpop.permute.xlu0 %1521
          %v1523 = vsel %vm809, %v1522, 0
          %1525 = vmatprep.subr.mxu0 0.0
          %v1526 = vand.u32 %v1024, 4294901760
          %1527 = vmatpush1.msra.mxu0 %v1526
          %1528 = vmatprep.subr.mxu0 0.0
          %v1529 = vand.u32 %v1025, 4294901760
          %1530 = vmatpush1.msra.mxu0 %v1529
          %1531 = vmatprep.subr.mxu0 0.0
          %v1532 = vand.u32 %v1026, 4294901760
          %1533 = vmatpush1.msra.mxu0 %v1532
          %1534 = vmatprep.subr.mxu0 0.0
          %v1535 = vand.u32 %v1027, 4294901760
          %1536 = vmatpush1.msra.mxu0 %v1535
          %1537 = vmatprep.subr.mxu0 0.0
          %1538 = vmatpush1.msra.mxu0 0.0
          %1539 = vmatprep.subr.mxu0 0.0
          %1540 = vmatpush1.msra.mxu0 0.0
          %1541 = vmatprep.subr.mxu0 0.0
          %1542 = vmatpush1.msra.mxu0 0.0
          %1543 = vmatprep.subr.mxu0 0.0
          %1544 = vmatpush1.msra.mxu0 0.0
          %1545 = vmatprep.subr.mxu0 0.0
          %1546 = vmatpush1.msra.mxu0 0.0
          %1547 = vmatprep.subr.mxu0 0.0
          %1548 = vmatpush1.msra.mxu0 0.0
          %1549 = vmatprep.subr.mxu0 0.0
          %1550 = vmatpush1.msra.mxu0 0.0
          %1551 = vmatprep.subr.mxu0 0.0
          %1552 = vmatpush1.msra.mxu0 0.0
          %1553 = vmatprep.subr.mxu0 0.0
          %1554 = vmatpush1.msra.mxu0 0.0
          %1555 = vmatprep.subr.mxu0 0.0
          %1556 = vmatpush1.msra.mxu0 0.0
          %1557 = vmatprep.subr.mxu0 0.0
          %1558 = vmatpush1.msra.mxu0 0.0
          %1559 = vmatprep.subr.mxu0 0.0
          %1560 = vmatpush1.msra.mxu0 0.0
          %1561 = vmatprep.subr.mxu0 0.0
          %1562 = vmatpush1.msra.mxu0 0.0
          %1563 = vmatprep.subr.mxu0 0.0
          %1564 = vmatpush1.msra.mxu0 0.0
          %1565 = vmatprep.subr.mxu0 0.0
          %1566 = vmatpush1.msra.mxu0 0.0
          %1567 = vmatprep.subr.mxu0 0.0
          %1568 = vmatpush1.msra.mxu0 0.0
          %1569 = vmatprep.subr.mxu0 0.0
          %1570 = vmatpush1.msra.mxu0 0.0
          %1571 = vmatprep.subr.mxu0 0.0
          %1572 = vmatpush1.msra.mxu0 0.0
          %1573 = vmatprep.subr.mxu0 0.0
          %1574 = vmatpush1.msra.mxu0 0.0
          %1575 = vmatprep.subr.mxu0 0.0
          %1576 = vmatpush1.msra.mxu0 0.0
          %1577 = vmatprep.subr.mxu0 0.0
          %1578 = vmatpush1.msra.mxu0 0.0
          %1579 = vmatprep.subr.mxu0 0.0
          %1580 = vmatpush1.msra.mxu0 0.0
          %1581 = vmatprep.subr.mxu0 0.0
          %1582 = vmatpush1.msra.mxu0 0.0
          %1583 = vmatprep.subr.mxu0 0.0
          %1584 = vmatpush1.msra.mxu0 0.0
          %1585 = vmatprep.subr.mxu0 0.0
          %1586 = vmatpush1.msra.mxu0 0.0
          %1587 = vmatprep.subr.mxu0 0.0
          %1588 = vmatpush1.msra.mxu0 0.0
          %1589 = vmatprep.subr.mxu0 0.0
          %1590 = vmatpush1.msra.mxu0 0.0
          %1591 = vmatprep.subr.mxu0 0.0
          %1592 = vmatpush1.msra.mxu0 0.0
          %1593 = vmatprep.mubr.f32.mxu0 0.0
          %v1594 = vand.u32 %v1523, 4294901760
          %v1595 = vsub.f32 %v1523, %v1594
          %v1596 = vand.u32 %v1595, 4294901760
          %v1597 = vsub.f32 %v1595, %v1596
          %v1598 = vand.u32 %v1597, 4294901760
          %1599 = vmatmul.mubr.f32.gmra.mrb[0].mxu0 %v1598
          %v1600 = vpop.f32.mrb[0].mxu0
          %v1601 = vadd.f32 %v1517, %v1600
          %v1602 = vpop.f32.mrb[0].mxu0
          %1603 = vdwg.mxu0
          %1604 = vmatprep.subr.mxu0 0.0
          %v1605 = vand.u32 %v1024, 4294901760
          %v1606 = vsub.f32 %v1024, %v1605
          %v1607 = vand.u32 %v1606, 4294901760
          %v1608 = vsub.f32 %v1606, %v1607
          %v1609 = vand.u32 %v1608, 4294901760
          %1610 = vmatpush1.msra.mxu0 %v1609
          %1611 = vmatprep.subr.mxu0 0.0
          %v1612 = vand.u32 %v1025, 4294901760
          %v1613 = vsub.f32 %v1025, %v1612
          %v1614 = vand.u32 %v1613, 4294901760
          %v1615 = vsub.f32 %v1613, %v1614
          %v1616 = vand.u32 %v1615, 4294901760
          %1617 = vmatpush1.msra.mxu0 %v1616
          %1618 = vmatprep.subr.mxu0 0.0
          %v1619 = vand.u32 %v1026, 4294901760
          %v1620 = vsub.f32 %v1026, %v1619
          %v1621 = vand.u32 %v1620, 4294901760
          %v1622 = vsub.f32 %v1620, %v1621
          %v1623 = vand.u32 %v1622, 4294901760
          %1624 = vmatpush1.msra.mxu0 %v1623
          %1625 = vmatprep.subr.mxu0 0.0
          %v1626 = vand.u32 %v1027, 4294901760
          %v1627 = vsub.f32 %v1027, %v1626
          %v1628 = vand.u32 %v1627, 4294901760
          %v1629 = vsub.f32 %v1627, %v1628
          %v1630 = vand.u32 %v1629, 4294901760
          %1631 = vmatpush1.msra.mxu0 %v1630
          %1632 = vmatprep.subr.mxu0 0.0
          %1633 = vmatpush1.msra.mxu0 0.0
          %1634 = vmatprep.subr.mxu0 0.0
          %1635 = vmatpush1.msra.mxu0 0.0
          %1636 = vmatprep.subr.mxu0 0.0
          %1637 = vmatpush1.msra.mxu0 0.0
          %1638 = vmatprep.subr.mxu0 0.0
          %1639 = vmatpush1.msra.mxu0 0.0
          %1640 = vmatprep.subr.mxu0 0.0
          %1641 = vmatpush1.msra.mxu0 0.0
          %1642 = vmatprep.subr.mxu0 0.0
          %1643 = vmatpush1.msra.mxu0 0.0
          %1644 = vmatprep.subr.mxu0 0.0
          %1645 = vmatpush1.msra.mxu0 0.0
          %1646 = vmatprep.subr.mxu0 0.0
          %1647 = vmatpush1.msra.mxu0 0.0
          %1648 = vmatprep.subr.mxu0 0.0
          %1649 = vmatpush1.msra.mxu0 0.0
          %1650 = vmatprep.subr.mxu0 0.0
          %1651 = vmatpush1.msra.mxu0 0.0
          %1652 = vmatprep.subr.mxu0 0.0
          %1653 = vmatpush1.msra.mxu0 0.0
          %1654 = vmatprep.subr.mxu0 0.0
          %1655 = vmatpush1.msra.mxu0 0.0
          %1656 = vmatprep.subr.mxu0 0.0
          %1657 = vmatpush1.msra.mxu0 0.0
          %1658 = vmatprep.subr.mxu0 0.0
          %1659 = vmatpush1.msra.mxu0 0.0
          %1660 = vmatprep.subr.mxu0 0.0
          %1661 = vmatpush1.msra.mxu0 0.0
          %1662 = vmatprep.subr.mxu0 0.0
          %1663 = vmatpush1.msra.mxu0 0.0
          %1664 = vmatprep.subr.mxu0 0.0
          %1665 = vmatpush1.msra.mxu0 0.0
          %1666 = vmatprep.subr.mxu0 0.0
          %1667 = vmatpush1.msra.mxu0 0.0
          %1668 = vmatprep.subr.mxu0 0.0
          %1669 = vmatpush1.msra.mxu0 0.0
          %1670 = vmatprep.subr.mxu0 0.0
          %1671 = vmatpush1.msra.mxu0 0.0
          %1672 = vmatprep.subr.mxu0 0.0
          %1673 = vmatpush1.msra.mxu0 0.0
          %1674 = vmatprep.subr.mxu0 0.0
          %1675 = vmatpush1.msra.mxu0 0.0
          %1676 = vmatprep.subr.mxu0 0.0
          %1677 = vmatpush1.msra.mxu0 0.0
          %1678 = vmatprep.subr.mxu0 0.0
          %1679 = vmatpush1.msra.mxu0 0.0
          %1680 = vmatprep.subr.mxu0 0.0
          %1681 = vmatpush1.msra.mxu0 0.0
          %1682 = vmatprep.subr.mxu0 0.0
          %1683 = vmatpush1.msra.mxu0 0.0
          %1684 = vmatprep.subr.mxu0 0.0
          %1685 = vmatpush1.msra.mxu0 0.0
          %1686 = vmatprep.subr.mxu0 0.0
          %1687 = vmatpush1.msra.mxu0 0.0
          %1688 = vmatprep.mubr.f32.mxu0 0.0
          %v1689 = vand.u32 %v1523, 4294901760
          %1690 = vmatmul.mubr.f32.gmra.mrb[0].mxu0 %v1689
          %v1691 = vpop.f32.mrb[0].mxu0
          %v1692 = vadd.f32 %v1601, %v1691
          %v1693 = vpop.f32.mrb[0].mxu0
          %1694 = vdwg.mxu0
          %1695 = vmatprep.subr.mxu0 0.0
          %v1696 = vand.u32 %v1024, 4294901760
          %v1697 = vsub.f32 %v1024, %v1696
          %1698 = vmatpush1.msra.mxu0 %v1697
          %1699 = vmatprep.subr.mxu0 0.0
          %v1700 = vand.u32 %v1025, 4294901760
          %v1701 = vsub.f32 %v1025, %v1700
          %1702 = vmatpush1.msra.mxu0 %v1701
          %1703 = vmatprep.subr.mxu0 0.0
          %v1704 = vand.u32 %v1026, 4294901760
          %v1705 = vsub.f32 %v1026, %v1704
          %1706 = vmatpush1.msra.mxu0 %v1705
          %1707 = vmatprep.subr.mxu0 0.0
          %v1708 = vand.u32 %v1027, 4294901760
          %v1709 = vsub.f32 %v1027, %v1708
          %1710 = vmatpush1.msra.mxu0 %v1709
          %1711 = vmatprep.subr.mxu0 0.0
          %1712 = vmatpush1.msra.mxu0 0.0
          %1713 = vmatprep.subr.mxu0 0.0
          %1714 = vmatpush1.msra.mxu0 0.0
          %1715 = vmatprep.subr.mxu0 0.0
          %1716 = vmatpush1.msra.mxu0 0.0
          %1717 = vmatprep.subr.mxu0 0.0
          %1718 = vmatpush1.msra.mxu0 0.0
          %1719 = vmatprep.subr.mxu0 0.0
          %1720 = vmatpush1.msra.mxu0 0.0
          %1721 = vmatprep.subr.mxu0 0.0
          %1722 = vmatpush1.msra.mxu0 0.0
          %1723 = vmatprep.subr.mxu0 0.0
          %1724 = vmatpush1.msra.mxu0 0.0
          %1725 = vmatprep.subr.mxu0 0.0
          %1726 = vmatpush1.msra.mxu0 0.0
          %1727 = vmatprep.subr.mxu0 0.0
          %1728 = vmatpush1.msra.mxu0 0.0
          %1729 = vmatprep.subr.mxu0 0.0
          %1730 = vmatpush1.msra.mxu0 0.0
          %1731 = vmatprep.subr.mxu0 0.0
          %1732 = vmatpush1.msra.mxu0 0.0
          %1733 = vmatprep.subr.mxu0 0.0
          %1734 = vmatpush1.msra.mxu0 0.0
          %1735 = vmatprep.subr.mxu0 0.0
          %1736 = vmatpush1.msra.mxu0 0.0
          %1737 = vmatprep.subr.mxu0 0.0
          %1738 = vmatpush1.msra.mxu0 0.0
          %1739 = vmatprep.subr.mxu0 0.0
          %1740 = vmatpush1.msra.mxu0 0.0
          %1741 = vmatprep.subr.mxu0 0.0
          %1742 = vmatpush1.msra.mxu0 0.0
          %1743 = vmatprep.subr.mxu0 0.0
          %1744 = vmatpush1.msra.mxu0 0.0
          %1745 = vmatprep.subr.mxu0 0.0
          %1746 = vmatpush1.msra.mxu0 0.0
          %1747 = vmatprep.subr.mxu0 0.0
          %1748 = vmatpush1.msra.mxu0 0.0
          %1749 = vmatprep.subr.mxu0 0.0
          %1750 = vmatpush1.msra.mxu0 0.0
          %1751 = vmatprep.subr.mxu0 0.0
          %1752 = vmatpush1.msra.mxu0 0.0
          %1753 = vmatprep.subr.mxu0 0.0
          %1754 = vmatpush1.msra.mxu0 0.0
          %1755 = vmatprep.subr.mxu0 0.0
          %1756 = vmatpush1.msra.mxu0 0.0
          %1757 = vmatprep.subr.mxu0 0.0
          %1758 = vmatpush1.msra.mxu0 0.0
          %1759 = vmatprep.subr.mxu0 0.0
          %1760 = vmatpush1.msra.mxu0 0.0
          %1761 = vmatprep.subr.mxu0 0.0
          %1762 = vmatpush1.msra.mxu0 0.0
          %1763 = vmatprep.subr.mxu0 0.0
          %1764 = vmatpush1.msra.mxu0 0.0
          %1765 = vmatprep.subr.mxu0 0.0
          %1766 = vmatpush1.msra.mxu0 0.0
          %1767 = vmatprep.mubr.f32.mxu0 0.0
          %v1768 = vand.u32 %v1523, 4294901760
          %v1769 = vsub.f32 %v1523, %v1768
          %1770 = vmatmul.mubr.f32.gmra.mrb[0].mxu0 %v1769
          %v1771 = vpop.f32.mrb[0].mxu0
          %v1772 = vadd.f32 %v1692, %v1771
          %v1773 = vpop.f32.mrb[0].mxu0
          %1774 = vdwg.mxu0
          %1775 = vmatprep.subr.mxu0 0.0
          %v1776 = vand.u32 %v1024, 4294901760
          %1777 = vmatpush1.msra.mxu0 %v1776
          %1778 = vmatprep.subr.mxu0 0.0
          %v1779 = vand.u32 %v1025, 4294901760
          %1780 = vmatpush1.msra.mxu0 %v1779
          %1781 = vmatprep.subr.mxu0 0.0
          %v1782 = vand.u32 %v1026, 4294901760
          %1783 = vmatpush1.msra.mxu0 %v1782
          %1784 = vmatprep.subr.mxu0 0.0
          %v1785 = vand.u32 %v1027, 4294901760
          %1786 = vmatpush1.msra.mxu0 %v1785
          %1787 = vmatprep.subr.mxu0 0.0
          %1788 = vmatpush1.msra.mxu0 0.0
          %1789 = vmatprep.subr.mxu0 0.0
          %1790 = vmatpush1.msra.mxu0 0.0
          %1791 = vmatprep.subr.mxu0 0.0
          %1792 = vmatpush1.msra.mxu0 0.0
          %1793 = vmatprep.subr.mxu0 0.0
          %1794 = vmatpush1.msra.mxu0 0.0
          %1795 = vmatprep.subr.mxu0 0.0
          %1796 = vmatpush1.msra.mxu0 0.0
          %1797 = vmatprep.subr.mxu0 0.0
          %1798 = vmatpush1.msra.mxu0 0.0
          %1799 = vmatprep.subr.mxu0 0.0
          %1800 = vmatpush1.msra.mxu0 0.0
          %1801 = vmatprep.subr.mxu0 0.0
          %1802 = vmatpush1.msra.mxu0 0.0
          %1803 = vmatprep.subr.mxu0 0.0
          %1804 = vmatpush1.msra.mxu0 0.0
          %1805 = vmatprep.subr.mxu0 0.0
          %1806 = vmatpush1.msra.mxu0 0.0
          %1807 = vmatprep.subr.mxu0 0.0
          %1808 = vmatpush1.msra.mxu0 0.0
          %1809 = vmatprep.subr.mxu0 0.0
          %1810 = vmatpush1.msra.mxu0 0.0
          %1811 = vmatprep.subr.mxu0 0.0
          %1812 = vmatpush1.msra.mxu0 0.0
          %1813 = vmatprep.subr.mxu0 0.0
          %1814 = vmatpush1.msra.mxu0 0.0
          %1815 = vmatprep.subr.mxu0 0.0
          %1816 = vmatpush1.msra.mxu0 0.0
          %1817 = vmatprep.subr.mxu0 0.0
          %1818 = vmatpush1.msra.mxu0 0.0
          %1819 = vmatprep.subr.mxu0 0.0
          %1820 = vmatpush1.msra.mxu0 0.0
          %1821 = vmatprep.subr.mxu0 0.0
          %1822 = vmatpush1.msra.mxu0 0.0
          %1823 = vmatprep.subr.mxu0 0.0
          %1824 = vmatpush1.msra.mxu0 0.0
          %1825 = vmatprep.subr.mxu0 0.0
          %1826 = vmatpush1.msra.mxu0 0.0
          %1827 = vmatprep.subr.mxu0 0.0
          %1828 = vmatpush1.msra.mxu0 0.0
          %1829 = vmatprep.subr.mxu0 0.0
          %1830 = vmatpush1.msra.mxu0 0.0
          %1831 = vmatprep.subr.mxu0 0.0
          %1832 = vmatpush1.msra.mxu0 0.0
          %1833 = vmatprep.subr.mxu0 0.0
          %1834 = vmatpush1.msra.mxu0 0.0
          %1835 = vmatprep.subr.mxu0 0.0
          %1836 = vmatpush1.msra.mxu0 0.0
          %1837 = vmatprep.subr.mxu0 0.0
          %1838 = vmatpush1.msra.mxu0 0.0
          %1839 = vmatprep.subr.mxu0 0.0
          %1840 = vmatpush1.msra.mxu0 0.0
          %1841 = vmatprep.subr.mxu0 0.0
          %1842 = vmatpush1.msra.mxu0 0.0
          %1843 = vmatprep.mubr.f32.mxu0 0.0
          %v1844 = vand.u32 %v1523, 4294901760
          %v1845 = vsub.f32 %v1523, %v1844
          %v1846 = vand.u32 %v1845, 4294901760
          %1847 = vmatmul.mubr.f32.gmra.mrb[0].mxu0 %v1846
          %v1848 = vpop.f32.mrb[0].mxu0
          %v1849 = vadd.f32 %v1772, %v1848
          %v1850 = vpop.f32.mrb[0].mxu0
          %1851 = vdwg.mxu0
          %1852 = vmatprep.subr.mxu0 0.0
          %v1853 = vand.u32 %v1024, 4294901760
          %v1854 = vsub.f32 %v1024, %v1853
          %v1855 = vand.u32 %v1854, 4294901760
          %1856 = vmatpush1.msra.mxu0 %v1855
          %1857 = vmatprep.subr.mxu0 0.0
          %v1858 = vand.u32 %v1025, 4294901760
          %v1859 = vsub.f32 %v1025, %v1858
          %v1860 = vand.u32 %v1859, 4294901760
          %1861 = vmatpush1.msra.mxu0 %v1860
          %1862 = vmatprep.subr.mxu0 0.0
          %v1863 = vand.u32 %v1026, 4294901760
          %v1864 = vsub.f32 %v1026, %v1863
          %v1865 = vand.u32 %v1864, 4294901760
          %1866 = vmatpush1.msra.mxu0 %v1865
          %1867 = vmatprep.subr.mxu0 0.0
          %v1868 = vand.u32 %v1027, 4294901760
          %v1869 = vsub.f32 %v1027, %v1868
          %v1870 = vand.u32 %v1869, 4294901760
          %1871 = vmatpush1.msra.mxu0 %v1870
          %1872 = vmatprep.subr.mxu0 0.0
          %1873 = vmatpush1.msra.mxu0 0.0
          %1874 = vmatprep.subr.mxu0 0.0
          %1875 = vmatpush1.msra.mxu0 0.0
          %1876 = vmatprep.subr.mxu0 0.0
          %1877 = vmatpush1.msra.mxu0 0.0
          %1878 = vmatprep.subr.mxu0 0.0
          %1879 = vmatpush1.msra.mxu0 0.0
          %1880 = vmatprep.subr.mxu0 0.0
          %1881 = vmatpush1.msra.mxu0 0.0
          %1882 = vmatprep.subr.mxu0 0.0
          %1883 = vmatpush1.msra.mxu0 0.0
          %1884 = vmatprep.subr.mxu0 0.0
          %1885 = vmatpush1.msra.mxu0 0.0
          %1886 = vmatprep.subr.mxu0 0.0
          %1887 = vmatpush1.msra.mxu0 0.0
          %1888 = vmatprep.subr.mxu0 0.0
          %1889 = vmatpush1.msra.mxu0 0.0
          %1890 = vmatprep.subr.mxu0 0.0
          %1891 = vmatpush1.msra.mxu0 0.0
          %1892 = vmatprep.subr.mxu0 0.0
          %1893 = vmatpush1.msra.mxu0 0.0
          %1894 = vmatprep.subr.mxu0 0.0
          %1895 = vmatpush1.msra.mxu0 0.0
          %1896 = vmatprep.subr.mxu0 0.0
          %1897 = vmatpush1.msra.mxu0 0.0
          %1898 = vmatprep.subr.mxu0 0.0
          %1899 = vmatpush1.msra.mxu0 0.0
          %1900 = vmatprep.subr.mxu0 0.0
          %1901 = vmatpush1.msra.mxu0 0.0
          %1902 = vmatprep.subr.mxu0 0.0
          %1903 = vmatpush1.msra.mxu0 0.0
          %1904 = vmatprep.subr.mxu0 0.0
          %1905 = vmatpush1.msra.mxu0 0.0
          %1906 = vmatprep.subr.mxu0 0.0
          %1907 = vmatpush1.msra.mxu0 0.0
          %1908 = vmatprep.subr.mxu0 0.0
          %1909 = vmatpush1.msra.mxu0 0.0
          %1910 = vmatprep.subr.mxu0 0.0
          %1911 = vmatpush1.msra.mxu0 0.0
          %1912 = vmatprep.subr.mxu0 0.0
          %1913 = vmatpush1.msra.mxu0 0.0
          %1914 = vmatprep.subr.mxu0 0.0
          %1915 = vmatpush1.msra.mxu0 0.0
          %1916 = vmatprep.subr.mxu0 0.0
          %1917 = vmatpush1.msra.mxu0 0.0
          %1918 = vmatprep.subr.mxu0 0.0
          %1919 = vmatpush1.msra.mxu0 0.0
          %1920 = vmatprep.subr.mxu0 0.0
          %1921 = vmatpush1.msra.mxu0 0.0
          %1922 = vmatprep.subr.mxu0 0.0
          %1923 = vmatpush1.msra.mxu0 0.0
          %1924 = vmatprep.subr.mxu0 0.0
          %1925 = vmatpush1.msra.mxu0 0.0
          %1926 = vmatprep.subr.mxu0 0.0
          %1927 = vmatpush1.msra.mxu0 0.0
          %1928 = vmatprep.mubr.f32.mxu0 0.0
          %v1929 = vand.u32 %v1523, 4294901760
          %1930 = vmatmul.mubr.f32.gmra.mrb[0].mxu0 %v1929
          %v1931 = vpop.f32.mrb[0].mxu0
          %v1932 = vadd.f32 %v1849, %v1931
          %v1933 = vpop.f32.mrb[0].mxu0
          %1934 = vdwg.mxu0
          %1935 = vmatprep.subr.mxu0 0.0
          %v1936 = vand.u32 %v1024, 4294901760
          %1937 = vmatpush1.msra.mxu0 %v1936
          %1938 = vmatprep.subr.mxu0 0.0
          %v1939 = vand.u32 %v1025, 4294901760
          %1940 = vmatpush1.msra.mxu0 %v1939
          %1941 = vmatprep.subr.mxu0 0.0
          %v1942 = vand.u32 %v1026, 4294901760
          %1943 = vmatpush1.msra.mxu0 %v1942
          %1944 = vmatprep.subr.mxu0 0.0
          %v1945 = vand.u32 %v1027, 4294901760
          %1946 = vmatpush1.msra.mxu0 %v1945
          %1947 = vmatprep.subr.mxu0 0.0
          %1948 = vmatpush1.msra.mxu0 0.0
          %1949 = vmatprep.subr.mxu0 0.0
          %1950 = vmatpush1.msra.mxu0 0.0
          %1951 = vmatprep.subr.mxu0 0.0
          %1952 = vmatpush1.msra.mxu0 0.0
          %1953 = vmatprep.subr.mxu0 0.0
          %1954 = vmatpush1.msra.mxu0 0.0
          %1955 = vmatprep.subr.mxu0 0.0
          %1956 = vmatpush1.msra.mxu0 0.0
          %1957 = vmatprep.subr.mxu0 0.0
          %1958 = vmatpush1.msra.mxu0 0.0
          %1959 = vmatprep.subr.mxu0 0.0
          %1960 = vmatpush1.msra.mxu0 0.0
          %1961 = vmatprep.subr.mxu0 0.0
          %1962 = vmatpush1.msra.mxu0 0.0
          %1963 = vmatprep.subr.mxu0 0.0
          %1964 = vmatpush1.msra.mxu0 0.0
          %1965 = vmatprep.subr.mxu0 0.0
          %1966 = vmatpush1.msra.mxu0 0.0
          %1967 = vmatprep.subr.mxu0 0.0
          %1968 = vmatpush1.msra.mxu0 0.0
          %1969 = vmatprep.subr.mxu0 0.0
          %1970 = vmatpush1.msra.mxu0 0.0
          %1971 = vmatprep.subr.mxu0 0.0
          %1972 = vmatpush1.msra.mxu0 0.0
          %1973 = vmatprep.subr.mxu0 0.0
          %1974 = vmatpush1.msra.mxu0 0.0
          %1975 = vmatprep.subr.mxu0 0.0
          %1976 = vmatpush1.msra.mxu0 0.0
          %1977 = vmatprep.subr.mxu0 0.0
          %1978 = vmatpush1.msra.mxu0 0.0
          %1979 = vmatprep.subr.mxu0 0.0
          %1980 = vmatpush1.msra.mxu0 0.0
          %1981 = vmatprep.subr.mxu0 0.0
          %1982 = vmatpush1.msra.mxu0 0.0
          %1983 = vmatprep.subr.mxu0 0.0
          %1984 = vmatpush1.msra.mxu0 0.0
          %1985 = vmatprep.subr.mxu0 0.0
          %1986 = vmatpush1.msra.mxu0 0.0
          %1987 = vmatprep.subr.mxu0 0.0
          %1988 = vmatpush1.msra.mxu0 0.0
          %1989 = vmatprep.subr.mxu0 0.0
          %1990 = vmatpush1.msra.mxu0 0.0
          %1991 = vmatprep.subr.mxu0 0.0
          %1992 = vmatpush1.msra.mxu0 0.0
          %1993 = vmatprep.subr.mxu0 0.0
          %1994 = vmatpush1.msra.mxu0 0.0
          %1995 = vmatprep.subr.mxu0 0.0
          %1996 = vmatpush1.msra.mxu0 0.0
          %1997 = vmatprep.subr.mxu0 0.0
          %1998 = vmatpush1.msra.mxu0 0.0
          %1999 = vmatprep.subr.mxu0 0.0
          %2000 = vmatpush1.msra.mxu0 0.0
          %2001 = vmatprep.subr.mxu0 0.0
          %2002 = vmatpush1.msra.mxu0 0.0
          %2003 = vmatprep.mubr.f32.mxu0 0.0
          %v2004 = vand.u32 %v1523, 4294901760
          %2005 = vmatmul.mubr.f32.gmra.mrb[0].mxu0 %v2004
          %v2006 = vpop.f32.mrb[0].mxu0
          %v2007 = vadd.f32 %v1932, %v2006
          %v2008 = vpop.f32.mrb[0].mxu0
          %2009 = vdwg.mxu0
          %v2010 = vld [vmem:[%s3] ss:$0 sm:$0xff]
          %2012 = vset.pattern.permute.xlu0 64
          %2013 = vperm.xlu0 %2012, %v1023
          %v2014 = vpop.permute.xlu0 %2013
          %v2016 = vmul.f32 %v2014, %v2010
          %v2017 = vadd.f32 %v2007, %v2016
          %v2018 = vld [vmem:[%s3 + $0x8] ss:$0 sm:$0xff]
          %v2019 = vadd.f32 %v2017, %v2018
          %v2020 = vmax.f32 %v2019, 0.0
          %v2021 = vld [vmem:[%s3 + $0x10] sm:$0xff]
          %v2022 = vld [vmem:[%s3 + $0x18] ss:$0 sm:$0xff]
          %vm2023 = vcmask 64512
          %v2025 = vsel %vm2023, %v2020, 0
          %2027 = vmatprep.subr.mxu0 0.0
          %v2028 = vand.u32 %v2021, 4294901760
          %2029 = vmatpush1.msra.mxu0 %v2028
          %2030 = vmatprep.subr.mxu0 0.0
          %2031 = vmatpush1.msra.mxu0 0.0
          %2032 = vmatprep.subr.mxu0 0.0
          %2033 = vmatpush1.msra.mxu0 0.0
          %2034 = vmatprep.subr.mxu0 0.0
          %2035 = vmatpush1.msra.mxu0 0.0
          %2036 = vmatprep.subr.mxu0 0.0
          %2037 = vmatpush1.msra.mxu0 0.0
          %2038 = vmatprep.subr.mxu0 0.0
          %2039 = vmatpush1.msra.mxu0 0.0
          %2040 = vmatprep.subr.mxu0 0.0
          %2041 = vmatpush1.msra.mxu0 0.0
          %2042 = vmatprep.subr.mxu0 0.0
          %2043 = vmatpush1.msra.mxu0 0.0
          %2044 = vmatprep.subr.mxu0 0.0
          %2045 = vmatpush1.msra.mxu0 0.0
          %2046 = vmatprep.subr.mxu0 0.0
          %2047 = vmatpush1.msra.mxu0 0.0
          %2048 = vmatprep.subr.mxu0 0.0
          %2049 = vmatpush1.msra.mxu0 0.0
          %2050 = vmatprep.subr.mxu0 0.0
          %2051 = vmatpush1.msra.mxu0 0.0
          %2052 = vmatprep.subr.mxu0 0.0
          %2053 = vmatpush1.msra.mxu0 0.0
          %2054 = vmatprep.subr.mxu0 0.0
          %2055 = vmatpush1.msra.mxu0 0.0
          %2056 = vmatprep.subr.mxu0 0.0
          %2057 = vmatpush1.msra.mxu0 0.0
          %2058 = vmatprep.subr.mxu0 0.0
          %2059 = vmatpush1.msra.mxu0 0.0
          %2060 = vmatprep.subr.mxu0 0.0
          %2061 = vmatpush1.msra.mxu0 0.0
          %2062 = vmatprep.subr.mxu0 0.0
          %2063 = vmatpush1.msra.mxu0 0.0
          %2064 = vmatprep.subr.mxu0 0.0
          %2065 = vmatpush1.msra.mxu0 0.0
          %2066 = vmatprep.subr.mxu0 0.0
          %2067 = vmatpush1.msra.mxu0 0.0
          %2068 = vmatprep.subr.mxu0 0.0
          %2069 = vmatpush1.msra.mxu0 0.0
          %2070 = vmatprep.subr.mxu0 0.0
          %2071 = vmatpush1.msra.mxu0 0.0
          %2072 = vmatprep.subr.mxu0 0.0
          %2073 = vmatpush1.msra.mxu0 0.0
          %2074 = vmatprep.subr.mxu0 0.0
          %2075 = vmatpush1.msra.mxu0 0.0
          %2076 = vmatprep.subr.mxu0 0.0
          %2077 = vmatpush1.msra.mxu0 0.0
          %2078 = vmatprep.subr.mxu0 0.0
          %2079 = vmatpush1.msra.mxu0 0.0
          %2080 = vmatprep.subr.mxu0 0.0
          %2081 = vmatpush1.msra.mxu0 0.0
          %2082 = vmatprep.subr.mxu0 0.0
          %2083 = vmatpush1.msra.mxu0 0.0
          %2084 = vmatprep.subr.mxu0 0.0
          %2085 = vmatpush1.msra.mxu0 0.0
          %2086 = vmatprep.subr.mxu0 0.0
          %2087 = vmatpush1.msra.mxu0 0.0
          %2088 = vmatprep.subr.mxu0 0.0
          %2089 = vmatpush1.msra.mxu0 0.0
          %2090 = vmatprep.subr.mxu0 0.0
          %2091 = vmatpush1.msra.mxu0 0.0
          %2092 = vmatprep.mubr.f32.mxu0 0.0
          %v2093 = vand.u32 %v2025, 4294901760
          %v2094 = vsub.f32 %v2025, %v2093
          %v2095 = vand.u32 %v2094, 4294901760
          %v2096 = vsub.f32 %v2094, %v2095
          %v2097 = vand.u32 %v2096, 4294901760
          %2098 = vmatmul.mubr.f32.gmra.mrb[0].mxu0 %v2097
          %v2099 = vpop.f32.mrb[0].mxu0
          %v2100 = vadd.f32 %v2022, %v2099
          %v2101 = vpop.f32.mrb[0].mxu0
          %2102 = vdwg.mxu0
          %2103 = vmatprep.subr.mxu0 0.0
          %v2104 = vand.u32 %v2021, 4294901760
          %v2105 = vsub.f32 %v2021, %v2104
          %v2106 = vand.u32 %v2105, 4294901760
          %v2107 = vsub.f32 %v2105, %v2106
          %v2108 = vand.u32 %v2107, 4294901760
          %2109 = vmatpush1.msra.mxu0 %v2108
          %2110 = vmatprep.subr.mxu0 0.0
          %2111 = vmatpush1.msra.mxu0 0.0
          %2112 = vmatprep.subr.mxu0 0.0
          %2113 = vmatpush1.msra.mxu0 0.0
          %2114 = vmatprep.subr.mxu0 0.0
          %2115 = vmatpush1.msra.mxu0 0.0
          %2116 = vmatprep.subr.mxu0 0.0
          %2117 = vmatpush1.msra.mxu0 0.0
          %2118 = vmatprep.subr.mxu0 0.0
          %2119 = vmatpush1.msra.mxu0 0.0
          %2120 = vmatprep.subr.mxu0 0.0
          %2121 = vmatpush1.msra.mxu0 0.0
          %2122 = vmatprep.subr.mxu0 0.0
          %2123 = vmatpush1.msra.mxu0 0.0
          %2124 = vmatprep.subr.mxu0 0.0
          %2125 = vmatpush1.msra.mxu0 0.0
          %2126 = vmatprep.subr.mxu0 0.0
          %2127 = vmatpush1.msra.mxu0 0.0
          %2128 = vmatprep.subr.mxu0 0.0
          %2129 = vmatpush1.msra.mxu0 0.0
          %2130 = vmatprep.subr.mxu0 0.0
          %2131 = vmatpush1.msra.mxu0 0.0
          %2132 = vmatprep.subr.mxu0 0.0
          %2133 = vmatpush1.msra.mxu0 0.0
          %2134 = vmatprep.subr.mxu0 0.0
          %2135 = vmatpush1.msra.mxu0 0.0
          %2136 = vmatprep.subr.mxu0 0.0
          %2137 = vmatpush1.msra.mxu0 0.0
          %2138 = vmatprep.subr.mxu0 0.0
          %2139 = vmatpush1.msra.mxu0 0.0
          %2140 = vmatprep.subr.mxu0 0.0
          %2141 = vmatpush1.msra.mxu0 0.0
          %2142 = vmatprep.subr.mxu0 0.0
          %2143 = vmatpush1.msra.mxu0 0.0
          %2144 = vmatprep.subr.mxu0 0.0
          %2145 = vmatpush1.msra.mxu0 0.0
          %2146 = vmatprep.subr.mxu0 0.0
          %2147 = vmatpush1.msra.mxu0 0.0
          %2148 = vmatprep.subr.mxu0 0.0
          %2149 = vmatpush1.msra.mxu0 0.0
          %2150 = vmatprep.subr.mxu0 0.0
          %2151 = vmatpush1.msra.mxu0 0.0
          %2152 = vmatprep.subr.mxu0 0.0
          %2153 = vmatpush1.msra.mxu0 0.0
          %2154 = vmatprep.subr.mxu0 0.0
          %2155 = vmatpush1.msra.mxu0 0.0
          %2156 = vmatprep.subr.mxu0 0.0
          %2157 = vmatpush1.msra.mxu0 0.0
          %2158 = vmatprep.subr.mxu0 0.0
          %2159 = vmatpush1.msra.mxu0 0.0
          %2160 = vmatprep.subr.mxu0 0.0
          %2161 = vmatpush1.msra.mxu0 0.0
          %2162 = vmatprep.subr.mxu0 0.0
          %2163 = vmatpush1.msra.mxu0 0.0
          %2164 = vmatprep.subr.mxu0 0.0
          %2165 = vmatpush1.msra.mxu0 0.0
          %2166 = vmatprep.subr.mxu0 0.0
          %2167 = vmatpush1.msra.mxu0 0.0
          %2168 = vmatprep.subr.mxu0 0.0
          %2169 = vmatpush1.msra.mxu0 0.0
          %2170 = vmatprep.subr.mxu0 0.0
          %2171 = vmatpush1.msra.mxu0 0.0
          %2172 = vmatprep.mubr.f32.mxu0 0.0
          %v2173 = vand.u32 %v2025, 4294901760
          %2174 = vmatmul.mubr.f32.gmra.mrb[0].mxu0 %v2173
          %v2175 = vpop.f32.mrb[0].mxu0
          %v2176 = vadd.f32 %v2100, %v2175
          %v2177 = vpop.f32.mrb[0].mxu0
          %2178 = vdwg.mxu0
          %2179 = vmatprep.subr.mxu0 0.0
          %v2180 = vand.u32 %v2021, 4294901760
          %v2181 = vsub.f32 %v2021, %v2180
          %2182 = vmatpush1.msra.mxu0 %v2181
          %2183 = vmatprep.subr.mxu0 0.0
          %2184 = vmatpush1.msra.mxu0 0.0
          %2185 = vmatprep.subr.mxu0 0.0
          %2186 = vmatpush1.msra.mxu0 0.0
          %2187 = vmatprep.subr.mxu0 0.0
          %2188 = vmatpush1.msra.mxu0 0.0
          %2189 = vmatprep.subr.mxu0 0.0
          %2190 = vmatpush1.msra.mxu0 0.0
          %2191 = vmatprep.subr.mxu0 0.0
          %2192 = vmatpush1.msra.mxu0 0.0
          %2193 = vmatprep.subr.mxu0 0.0
          %2194 = vmatpush1.msra.mxu0 0.0
          %2195 = vmatprep.subr.mxu0 0.0
          %2196 = vmatpush1.msra.mxu0 0.0
          %2197 = vmatprep.subr.mxu0 0.0
          %2198 = vmatpush1.msra.mxu0 0.0
          %2199 = vmatprep.subr.mxu0 0.0
          %2200 = vmatpush1.msra.mxu0 0.0
          %2201 = vmatprep.subr.mxu0 0.0
          %2202 = vmatpush1.msra.mxu0 0.0
          %2203 = vmatprep.subr.mxu0 0.0
          %2204 = vmatpush1.msra.mxu0 0.0
          %2205 = vmatprep.subr.mxu0 0.0
          %2206 = vmatpush1.msra.mxu0 0.0
          %2207 = vmatprep.subr.mxu0 0.0
          %2208 = vmatpush1.msra.mxu0 0.0
          %2209 = vmatprep.subr.mxu0 0.0
          %2210 = vmatpush1.msra.mxu0 0.0
          %2211 = vmatprep.subr.mxu0 0.0
          %2212 = vmatpush1.msra.mxu0 0.0
          %2213 = vmatprep.subr.mxu0 0.0
          %2214 = vmatpush1.msra.mxu0 0.0
          %2215 = vmatprep.subr.mxu0 0.0
          %2216 = vmatpush1.msra.mxu0 0.0
          %2217 = vmatprep.subr.mxu0 0.0
          %2218 = vmatpush1.msra.mxu0 0.0
          %2219 = vmatprep.subr.mxu0 0.0
          %2220 = vmatpush1.msra.mxu0 0.0
          %2221 = vmatprep.subr.mxu0 0.0
          %2222 = vmatpush1.msra.mxu0 0.0
          %2223 = vmatprep.subr.mxu0 0.0
          %2224 = vmatpush1.msra.mxu0 0.0
          %2225 = vmatprep.subr.mxu0 0.0
          %2226 = vmatpush1.msra.mxu0 0.0
          %2227 = vmatprep.subr.mxu0 0.0
          %2228 = vmatpush1.msra.mxu0 0.0
          %2229 = vmatprep.subr.mxu0 0.0
          %2230 = vmatpush1.msra.mxu0 0.0
          %2231 = vmatprep.subr.mxu0 0.0
          %2232 = vmatpush1.msra.mxu0 0.0
          %2233 = vmatprep.subr.mxu0 0.0
          %2234 = vmatpush1.msra.mxu0 0.0
          %2235 = vmatprep.subr.mxu0 0.0
          %2236 = vmatpush1.msra.mxu0 0.0
          %2237 = vmatprep.subr.mxu0 0.0
          %2238 = vmatpush1.msra.mxu0 0.0
          %2239 = vmatprep.subr.mxu0 0.0
          %2240 = vmatpush1.msra.mxu0 0.0
          %2241 = vmatprep.subr.mxu0 0.0
          %2242 = vmatpush1.msra.mxu0 0.0
          %2243 = vmatprep.subr.mxu0 0.0
          %2244 = vmatpush1.msra.mxu0 0.0
          %2245 = vmatprep.mubr.f32.mxu0 0.0
          %v2246 = vand.u32 %v2025, 4294901760
          %v2247 = vsub.f32 %v2025, %v2246
          %2248 = vmatmul.mubr.f32.gmra.mrb[0].mxu0 %v2247
          %v2249 = vpop.f32.mrb[0].mxu0
          %v2250 = vadd.f32 %v2176, %v2249
          %v2251 = vpop.f32.mrb[0].mxu0
          %2252 = vdwg.mxu0
          %2253 = vmatprep.subr.mxu0 0.0
          %v2254 = vand.u32 %v2021, 4294901760
          %2255 = vmatpush1.msra.mxu0 %v2254
          %2256 = vmatprep.subr.mxu0 0.0
          %2257 = vmatpush1.msra.mxu0 0.0
          %2258 = vmatprep.subr.mxu0 0.0
          %2259 = vmatpush1.msra.mxu0 0.0
          %2260 = vmatprep.subr.mxu0 0.0
          %2261 = vmatpush1.msra.mxu0 0.0
          %2262 = vmatprep.subr.mxu0 0.0
          %2263 = vmatpush1.msra.mxu0 0.0
          %2264 = vmatprep.subr.mxu0 0.0
          %2265 = vmatpush1.msra.mxu0 0.0
          %2266 = vmatprep.subr.mxu0 0.0
          %2267 = vmatpush1.msra.mxu0 0.0
          %2268 = vmatprep.subr.mxu0 0.0
          %2269 = vmatpush1.msra.mxu0 0.0
          %2270 = vmatprep.subr.mxu0 0.0
          %2271 = vmatpush1.msra.mxu0 0.0
          %2272 = vmatprep.subr.mxu0 0.0
          %2273 = vmatpush1.msra.mxu0 0.0
          %2274 = vmatprep.subr.mxu0 0.0
          %2275 = vmatpush1.msra.mxu0 0.0
          %2276 = vmatprep.subr.mxu0 0.0
          %2277 = vmatpush1.msra.mxu0 0.0
          %2278 = vmatprep.subr.mxu0 0.0
          %2279 = vmatpush1.msra.mxu0 0.0
          %2280 = vmatprep.subr.mxu0 0.0
          %2281 = vmatpush1.msra.mxu0 0.0
          %2282 = vmatprep.subr.mxu0 0.0
          %2283 = vmatpush1.msra.mxu0 0.0
          %2284 = vmatprep.subr.mxu0 0.0
          %2285 = vmatpush1.msra.mxu0 0.0
          %2286 = vmatprep.subr.mxu0 0.0
          %2287 = vmatpush1.msra.mxu0 0.0
          %2288 = vmatprep.subr.mxu0 0.0
          %2289 = vmatpush1.msra.mxu0 0.0
          %2290 = vmatprep.subr.mxu0 0.0
          %2291 = vmatpush1.msra.mxu0 0.0
          %2292 = vmatprep.subr.mxu0 0.0
          %2293 = vmatpush1.msra.mxu0 0.0
          %2294 = vmatprep.subr.mxu0 0.0
          %2295 = vmatpush1.msra.mxu0 0.0
          %2296 = vmatprep.subr.mxu0 0.0
          %2297 = vmatpush1.msra.mxu0 0.0
          %2298 = vmatprep.subr.mxu0 0.0
          %2299 = vmatpush1.msra.mxu0 0.0
          %2300 = vmatprep.subr.mxu0 0.0
          %2301 = vmatpush1.msra.mxu0 0.0
          %2302 = vmatprep.subr.mxu0 0.0
          %2303 = vmatpush1.msra.mxu0 0.0
          %2304 = vmatprep.subr.mxu0 0.0
          %2305 = vmatpush1.msra.mxu0 0.0
          %2306 = vmatprep.subr.mxu0 0.0
          %2307 = vmatpush1.msra.mxu0 0.0
          %2308 = vmatprep.subr.mxu0 0.0
          %2309 = vmatpush1.msra.mxu0 0.0
          %2310 = vmatprep.subr.mxu0 0.0
          %2311 = vmatpush1.msra.mxu0 0.0
          %2312 = vmatprep.subr.mxu0 0.0
          %2313 = vmatpush1.msra.mxu0 0.0
          %2314 = vmatprep.subr.mxu0 0.0
          %2315 = vmatpush1.msra.mxu0 0.0
          %2316 = vmatprep.subr.mxu0 0.0
          %2317 = vmatpush1.msra.mxu0 0.0
          %2318 = vmatprep.mubr.f32.mxu0 0.0
          %v2319 = vand.u32 %v2025, 4294901760
          %v2320 = vsub.f32 %v2025, %v2319
          %v2321 = vand.u32 %v2320, 4294901760
          %2322 = vmatmul.mubr.f32.gmra.mrb[0].mxu0 %v2321
          %v2323 = vpop.f32.mrb[0].mxu0
          %v2324 = vadd.f32 %v2250, %v2323
          %v2325 = vpop.f32.mrb[0].mxu0
          %2326 = vdwg.mxu0
          %2327 = vmatprep.subr.mxu0 0.0
          %v2328 = vand.u32 %v2021, 4294901760
          %v2329 = vsub.f32 %v2021, %v2328
          %v2330 = vand.u32 %v2329, 4294901760
          %2331 = vmatpush1.msra.mxu0 %v2330
          %2332 = vmatprep.subr.mxu0 0.0
          %2333 = vmatpush1.msra.mxu0 0.0
          %2334 = vmatprep.subr.mxu0 0.0
          %2335 = vmatpush1.msra.mxu0 0.0
          %2336 = vmatprep.subr.mxu0 0.0
          %2337 = vmatpush1.msra.mxu0 0.0
          %2338 = vmatprep.subr.mxu0 0.0
          %2339 = vmatpush1.msra.mxu0 0.0
          %2340 = vmatprep.subr.mxu0 0.0
          %2341 = vmatpush1.msra.mxu0 0.0
          %2342 = vmatprep.subr.mxu0 0.0
          %2343 = vmatpush1.msra.mxu0 0.0
          %2344 = vmatprep.subr.mxu0 0.0
          %2345 = vmatpush1.msra.mxu0 0.0
          %2346 = vmatprep.subr.mxu0 0.0
          %2347 = vmatpush1.msra.mxu0 0.0
          %2348 = vmatprep.subr.mxu0 0.0
          %2349 = vmatpush1.msra.mxu0 0.0
          %2350 = vmatprep.subr.mxu0 0.0
          %2351 = vmatpush1.msra.mxu0 0.0
          %2352 = vmatprep.subr.mxu0 0.0
          %2353 = vmatpush1.msra.mxu0 0.0
          %2354 = vmatprep.subr.mxu0 0.0
          %2355 = vmatpush1.msra.mxu0 0.0
          %2356 = vmatprep.subr.mxu0 0.0
          %2357 = vmatpush1.msra.mxu0 0.0
          %2358 = vmatprep.subr.mxu0 0.0
          %2359 = vmatpush1.msra.mxu0 0.0
          %2360 = vmatprep.subr.mxu0 0.0
          %2361 = vmatpush1.msra.mxu0 0.0
          %2362 = vmatprep.subr.mxu0 0.0
          %2363 = vmatpush1.msra.mxu0 0.0
          %2364 = vmatprep.subr.mxu0 0.0
          %2365 = vmatpush1.msra.mxu0 0.0
          %2366 = vmatprep.subr.mxu0 0.0
          %2367 = vmatpush1.msra.mxu0 0.0
          %2368 = vmatprep.subr.mxu0 0.0
          %2369 = vmatpush1.msra.mxu0 0.0
          %2370 = vmatprep.subr.mxu0 0.0
          %2371 = vmatpush1.msra.mxu0 0.0
          %2372 = vmatprep.subr.mxu0 0.0
          %2373 = vmatpush1.msra.mxu0 0.0
          %2374 = vmatprep.subr.mxu0 0.0
          %2375 = vmatpush1.msra.mxu0 0.0
          %2376 = vmatprep.subr.mxu0 0.0
          %2377 = vmatpush1.msra.mxu0 0.0
          %2378 = vmatprep.subr.mxu0 0.0
          %2379 = vmatpush1.msra.mxu0 0.0
          %2380 = vmatprep.subr.mxu0 0.0
          %2381 = vmatpush1.msra.mxu0 0.0
          %2382 = vmatprep.subr.mxu0 0.0
          %2383 = vmatpush1.msra.mxu0 0.0
          %2384 = vmatprep.subr.mxu0 0.0
          %2385 = vmatpush1.msra.mxu0 0.0
          %2386 = vmatprep.subr.mxu0 0.0
          %2387 = vmatpush1.msra.mxu0 0.0
          %2388 = vmatprep.subr.mxu0 0.0
          %2389 = vmatpush1.msra.mxu0 0.0
          %2390 = vmatprep.subr.mxu0 0.0
          %2391 = vmatpush1.msra.mxu0 0.0
          %2392 = vmatprep.subr.mxu0 0.0
          %2393 = vmatpush1.msra.mxu0 0.0
          %2394 = vmatprep.mubr.f32.mxu0 0.0
          %v2395 = vand.u32 %v2025, 4294901760
          %2396 = vmatmul.mubr.f32.gmra.mrb[0].mxu0 %v2395
          %v2397 = vpop.f32.mrb[0].mxu0
          %v2398 = vadd.f32 %v2324, %v2397
          %v2399 = vpop.f32.mrb[0].mxu0
          %2400 = vdwg.mxu0
          %2401 = vmatprep.subr.mxu0 0.0
          %v2402 = vand.u32 %v2021, 4294901760
          %2403 = vmatpush1.msra.mxu0 %v2402
          %2404 = vmatprep.subr.mxu0 0.0
          %2405 = vmatpush1.msra.mxu0 0.0
          %2406 = vmatprep.subr.mxu0 0.0
          %2407 = vmatpush1.msra.mxu0 0.0
          %2408 = vmatprep.subr.mxu0 0.0
          %2409 = vmatpush1.msra.mxu0 0.0
          %2410 = vmatprep.subr.mxu0 0.0
          %2411 = vmatpush1.msra.mxu0 0.0
          %2412 = vmatprep.subr.mxu0 0.0
          %2413 = vmatpush1.msra.mxu0 0.0
          %2414 = vmatprep.subr.mxu0 0.0
          %2415 = vmatpush1.msra.mxu0 0.0
          %2416 = vmatprep.subr.mxu0 0.0
          %2417 = vmatpush1.msra.mxu0 0.0
          %2418 = vmatprep.subr.mxu0 0.0
          %2419 = vmatpush1.msra.mxu0 0.0
          %2420 = vmatprep.subr.mxu0 0.0
          %2421 = vmatpush1.msra.mxu0 0.0
          %2422 = vmatprep.subr.mxu0 0.0
          %2423 = vmatpush1.msra.mxu0 0.0
          %2424 = vmatprep.subr.mxu0 0.0
          %2425 = vmatpush1.msra.mxu0 0.0
          %2426 = vmatprep.subr.mxu0 0.0
          %2427 = vmatpush1.msra.mxu0 0.0
          %2428 = vmatprep.subr.mxu0 0.0
          %2429 = vmatpush1.msra.mxu0 0.0
          %2430 = vmatprep.subr.mxu0 0.0
          %2431 = vmatpush1.msra.mxu0 0.0
          %2432 = vmatprep.subr.mxu0 0.0
          %2433 = vmatpush1.msra.mxu0 0.0
          %2434 = vmatprep.subr.mxu0 0.0
          %2435 = vmatpush1.msra.mxu0 0.0
          %2436 = vmatprep.subr.mxu0 0.0
          %2437 = vmatpush1.msra.mxu0 0.0
          %2438 = vmatprep.subr.mxu0 0.0
          %2439 = vmatpush1.msra.mxu0 0.0
          %2440 = vmatprep.subr.mxu0 0.0
          %2441 = vmatpush1.msra.mxu0 0.0
          %2442 = vmatprep.subr.mxu0 0.0
          %2443 = vmatpush1.msra.mxu0 0.0
          %2444 = vmatprep.subr.mxu0 0.0
          %2445 = vmatpush1.msra.mxu0 0.0
          %2446 = vmatprep.subr.mxu0 0.0
          %2447 = vmatpush1.msra.mxu0 0.0
          %2448 = vmatprep.subr.mxu0 0.0
          %2449 = vmatpush1.msra.mxu0 0.0
          %2450 = vmatprep.subr.mxu0 0.0
          %2451 = vmatpush1.msra.mxu0 0.0
          %2452 = vmatprep.subr.mxu0 0.0
          %2453 = vmatpush1.msra.mxu0 0.0
          %2454 = vmatprep.subr.mxu0 0.0
          %2455 = vmatpush1.msra.mxu0 0.0
          %2456 = vmatprep.subr.mxu0 0.0
          %2457 = vmatpush1.msra.mxu0 0.0
          %2458 = vmatprep.subr.mxu0 0.0
          %2459 = vmatpush1.msra.mxu0 0.0
          %2460 = vmatprep.subr.mxu0 0.0
          %2461 = vmatpush1.msra.mxu0 0.0
          %2462 = vmatprep.subr.mxu0 0.0
          %2463 = vmatpush1.msra.mxu0 0.0
          %2464 = vmatprep.subr.mxu0 0.0
          %2465 = vmatpush1.msra.mxu0 0.0
          %2466 = vmatprep.mubr.f32.mxu0 0.0
          %v2467 = vand.u32 %v2025, 4294901760
          %2468 = vmatmul.mubr.f32.gmra.mrb[0].mxu0 %v2467
          %v2469 = vpop.f32.mrb[0].mxu0
          %v2470 = vadd.f32 %v2398, %v2469
          %v2471 = vpop.f32.mrb[0].mxu0
          %2472 = vdwg.mxu0
          %v2473 = vmax.f32 %v2470, 0.0
          %v2474 = vld [vmem:[%s3 + $0x20] sm:$0xf]
          %v2475 = vld [vmem:[%s3 + $0x28] ss:$0 sm:$0xff]
          %vm2476 = vcmask 31744
          %v2478 = vsel %vm2476, %v2473, 0
          %vm2480 = vcmask 1043456
          %v2482 = vsel %vm2480, %v2474, 0
          %2484 = vmatprep.subr.mxu0 0.0
          %v2485 = vand.u32 %v2482, 4294901760
          %2486 = vmatpush1.msra.mxu0 %v2485
          %2487 = vmatprep.subr.mxu0 0.0
          %2488 = vmatpush1.msra.mxu0 0.0
          %2489 = vmatprep.subr.mxu0 0.0
          %2490 = vmatpush1.msra.mxu0 0.0
          %2491 = vmatprep.subr.mxu0 0.0
          %2492 = vmatpush1.msra.mxu0 0.0
          %2493 = vmatprep.subr.mxu0 0.0
          %2494 = vmatpush1.msra.mxu0 0.0
          %2495 = vmatprep.subr.mxu0 0.0
          %2496 = vmatpush1.msra.mxu0 0.0
          %2497 = vmatprep.subr.mxu0 0.0
          %2498 = vmatpush1.msra.mxu0 0.0
          %2499 = vmatprep.subr.mxu0 0.0
          %2500 = vmatpush1.msra.mxu0 0.0
          %2501 = vmatprep.subr.mxu0 0.0
          %2502 = vmatpush1.msra.mxu0 0.0
          %2503 = vmatprep.subr.mxu0 0.0
          %2504 = vmatpush1.msra.mxu0 0.0
          %2505 = vmatprep.subr.mxu0 0.0
          %2506 = vmatpush1.msra.mxu0 0.0
          %2507 = vmatprep.subr.mxu0 0.0
          %2508 = vmatpush1.msra.mxu0 0.0
          %2509 = vmatprep.subr.mxu0 0.0
          %2510 = vmatpush1.msra.mxu0 0.0
          %2511 = vmatprep.subr.mxu0 0.0
          %2512 = vmatpush1.msra.mxu0 0.0
          %2513 = vmatprep.subr.mxu0 0.0
          %2514 = vmatpush1.msra.mxu0 0.0
          %2515 = vmatprep.subr.mxu0 0.0
          %2516 = vmatpush1.msra.mxu0 0.0
          %2517 = vmatprep.subr.mxu0 0.0
          %2518 = vmatpush1.msra.mxu0 0.0
          %2519 = vmatprep.subr.mxu0 0.0
          %2520 = vmatpush1.msra.mxu0 0.0
          %2521 = vmatprep.subr.mxu0 0.0
          %2522 = vmatpush1.msra.mxu0 0.0
          %2523 = vmatprep.subr.mxu0 0.0
          %2524 = vmatpush1.msra.mxu0 0.0
          %2525 = vmatprep.subr.mxu0 0.0
          %2526 = vmatpush1.msra.mxu0 0.0
          %2527 = vmatprep.subr.mxu0 0.0
          %2528 = vmatpush1.msra.mxu0 0.0
          %2529 = vmatprep.subr.mxu0 0.0
          %2530 = vmatpush1.msra.mxu0 0.0
          %2531 = vmatprep.subr.mxu0 0.0
          %2532 = vmatpush1.msra.mxu0 0.0
          %2533 = vmatprep.subr.mxu0 0.0
          %2534 = vmatpush1.msra.mxu0 0.0
          %2535 = vmatprep.subr.mxu0 0.0
          %2536 = vmatpush1.msra.mxu0 0.0
          %2537 = vmatprep.subr.mxu0 0.0
          %2538 = vmatpush1.msra.mxu0 0.0
          %2539 = vmatprep.subr.mxu0 0.0
          %2540 = vmatpush1.msra.mxu0 0.0
          %2541 = vmatprep.subr.mxu0 0.0
          %2542 = vmatpush1.msra.mxu0 0.0
          %2543 = vmatprep.subr.mxu0 0.0
          %2544 = vmatpush1.msra.mxu0 0.0
          %2545 = vmatprep.subr.mxu0 0.0
          %2546 = vmatpush1.msra.mxu0 0.0
          %2547 = vmatprep.subr.mxu0 0.0
          %2548 = vmatpush1.msra.mxu0 0.0
          %2549 = vmatprep.mubr.f32.mxu0 0.0
          %v2550 = vand.u32 %v2478, 4294901760
          %v2551 = vsub.f32 %v2478, %v2550
          %v2552 = vand.u32 %v2551, 4294901760
          %v2553 = vsub.f32 %v2551, %v2552
          %v2554 = vand.u32 %v2553, 4294901760
          %2555 = vmatmul.mubr.f32.gmra.mrb[0].mxu0 %v2554
          %v2556 = vpop.f32.mrb[0].mxu0
          %v2557 = vadd.f32 %v2475, %v2556
          %v2558 = vpop.f32.mrb[0].mxu0
          %2559 = vdwg.mxu0
          %2560 = vmatprep.subr.mxu0 0.0
          %v2561 = vand.u32 %v2482, 4294901760
          %v2562 = vsub.f32 %v2482, %v2561
          %v2563 = vand.u32 %v2562, 4294901760
          %v2564 = vsub.f32 %v2562, %v2563
          %v2565 = vand.u32 %v2564, 4294901760
          %2566 = vmatpush1.msra.mxu0 %v2565
          %2567 = vmatprep.subr.mxu0 0.0
          %2568 = vmatpush1.msra.mxu0 0.0
          %2569 = vmatprep.subr.mxu0 0.0
          %2570 = vmatpush1.msra.mxu0 0.0
          %2571 = vmatprep.subr.mxu0 0.0
          %2572 = vmatpush1.msra.mxu0 0.0
          %2573 = vmatprep.subr.mxu0 0.0
          %2574 = vmatpush1.msra.mxu0 0.0
          %2575 = vmatprep.subr.mxu0 0.0
          %2576 = vmatpush1.msra.mxu0 0.0
          %2577 = vmatprep.subr.mxu0 0.0
          %2578 = vmatpush1.msra.mxu0 0.0
          %2579 = vmatprep.subr.mxu0 0.0
          %2580 = vmatpush1.msra.mxu0 0.0
          %2581 = vmatprep.subr.mxu0 0.0
          %2582 = vmatpush1.msra.mxu0 0.0
          %2583 = vmatprep.subr.mxu0 0.0
          %2584 = vmatpush1.msra.mxu0 0.0
          %2585 = vmatprep.subr.mxu0 0.0
          %2586 = vmatpush1.msra.mxu0 0.0
          %2587 = vmatprep.subr.mxu0 0.0
          %2588 = vmatpush1.msra.mxu0 0.0
          %2589 = vmatprep.subr.mxu0 0.0
          %2590 = vmatpush1.msra.mxu0 0.0
          %2591 = vmatprep.subr.mxu0 0.0
          %2592 = vmatpush1.msra.mxu0 0.0
          %2593 = vmatprep.subr.mxu0 0.0
          %2594 = vmatpush1.msra.mxu0 0.0
          %2595 = vmatprep.subr.mxu0 0.0
          %2596 = vmatpush1.msra.mxu0 0.0
          %2597 = vmatprep.subr.mxu0 0.0
          %2598 = vmatpush1.msra.mxu0 0.0
          %2599 = vmatprep.subr.mxu0 0.0
          %2600 = vmatpush1.msra.mxu0 0.0
          %2601 = vmatprep.subr.mxu0 0.0
          %2602 = vmatpush1.msra.mxu0 0.0
          %2603 = vmatprep.subr.mxu0 0.0
          %2604 = vmatpush1.msra.mxu0 0.0
          %2605 = vmatprep.subr.mxu0 0.0
          %2606 = vmatpush1.msra.mxu0 0.0
          %2607 = vmatprep.subr.mxu0 0.0
          %2608 = vmatpush1.msra.mxu0 0.0
          %2609 = vmatprep.subr.mxu0 0.0
          %2610 = vmatpush1.msra.mxu0 0.0
          %2611 = vmatprep.subr.mxu0 0.0
          %2612 = vmatpush1.msra.mxu0 0.0
          %2613 = vmatprep.subr.mxu0 0.0
          %2614 = vmatpush1.msra.mxu0 0.0
          %2615 = vmatprep.subr.mxu0 0.0
          %2616 = vmatpush1.msra.mxu0 0.0
          %2617 = vmatprep.subr.mxu0 0.0
          %2618 = vmatpush1.msra.mxu0 0.0
          %2619 = vmatprep.subr.mxu0 0.0
          %2620 = vmatpush1.msra.mxu0 0.0
          %2621 = vmatprep.subr.mxu0 0.0
          %2622 = vmatpush1.msra.mxu0 0.0
          %2623 = vmatprep.subr.mxu0 0.0
          %2624 = vmatpush1.msra.mxu0 0.0
          %2625 = vmatprep.subr.mxu0 0.0
          %2626 = vmatpush1.msra.mxu0 0.0
          %2627 = vmatprep.subr.mxu0 0.0
          %2628 = vmatpush1.msra.mxu0 0.0
          %2629 = vmatprep.mubr.f32.mxu0 0.0
          %v2630 = vand.u32 %v2478, 4294901760
          %2631 = vmatmul.mubr.f32.gmra.mrb[0].mxu0 %v2630
          %v2632 = vpop.f32.mrb[0].mxu0
          %v2633 = vadd.f32 %v2557, %v2632
          %v2634 = vpop.f32.mrb[0].mxu0
          %2635 = vdwg.mxu0
          %2636 = vmatprep.subr.mxu0 0.0
          %v2637 = vand.u32 %v2482, 4294901760
          %v2638 = vsub.f32 %v2482, %v2637
          %2639 = vmatpush1.msra.mxu0 %v2638
          %2640 = vmatprep.subr.mxu0 0.0
          %2641 = vmatpush1.msra.mxu0 0.0
          %2642 = vmatprep.subr.mxu0 0.0
          %2643 = vmatpush1.msra.mxu0 0.0
          %2644 = vmatprep.subr.mxu0 0.0
          %2645 = vmatpush1.msra.mxu0 0.0
          %2646 = vmatprep.subr.mxu0 0.0
          %2647 = vmatpush1.msra.mxu0 0.0
          %2648 = vmatprep.subr.mxu0 0.0
          %2649 = vmatpush1.msra.mxu0 0.0
          %2650 = vmatprep.subr.mxu0 0.0
          %2651 = vmatpush1.msra.mxu0 0.0
          %2652 = vmatprep.subr.mxu0 0.0
          %2653 = vmatpush1.msra.mxu0 0.0
          %2654 = vmatprep.subr.mxu0 0.0
          %2655 = vmatpush1.msra.mxu0 0.0
          %2656 = vmatprep.subr.mxu0 0.0
          %2657 = vmatpush1.msra.mxu0 0.0
          %2658 = vmatprep.subr.mxu0 0.0
          %2659 = vmatpush1.msra.mxu0 0.0
          %2660 = vmatprep.subr.mxu0 0.0
          %2661 = vmatpush1.msra.mxu0 0.0
          %2662 = vmatprep.subr.mxu0 0.0
          %2663 = vmatpush1.msra.mxu0 0.0
          %2664 = vmatprep.subr.mxu0 0.0
          %2665 = vmatpush1.msra.mxu0 0.0
          %2666 = vmatprep.subr.mxu0 0.0
          %2667 = vmatpush1.msra.mxu0 0.0
          %2668 = vmatprep.subr.mxu0 0.0
          %2669 = vmatpush1.msra.mxu0 0.0
          %2670 = vmatprep.subr.mxu0 0.0
          %2671 = vmatpush1.msra.mxu0 0.0
          %2672 = vmatprep.subr.mxu0 0.0
          %2673 = vmatpush1.msra.mxu0 0.0
          %2674 = vmatprep.subr.mxu0 0.0
          %2675 = vmatpush1.msra.mxu0 0.0
          %2676 = vmatprep.subr.mxu0 0.0
          %2677 = vmatpush1.msra.mxu0 0.0
          %2678 = vmatprep.subr.mxu0 0.0
          %2679 = vmatpush1.msra.mxu0 0.0
          %2680 = vmatprep.subr.mxu0 0.0
          %2681 = vmatpush1.msra.mxu0 0.0
          %2682 = vmatprep.subr.mxu0 0.0
          %2683 = vmatpush1.msra.mxu0 0.0
          %2684 = vmatprep.subr.mxu0 0.0
          %2685 = vmatpush1.msra.mxu0 0.0
          %2686 = vmatprep.subr.mxu0 0.0
          %2687 = vmatpush1.msra.mxu0 0.0
          %2688 = vmatprep.subr.mxu0 0.0
          %2689 = vmatpush1.msra.mxu0 0.0
          %2690 = vmatprep.subr.mxu0 0.0
          %2691 = vmatpush1.msra.mxu0 0.0
          %2692 = vmatprep.subr.mxu0 0.0
          %2693 = vmatpush1.msra.mxu0 0.0
          %2694 = vmatprep.subr.mxu0 0.0
          %2695 = vmatpush1.msra.mxu0 0.0
          %2696 = vmatprep.subr.mxu0 0.0
          %2697 = vmatpush1.msra.mxu0 0.0
          %2698 = vmatprep.subr.mxu0 0.0
          %2699 = vmatpush1.msra.mxu0 0.0
          %2700 = vmatprep.subr.mxu0 0.0
          %2701 = vmatpush1.msra.mxu0 0.0
          %2702 = vmatprep.mubr.f32.mxu0 0.0
          %v2703 = vand.u32 %v2478, 4294901760
          %v2704 = vsub.f32 %v2478, %v2703
          %2705 = vmatmul.mubr.f32.gmra.mrb[0].mxu0 %v2704
          %v2706 = vpop.f32.mrb[0].mxu0
          %v2707 = vadd.f32 %v2633, %v2706
          %v2708 = vpop.f32.mrb[0].mxu0
          %2709 = vdwg.mxu0
          %2710 = vmatprep.subr.mxu0 0.0
          %v2711 = vand.u32 %v2482, 4294901760
          %2712 = vmatpush1.msra.mxu0 %v2711
          %2713 = vmatprep.subr.mxu0 0.0
          %2714 = vmatpush1.msra.mxu0 0.0
          %2715 = vmatprep.subr.mxu0 0.0
          %2716 = vmatpush1.msra.mxu0 0.0
          %2717 = vmatprep.subr.mxu0 0.0
          %2718 = vmatpush1.msra.mxu0 0.0
          %2719 = vmatprep.subr.mxu0 0.0
          %2720 = vmatpush1.msra.mxu0 0.0
          %2721 = vmatprep.subr.mxu0 0.0
          %2722 = vmatpush1.msra.mxu0 0.0
          %2723 = vmatprep.subr.mxu0 0.0
          %2724 = vmatpush1.msra.mxu0 0.0
          %2725 = vmatprep.subr.mxu0 0.0
          %2726 = vmatpush1.msra.mxu0 0.0
          %2727 = vmatprep.subr.mxu0 0.0
          %2728 = vmatpush1.msra.mxu0 0.0
          %2729 = vmatprep.subr.mxu0 0.0
          %2730 = vmatpush1.msra.mxu0 0.0
          %2731 = vmatprep.subr.mxu0 0.0
          %2732 = vmatpush1.msra.mxu0 0.0
          %2733 = vmatprep.subr.mxu0 0.0
          %2734 = vmatpush1.msra.mxu0 0.0
          %2735 = vmatprep.subr.mxu0 0.0
          %2736 = vmatpush1.msra.mxu0 0.0
          %2737 = vmatprep.subr.mxu0 0.0
          %2738 = vmatpush1.msra.mxu0 0.0
          %2739 = vmatprep.subr.mxu0 0.0
          %2740 = vmatpush1.msra.mxu0 0.0
          %2741 = vmatprep.subr.mxu0 0.0
          %2742 = vmatpush1.msra.mxu0 0.0
          %2743 = vmatprep.subr.mxu0 0.0
          %2744 = vmatpush1.msra.mxu0 0.0
          %2745 = vmatprep.subr.mxu0 0.0
          %2746 = vmatpush1.msra.mxu0 0.0
          %2747 = vmatprep.subr.mxu0 0.0
          %2748 = vmatpush1.msra.mxu0 0.0
          %2749 = vmatprep.subr.mxu0 0.0
          %2750 = vmatpush1.msra.mxu0 0.0
          %2751 = vmatprep.subr.mxu0 0.0
          %2752 = vmatpush1.msra.mxu0 0.0
          %2753 = vmatprep.subr.mxu0 0.0
          %2754 = vmatpush1.msra.mxu0 0.0
          %2755 = vmatprep.subr.mxu0 0.0
          %2756 = vmatpush1.msra.mxu0 0.0
          %2757 = vmatprep.subr.mxu0 0.0
          %2758 = vmatpush1.msra.mxu0 0.0
          %2759 = vmatprep.subr.mxu0 0.0
          %2760 = vmatpush1.msra.mxu0 0.0
          %2761 = vmatprep.subr.mxu0 0.0
          %2762 = vmatpush1.msra.mxu0 0.0
          %2763 = vmatprep.subr.mxu0 0.0
          %2764 = vmatpush1.msra.mxu0 0.0
          %2765 = vmatprep.subr.mxu0 0.0
          %2766 = vmatpush1.msra.mxu0 0.0
          %2767 = vmatprep.subr.mxu0 0.0
          %2768 = vmatpush1.msra.mxu0 0.0
          %2769 = vmatprep.subr.mxu0 0.0
          %2770 = vmatpush1.msra.mxu0 0.0
          %2771 = vmatprep.subr.mxu0 0.0
          %2772 = vmatpush1.msra.mxu0 0.0
          %2773 = vmatprep.subr.mxu0 0.0
          %2774 = vmatpush1.msra.mxu0 0.0
          %2775 = vmatprep.mubr.f32.mxu0 0.0
          %v2776 = vand.u32 %v2478, 4294901760
          %v2777 = vsub.f32 %v2478, %v2776
          %v2778 = vand.u32 %v2777, 4294901760
          %2779 = vmatmul.mubr.f32.gmra.mrb[0].mxu0 %v2778
          %v2780 = vpop.f32.mrb[0].mxu0
          %v2781 = vadd.f32 %v2707, %v2780
          %v2782 = vpop.f32.mrb[0].mxu0
          %2783 = vdwg.mxu0
          %2784 = vmatprep.subr.mxu0 0.0
          %v2785 = vand.u32 %v2482, 4294901760
          %v2786 = vsub.f32 %v2482, %v2785
          %v2787 = vand.u32 %v2786, 4294901760
          %2788 = vmatpush1.msra.mxu0 %v2787
          %2789 = vmatprep.subr.mxu0 0.0
          %2790 = vmatpush1.msra.mxu0 0.0
          %2791 = vmatprep.subr.mxu0 0.0
          %2792 = vmatpush1.msra.mxu0 0.0
          %2793 = vmatprep.subr.mxu0 0.0
          %2794 = vmatpush1.msra.mxu0 0.0
          %2795 = vmatprep.subr.mxu0 0.0
          %2796 = vmatpush1.msra.mxu0 0.0
          %2797 = vmatprep.subr.mxu0 0.0
          %2798 = vmatpush1.msra.mxu0 0.0
          %2799 = vmatprep.subr.mxu0 0.0
          %2800 = vmatpush1.msra.mxu0 0.0
          %2801 = vmatprep.subr.mxu0 0.0
          %2802 = vmatpush1.msra.mxu0 0.0
          %2803 = vmatprep.subr.mxu0 0.0
          %2804 = vmatpush1.msra.mxu0 0.0
          %2805 = vmatprep.subr.mxu0 0.0
          %2806 = vmatpush1.msra.mxu0 0.0
          %2807 = vmatprep.subr.mxu0 0.0
          %2808 = vmatpush1.msra.mxu0 0.0
          %2809 = vmatprep.subr.mxu0 0.0
          %2810 = vmatpush1.msra.mxu0 0.0
          %2811 = vmatprep.subr.mxu0 0.0
          %2812 = vmatpush1.msra.mxu0 0.0
          %2813 = vmatprep.subr.mxu0 0.0
          %2814 = vmatpush1.msra.mxu0 0.0
          %2815 = vmatprep.subr.mxu0 0.0
          %2816 = vmatpush1.msra.mxu0 0.0
          %2817 = vmatprep.subr.mxu0 0.0
          %2818 = vmatpush1.msra.mxu0 0.0
          %2819 = vmatprep.subr.mxu0 0.0
          %2820 = vmatpush1.msra.mxu0 0.0
          %2821 = vmatprep.subr.mxu0 0.0
          %2822 = vmatpush1.msra.mxu0 0.0
          %2823 = vmatprep.subr.mxu0 0.0
          %2824 = vmatpush1.msra.mxu0 0.0
          %2825 = vmatprep.subr.mxu0 0.0
          %2826 = vmatpush1.msra.mxu0 0.0
          %2827 = vmatprep.subr.mxu0 0.0
          %2828 = vmatpush1.msra.mxu0 0.0
          %2829 = vmatprep.subr.mxu0 0.0
          %2830 = vmatpush1.msra.mxu0 0.0
          %2831 = vmatprep.subr.mxu0 0.0
          %2832 = vmatpush1.msra.mxu0 0.0
          %2833 = vmatprep.subr.mxu0 0.0
          %2834 = vmatpush1.msra.mxu0 0.0
          %2835 = vmatprep.subr.mxu0 0.0
          %2836 = vmatpush1.msra.mxu0 0.0
          %2837 = vmatprep.subr.mxu0 0.0
          %2838 = vmatpush1.msra.mxu0 0.0
          %2839 = vmatprep.subr.mxu0 0.0
          %2840 = vmatpush1.msra.mxu0 0.0
          %2841 = vmatprep.subr.mxu0 0.0
          %2842 = vmatpush1.msra.mxu0 0.0
          %2843 = vmatprep.subr.mxu0 0.0
          %2844 = vmatpush1.msra.mxu0 0.0
          %2845 = vmatprep.subr.mxu0 0.0
          %2846 = vmatpush1.msra.mxu0 0.0
          %2847 = vmatprep.subr.mxu0 0.0
          %2848 = vmatpush1.msra.mxu0 0.0
          %2849 = vmatprep.subr.mxu0 0.0
          %2850 = vmatpush1.msra.mxu0 0.0
          %2851 = vmatprep.mubr.f32.mxu0 0.0
          %v2852 = vand.u32 %v2478, 4294901760
          %2853 = vmatmul.mubr.f32.gmra.mrb[0].mxu0 %v2852
          %v2854 = vpop.f32.mrb[0].mxu0
          %v2855 = vadd.f32 %v2781, %v2854
          %v2856 = vpop.f32.mrb[0].mxu0
          %2857 = vdwg.mxu0
          %2858 = vmatprep.subr.mxu0 0.0
          %v2859 = vand.u32 %v2482, 4294901760
          %2860 = vmatpush1.msra.mxu0 %v2859
          %2861 = vmatprep.subr.mxu0 0.0
          %2862 = vmatpush1.msra.mxu0 0.0
          %2863 = vmatprep.subr.mxu0 0.0
          %2864 = vmatpush1.msra.mxu0 0.0
          %2865 = vmatprep.subr.mxu0 0.0
          %2866 = vmatpush1.msra.mxu0 0.0
          %2867 = vmatprep.subr.mxu0 0.0
          %2868 = vmatpush1.msra.mxu0 0.0
          %2869 = vmatprep.subr.mxu0 0.0
          %2870 = vmatpush1.msra.mxu0 0.0
          %2871 = vmatprep.subr.mxu0 0.0
          %2872 = vmatpush1.msra.mxu0 0.0
          %2873 = vmatprep.subr.mxu0 0.0
          %2874 = vmatpush1.msra.mxu0 0.0
          %2875 = vmatprep.subr.mxu0 0.0
          %2876 = vmatpush1.msra.mxu0 0.0
          %2877 = vmatprep.subr.mxu0 0.0
          %2878 = vmatpush1.msra.mxu0 0.0
          %2879 = vmatprep.subr.mxu0 0.0
          %2880 = vmatpush1.msra.mxu0 0.0
          %2881 = vmatprep.subr.mxu0 0.0
          %2882 = vmatpush1.msra.mxu0 0.0
          %2883 = vmatprep.subr.mxu0 0.0
          %2884 = vmatpush1.msra.mxu0 0.0
          %2885 = vmatprep.subr.mxu0 0.0
          %2886 = vmatpush1.msra.mxu0 0.0
          %2887 = vmatprep.subr.mxu0 0.0
          %2888 = vmatpush1.msra.mxu0 0.0
          %2889 = vmatprep.subr.mxu0 0.0
          %2890 = vmatpush1.msra.mxu0 0.0
          %2891 = vmatprep.subr.mxu0 0.0
          %2892 = vmatpush1.msra.mxu0 0.0
          %2893 = vmatprep.subr.mxu0 0.0
          %2894 = vmatpush1.msra.mxu0 0.0
          %2895 = vmatprep.subr.mxu0 0.0
          %2896 = vmatpush1.msra.mxu0 0.0
          %2897 = vmatprep.subr.mxu0 0.0
          %2898 = vmatpush1.msra.mxu0 0.0
          %2899 = vmatprep.subr.mxu0 0.0
          %2900 = vmatpush1.msra.mxu0 0.0
          %2901 = vmatprep.subr.mxu0 0.0
          %2902 = vmatpush1.msra.mxu0 0.0
          %2903 = vmatprep.subr.mxu0 0.0
          %2904 = vmatpush1.msra.mxu0 0.0
          %2905 = vmatprep.subr.mxu0 0.0
          %2906 = vmatpush1.msra.mxu0 0.0
          %2907 = vmatprep.subr.mxu0 0.0
          %2908 = vmatpush1.msra.mxu0 0.0
          %2909 = vmatprep.subr.mxu0 0.0
          %2910 = vmatpush1.msra.mxu0 0.0
          %2911 = vmatprep.subr.mxu0 0.0
          %2912 = vmatpush1.msra.mxu0 0.0
          %2913 = vmatprep.subr.mxu0 0.0
          %2914 = vmatpush1.msra.mxu0 0.0
          %2915 = vmatprep.subr.mxu0 0.0
          %2916 = vmatpush1.msra.mxu0 0.0
          %2917 = vmatprep.subr.mxu0 0.0
          %2918 = vmatpush1.msra.mxu0 0.0
          %2919 = vmatprep.subr.mxu0 0.0
          %2920 = vmatpush1.msra.mxu0 0.0
          %2921 = vmatprep.subr.mxu0 0.0
          %2922 = vmatpush1.msra.mxu0 0.0
          %2923 = vmatprep.mubr.f32.mxu0 0.0
          %v2924 = vand.u32 %v2478, 4294901760
          %2925 = vmatmul.mubr.f32.gmra.mrb[0].mxu0 %v2924
          %v2926 = vpop.f32.mrb[0].mxu0
          %v2927 = vadd.f32 %v2855, %v2926
          %v2928 = vpop.f32.mrb[0].mxu0
          %2929 = vdwg.mxu0
          %vm2930 = vcmask 529920
          %v2931 = vsel %vm2930, %v986, 0.0
          %v2932 = vrot.slane %v2931, 4
          %v2933 = vadd.f32 %v2931, %v2932
          %v2934 = vrot.slane %v2933, 2
          %v2935 = vadd.f32 %v2933, %v2934
          %v2936 = vrot.slane %v2935, 1
          %v2937 = vadd.f32 %v2935, %v2936
          %v2938 = vmax.f32 %v2937, 1.0
          %2940 = vset.pattern.permute.xlu0 64
          %2941 = vperm.xlu0 %2940, %v986
          %v2942 = vpop.permute.xlu0 %2941
          %v2944 = vmul.f32 %v2927, %v2942
          %vm2945 = vcmask 29696
          %v2946 = vsel %vm2945, %v2944, 0.0
          %v2947 = vrot.slane %v2946, 4
          %v2948 = vadd.f32 %v2946, %v2947
          %v2949 = vrot.slane %v2948, 2
          %v2950 = vadd.f32 %v2948, %v2949
          %v2951 = vrot.slane %v2950, 1
          %v2952 = vadd.f32 %v2950, %v2951
          %2954 = vset.pattern.permute.xlu0 64
          %2955 = vperm.xlu0 %2954, %v2938
          %v2956 = vpop.permute.xlu0 %2955
          %v2958 = vrcp.pop %v2956
          %v2959 = vmul.f32 %v2952, %v2958
          %v2960 = vsub.f32 %v2927, %v2959
          %vm2961 = vcmp.gt.f32.partialorder %v2937, 1.0
          %v2962 = vmul.f32 %v2942, %v2960
          %v2963 = vmul.f32 %v2962, %v2960
          %v2964 = vsel %vm2945, %v2963, 0.0
          %v2965 = vrot.slane %v2964, 4
          %v2966 = vadd.f32 %v2964, %v2965
          %v2967 = vrot.slane %v2966, 2
          %v2968 = vadd.f32 %v2966, %v2967
          %v2969 = vrot.slane %v2968, 1
          %v2970 = vadd.f32 %v2968, %v2969
          %v2971 = vsub.f32 %v2937, 1.0
          %v2972 = vmax.f32 %v2971, 1.0
          %2974 = vset.pattern.permute.xlu0 64
          %2975 = vperm.xlu0 %2974, %v2972
          %v2976 = vpop.permute.xlu0 %2975
          %v2978 = vrcp.pop %v2976
          %v2979 = vmul.f32 %v2970, %v2978
          %v2980 = vsel %vm2961, 1, 0
          %2981 = vset.pattern.permute.xlu0 64
          %2982 = vperm.xlu0 %2981, %v2980
          %v2983 = vpop.permute.xlu0 %2982
          %vm2984 = vcmp.eq.s32.totalorder %v2983, 1
          %v2985 = vsel %vm2984, %v2979, 0.0
          %v2986 = vmul.f32 %v986, %v1023
          %v2987 = vsel %vm2930, %v2986, 0.0
          %v2988 = vrot.slane %v2987, 4
          %v2989 = vadd.f32 %v2987, %v2988
          %v2990 = vrot.slane %v2989, 2
          %v2991 = vadd.f32 %v2989, %v2990
          %v2992 = vrot.slane %v2991, 1
          %v2993 = vadd.f32 %v2991, %v2992
          %v2994 = vrcp.pop %v2938
          %v2995 = vmul.f32 %v2993, %v2994
          %v2996 = vmul.f32 %v994, %v994
          %vm2997 = vcmask 259072
          %v2998 = vsel %vm2997, %v2996, 0.0
          %2999 = vadd.xlane.f32.xlu0 %v2998
          %v3000 = vpop.xlane.xlu0 %2999
          %v3001 = vrsqrt.pop %v3000
          %v3002 = vmul.f32 %v3000, %v3001
          %vm3003 = vcmp.eq.f32.partialorder %v3000, inf
          %v3004 = vsel %vm3003, %v3000, %v3002
          %vm3005 = vcmp.eq.f32.partialorder %v3000, 0.0
          %v3006 = vand.u32 %v3000, 2147483648
          %v3007 = vsel %vm3005, %v3006, %v3004
          %v3008 = vmax.f32 %v3007, 1e-07
          %v3009 = vrcp.pop %v3008
          %v3010 = vmul.f32 %v994, %v3009
          %v3012 = vsel %vm809, %v3010, 0
          %3014 = vmatprep.subr.mxu0 0.0
          %v3015 = vand.u32 %v3012, 4294901760
          %3016 = vmatpush1.xpose.msra.mxu0 %v3015
          %3017 = vmatprep.subr.mxu0 0.0
          %3018 = vmatpush1.xpose.msra.mxu0 0.0
          %3019 = vmatprep.subr.mxu0 0.0
          %3020 = vmatpush1.xpose.msra.mxu0 0.0
          %3021 = vmatprep.subr.mxu0 0.0
          %3022 = vmatpush1.xpose.msra.mxu0 0.0
          %3023 = vmatprep.subr.mxu0 0.0
          %3024 = vmatpush1.xpose.msra.mxu0 0.0
          %3025 = vmatprep.subr.mxu0 0.0
          %3026 = vmatpush1.xpose.msra.mxu0 0.0
          %3027 = vmatprep.subr.mxu0 0.0
          %3028 = vmatpush1.xpose.msra.mxu0 0.0
          %3029 = vmatprep.subr.mxu0 0.0
          %3030 = vmatpush1.xpose.msra.mxu0 0.0
          %3031 = vmatprep.subr.mxu0 0.0
          %3032 = vmatpush1.xpose.msra.mxu0 0.0
          %3033 = vmatprep.subr.mxu0 0.0
          %3034 = vmatpush1.xpose.msra.mxu0 0.0
          %3035 = vmatprep.subr.mxu0 0.0
          %3036 = vmatpush1.xpose.msra.mxu0 0.0
          %3037 = vmatprep.subr.mxu0 0.0
          %3038 = vmatpush1.xpose.msra.mxu0 0.0
          %3039 = vmatprep.subr.mxu0 0.0
          %3040 = vmatpush1.xpose.msra.mxu0 0.0
          %3041 = vmatprep.subr.mxu0 0.0
          %3042 = vmatpush1.xpose.msra.mxu0 0.0
          %3043 = vmatprep.subr.mxu0 0.0
          %3044 = vmatpush1.xpose.msra.mxu0 0.0
          %3045 = vmatprep.subr.mxu0 0.0
          %3046 = vmatpush1.xpose.msra.mxu0 0.0
          %3047 = vmatprep.subr.mxu0 0.0
          %3048 = vmatpush1.xpose.msra.mxu0 0.0
          %3049 = vmatprep.subr.mxu0 0.0
          %3050 = vmatpush1.xpose.msra.mxu0 0.0
          %3051 = vmatprep.subr.mxu0 0.0
          %3052 = vmatpush1.xpose.msra.mxu0 0.0
          %3053 = vmatprep.subr.mxu0 0.0
          %3054 = vmatpush1.xpose.msra.mxu0 0.0
          %3055 = vmatprep.subr.mxu0 0.0
          %3056 = vmatpush1.xpose.msra.mxu0 0.0
          %3057 = vmatprep.subr.mxu0 0.0
          %3058 = vmatpush1.xpose.msra.mxu0 0.0
          %3059 = vmatprep.subr.mxu0 0.0
          %3060 = vmatpush1.xpose.msra.mxu0 0.0
          %3061 = vmatprep.subr.mxu0 0.0
          %3062 = vmatpush1.xpose.msra.mxu0 0.0
          %3063 = vmatprep.subr.mxu0 0.0
          %3064 = vmatpush1.xpose.msra.mxu0 0.0
          %3065 = vmatprep.subr.mxu0 0.0
          %3066 = vmatpush1.xpose.msra.mxu0 0.0
          %3067 = vmatprep.subr.mxu0 0.0
          %3068 = vmatpush1.xpose.msra.mxu0 0.0
          %3069 = vmatprep.subr.mxu0 0.0
          %3070 = vmatpush1.xpose.msra.mxu0 0.0
          %3071 = vmatprep.subr.mxu0 0.0
          %3072 = vmatpush1.xpose.msra.mxu0 0.0
          %3073 = vmatprep.subr.mxu0 0.0
          %3074 = vmatpush1.xpose.msra.mxu0 0.0
          %3075 = vmatprep.subr.mxu0 0.0
          %3076 = vmatpush1.xpose.msra.mxu0 0.0
          %3077 = vmatprep.subr.mxu0 0.0
          %3078 = vmatpush1.xpose.msra.mxu0 0.0
          %3079 = vmatprep.mubr.f32.mxu0 0.0
          %v3080 = vand.u32 %v3012, 4294901760
          %v3081 = vsub.f32 %v3012, %v3080
          %v3082 = vand.u32 %v3081, 4294901760
          %v3083 = vsub.f32 %v3081, %v3082
          %v3084 = vand.u32 %v3083, 4294901760
          %3085 = vmatmul.mubr.f32.gmra.mrb[0].mxu0 %v3084
          %v3086 = vpop.f32.mrb[0].mxu0
          %v3087 = vadd.f32 0.0, %v3086
          %v3088 = vpop.f32.mrb[0].mxu0
          %3089 = vdwg.mxu0
          %3090 = vmatprep.subr.mxu0 0.0
          %v3091 = vand.u32 %v3012, 4294901760
          %v3092 = vsub.f32 %v3012, %v3091
          %v3093 = vand.u32 %v3092, 4294901760
          %v3094 = vsub.f32 %v3092, %v3093
          %v3095 = vand.u32 %v3094, 4294901760
          %3096 = vmatpush1.xpose.msra.mxu0 %v3095
          %3097 = vmatprep.subr.mxu0 0.0
          %3098 = vmatpush1.xpose.msra.mxu0 0.0
          %3099 = vmatprep.subr.mxu0 0.0
          %3100 = vmatpush1.xpose.msra.mxu0 0.0
          %3101 = vmatprep.subr.mxu0 0.0
          %3102 = vmatpush1.xpose.msra.mxu0 0.0
          %3103 = vmatprep.subr.mxu0 0.0
          %3104 = vmatpush1.xpose.msra.mxu0 0.0
          %3105 = vmatprep.subr.mxu0 0.0
          %3106 = vmatpush1.xpose.msra.mxu0 0.0
          %3107 = vmatprep.subr.mxu0 0.0
          %3108 = vmatpush1.xpose.msra.mxu0 0.0
          %3109 = vmatprep.subr.mxu0 0.0
          %3110 = vmatpush1.xpose.msra.mxu0 0.0
          %3111 = vmatprep.subr.mxu0 0.0
          %3112 = vmatpush1.xpose.msra.mxu0 0.0
          %3113 = vmatprep.subr.mxu0 0.0
          %3114 = vmatpush1.xpose.msra.mxu0 0.0
          %3115 = vmatprep.subr.mxu0 0.0
          %3116 = vmatpush1.xpose.msra.mxu0 0.0
          %3117 = vmatprep.subr.mxu0 0.0
          %3118 = vmatpush1.xpose.msra.mxu0 0.0
          %3119 = vmatprep.subr.mxu0 0.0
          %3120 = vmatpush1.xpose.msra.mxu0 0.0
          %3121 = vmatprep.subr.mxu0 0.0
          %3122 = vmatpush1.xpose.msra.mxu0 0.0
          %3123 = vmatprep.subr.mxu0 0.0
          %3124 = vmatpush1.xpose.msra.mxu0 0.0
          %3125 = vmatprep.subr.mxu0 0.0
          %3126 = vmatpush1.xpose.msra.mxu0 0.0
          %3127 = vmatprep.subr.mxu0 0.0
          %3128 = vmatpush1.xpose.msra.mxu0 0.0
          %3129 = vmatprep.subr.mxu0 0.0
          %3130 = vmatpush1.xpose.msra.mxu0 0.0
          %3131 = vmatprep.subr.mxu0 0.0
          %3132 = vmatpush1.xpose.msra.mxu0 0.0
          %3133 = vmatprep.subr.mxu0 0.0
          %3134 = vmatpush1.xpose.msra.mxu0 0.0
          %3135 = vmatprep.subr.mxu0 0.0
          %3136 = vmatpush1.xpose.msra.mxu0 0.0
          %3137 = vmatprep.subr.mxu0 0.0
          %3138 = vmatpush1.xpose.msra.mxu0 0.0
          %3139 = vmatprep.subr.mxu0 0.0
          %3140 = vmatpush1.xpose.msra.mxu0 0.0
          %3141 = vmatprep.subr.mxu0 0.0
          %3142 = vmatpush1.xpose.msra.mxu0 0.0
          %3143 = vmatprep.subr.mxu0 0.0
          %3144 = vmatpush1.xpose.msra.mxu0 0.0
          %3145 = vmatprep.subr.mxu0 0.0
          %3146 = vmatpush1.xpose.msra.mxu0 0.0
          %3147 = vmatprep.subr.mxu0 0.0
          %3148 = vmatpush1.xpose.msra.mxu0 0.0
          %3149 = vmatprep.subr.mxu0 0.0
          %3150 = vmatpush1.xpose.msra.mxu0 0.0
          %3151 = vmatprep.subr.mxu0 0.0
          %3152 = vmatpush1.xpose.msra.mxu0 0.0
          %3153 = vmatprep.subr.mxu0 0.0
          %3154 = vmatpush1.xpose.msra.mxu0 0.0
          %3155 = vmatprep.subr.mxu0 0.0
          %3156 = vmatpush1.xpose.msra.mxu0 0.0
          %3157 = vmatprep.subr.mxu0 0.0
          %3158 = vmatpush1.xpose.msra.mxu0 0.0
          %3159 = vmatprep.mubr.f32.mxu0 0.0
          %v3160 = vand.u32 %v3012, 4294901760
          %3161 = vmatmul.mubr.f32.gmra.mrb[0].mxu0 %v3160
          %v3162 = vpop.f32.mrb[0].mxu0
          %v3163 = vadd.f32 %v3087, %v3162
          %v3164 = vpop.f32.mrb[0].mxu0
          %3165 = vdwg.mxu0
          %3166 = vmatprep.subr.mxu0 0.0
          %v3167 = vand.u32 %v3012, 4294901760
          %v3168 = vsub.f32 %v3012, %v3167
          %3169 = vmatpush1.xpose.msra.mxu0 %v3168
          %3170 = vmatprep.subr.mxu0 0.0
          %3171 = vmatpush1.xpose.msra.mxu0 0.0
          %3172 = vmatprep.subr.mxu0 0.0
          %3173 = vmatpush1.xpose.msra.mxu0 0.0
          %3174 = vmatprep.subr.mxu0 0.0
          %3175 = vmatpush1.xpose.msra.mxu0 0.0
          %3176 = vmatprep.subr.mxu0 0.0
          %3177 = vmatpush1.xpose.msra.mxu0 0.0
          %3178 = vmatprep.subr.mxu0 0.0
          %3179 = vmatpush1.xpose.msra.mxu0 0.0
          %3180 = vmatprep.subr.mxu0 0.0
          %3181 = vmatpush1.xpose.msra.mxu0 0.0
          %3182 = vmatprep.subr.mxu0 0.0
          %3183 = vmatpush1.xpose.msra.mxu0 0.0
          %3184 = vmatprep.subr.mxu0 0.0
          %3185 = vmatpush1.xpose.msra.mxu0 0.0
          %3186 = vmatprep.subr.mxu0 0.0
          %3187 = vmatpush1.xpose.msra.mxu0 0.0
          %3188 = vmatprep.subr.mxu0 0.0
          %3189 = vmatpush1.xpose.msra.mxu0 0.0
          %3190 = vmatprep.subr.mxu0 0.0
          %3191 = vmatpush1.xpose.msra.mxu0 0.0
          %3192 = vmatprep.subr.mxu0 0.0
          %3193 = vmatpush1.xpose.msra.mxu0 0.0
          %3194 = vmatprep.subr.mxu0 0.0
          %3195 = vmatpush1.xpose.msra.mxu0 0.0
          %3196 = vmatprep.subr.mxu0 0.0
          %3197 = vmatpush1.xpose.msra.mxu0 0.0
          %3198 = vmatprep.subr.mxu0 0.0
          %3199 = vmatpush1.xpose.msra.mxu0 0.0
          %3200 = vmatprep.subr.mxu0 0.0
          %3201 = vmatpush1.xpose.msra.mxu0 0.0
          %3202 = vmatprep.subr.mxu0 0.0
          %3203 = vmatpush1.xpose.msra.mxu0 0.0
          %3204 = vmatprep.subr.mxu0 0.0
          %3205 = vmatpush1.xpose.msra.mxu0 0.0
          %3206 = vmatprep.subr.mxu0 0.0
          %3207 = vmatpush1.xpose.msra.mxu0 0.0
          %3208 = vmatprep.subr.mxu0 0.0
          %3209 = vmatpush1.xpose.msra.mxu0 0.0
          %3210 = vmatprep.subr.mxu0 0.0
          %3211 = vmatpush1.xpose.msra.mxu0 0.0
          %3212 = vmatprep.subr.mxu0 0.0
          %3213 = vmatpush1.xpose.msra.mxu0 0.0
          %3214 = vmatprep.subr.mxu0 0.0
          %3215 = vmatpush1.xpose.msra.mxu0 0.0
          %3216 = vmatprep.subr.mxu0 0.0
          %3217 = vmatpush1.xpose.msra.mxu0 0.0
          %3218 = vmatprep.subr.mxu0 0.0
          %3219 = vmatpush1.xpose.msra.mxu0 0.0
          %3220 = vmatprep.subr.mxu0 0.0
          %3221 = vmatpush1.xpose.msra.mxu0 0.0
          %3222 = vmatprep.subr.mxu0 0.0
          %3223 = vmatpush1.xpose.msra.mxu0 0.0
          %3224 = vmatprep.subr.mxu0 0.0
          %3225 = vmatpush1.xpose.msra.mxu0 0.0
          %3226 = vmatprep.subr.mxu0 0.0
          %3227 = vmatpush1.xpose.msra.mxu0 0.0
          %3228 = vmatprep.subr.mxu0 0.0
          %3229 = vmatpush1.xpose.msra.mxu0 0.0
          %3230 = vmatprep.subr.mxu0 0.0
          %3231 = vmatpush1.xpose.msra.mxu0 0.0
          %3232 = vmatprep.mubr.f32.mxu0 0.0
          %v3233 = vand.u32 %v3012, 4294901760
          %v3234 = vsub.f32 %v3012, %v3233
          %3235 = vmatmul.mubr.f32.gmra.mrb[0].mxu0 %v3234
          %v3236 = vpop.f32.mrb[0].mxu0
          %v3237 = vadd.f32 %v3163, %v3236
          %v3238 = vpop.f32.mrb[0].mxu0
          %3239 = vdwg.mxu0
          %3240 = vmatprep.subr.mxu0 0.0
          %v3241 = vand.u32 %v3012, 4294901760
          %3242 = vmatpush1.xpose.msra.mxu0 %v3241
          %3243 = vmatprep.subr.mxu0 0.0
          %3244 = vmatpush1.xpose.msra.mxu0 0.0
          %3245 = vmatprep.subr.mxu0 0.0
          %3246 = vmatpush1.xpose.msra.mxu0 0.0
          %3247 = vmatprep.subr.mxu0 0.0
          %3248 = vmatpush1.xpose.msra.mxu0 0.0
          %3249 = vmatprep.subr.mxu0 0.0
          %3250 = vmatpush1.xpose.msra.mxu0 0.0
          %3251 = vmatprep.subr.mxu0 0.0
          %3252 = vmatpush1.xpose.msra.mxu0 0.0
          %3253 = vmatprep.subr.mxu0 0.0
          %3254 = vmatpush1.xpose.msra.mxu0 0.0
          %3255 = vmatprep.subr.mxu0 0.0
          %3256 = vmatpush1.xpose.msra.mxu0 0.0
          %3257 = vmatprep.subr.mxu0 0.0
          %3258 = vmatpush1.xpose.msra.mxu0 0.0
          %3259 = vmatprep.subr.mxu0 0.0
          %3260 = vmatpush1.xpose.msra.mxu0 0.0
          %3261 = vmatprep.subr.mxu0 0.0
          %3262 = vmatpush1.xpose.msra.mxu0 0.0
          %3263 = vmatprep.subr.mxu0 0.0
          %3264 = vmatpush1.xpose.msra.mxu0 0.0
          %3265 = vmatprep.subr.mxu0 0.0
          %3266 = vmatpush1.xpose.msra.mxu0 0.0
          %3267 = vmatprep.subr.mxu0 0.0
          %3268 = vmatpush1.xpose.msra.mxu0 0.0
          %3269 = vmatprep.subr.mxu0 0.0
          %3270 = vmatpush1.xpose.msra.mxu0 0.0
          %3271 = vmatprep.subr.mxu0 0.0
          %3272 = vmatpush1.xpose.msra.mxu0 0.0
          %3273 = vmatprep.subr.mxu0 0.0
          %3274 = vmatpush1.xpose.msra.mxu0 0.0
          %3275 = vmatprep.subr.mxu0 0.0
          %3276 = vmatpush1.xpose.msra.mxu0 0.0
          %3277 = vmatprep.subr.mxu0 0.0
          %3278 = vmatpush1.xpose.msra.mxu0 0.0
          %3279 = vmatprep.subr.mxu0 0.0
          %3280 = vmatpush1.xpose.msra.mxu0 0.0
          %3281 = vmatprep.subr.mxu0 0.0
          %3282 = vmatpush1.xpose.msra.mxu0 0.0
          %3283 = vmatprep.subr.mxu0 0.0
          %3284 = vmatpush1.xpose.msra.mxu0 0.0
          %3285 = vmatprep.subr.mxu0 0.0
          %3286 = vmatpush1.xpose.msra.mxu0 0.0
          %3287 = vmatprep.subr.mxu0 0.0
          %3288 = vmatpush1.xpose.msra.mxu0 0.0
          %3289 = vmatprep.subr.mxu0 0.0
          %3290 = vmatpush1.xpose.msra.mxu0 0.0
          %3291 = vmatprep.subr.mxu0 0.0
          %3292 = vmatpush1.xpose.msra.mxu0 0.0
          %3293 = vmatprep.subr.mxu0 0.0
          %3294 = vmatpush1.xpose.msra.mxu0 0.0
          %3295 = vmatprep.subr.mxu0 0.0
          %3296 = vmatpush1.xpose.msra.mxu0 0.0
          %3297 = vmatprep.subr.mxu0 0.0
          %3298 = vmatpush1.xpose.msra.mxu0 0.0
          %3299 = vmatprep.subr.mxu0 0.0
          %3300 = vmatpush1.xpose.msra.mxu0 0.0
          %3301 = vmatprep.subr.mxu0 0.0
          %3302 = vmatpush1.xpose.msra.mxu0 0.0
          %3303 = vmatprep.subr.mxu0 0.0
          %3304 = vmatpush1.xpose.msra.mxu0 0.0
          %3305 = vmatprep.mubr.f32.mxu0 0.0
          %v3306 = vand.u32 %v3012, 4294901760
          %v3307 = vsub.f32 %v3012, %v3306
          %v3308 = vand.u32 %v3307, 4294901760
          %3309 = vmatmul.mubr.f32.gmra.mrb[0].mxu0 %v3308
          %v3310 = vpop.f32.mrb[0].mxu0
          %v3311 = vadd.f32 %v3237, %v3310
          %v3312 = vpop.f32.mrb[0].mxu0
          %3313 = vdwg.mxu0
          %3314 = vmatprep.subr.mxu0 0.0
          %v3315 = vand.u32 %v3012, 4294901760
          %v3316 = vsub.f32 %v3012, %v3315
          %v3317 = vand.u32 %v3316, 4294901760
          %3318 = vmatpush1.xpose.msra.mxu0 %v3317
          %3319 = vmatprep.subr.mxu0 0.0
          %3320 = vmatpush1.xpose.msra.mxu0 0.0
          %3321 = vmatprep.subr.mxu0 0.0
          %3322 = vmatpush1.xpose.msra.mxu0 0.0
          %3323 = vmatprep.subr.mxu0 0.0
          %3324 = vmatpush1.xpose.msra.mxu0 0.0
          %3325 = vmatprep.subr.mxu0 0.0
          %3326 = vmatpush1.xpose.msra.mxu0 0.0
          %3327 = vmatprep.subr.mxu0 0.0
          %3328 = vmatpush1.xpose.msra.mxu0 0.0
          %3329 = vmatprep.subr.mxu0 0.0
          %3330 = vmatpush1.xpose.msra.mxu0 0.0
          %3331 = vmatprep.subr.mxu0 0.0
          %3332 = vmatpush1.xpose.msra.mxu0 0.0
          %3333 = vmatprep.subr.mxu0 0.0
          %3334 = vmatpush1.xpose.msra.mxu0 0.0
          %3335 = vmatprep.subr.mxu0 0.0
          %3336 = vmatpush1.xpose.msra.mxu0 0.0
          %3337 = vmatprep.subr.mxu0 0.0
          %3338 = vmatpush1.xpose.msra.mxu0 0.0
          %3339 = vmatprep.subr.mxu0 0.0
          %3340 = vmatpush1.xpose.msra.mxu0 0.0
          %3341 = vmatprep.subr.mxu0 0.0
          %3342 = vmatpush1.xpose.msra.mxu0 0.0
          %3343 = vmatprep.subr.mxu0 0.0
          %3344 = vmatpush1.xpose.msra.mxu0 0.0
          %3345 = vmatprep.subr.mxu0 0.0
          %3346 = vmatpush1.xpose.msra.mxu0 0.0
          %3347 = vmatprep.subr.mxu0 0.0
          %3348 = vmatpush1.xpose.msra.mxu0 0.0
          %3349 = vmatprep.subr.mxu0 0.0
          %3350 = vmatpush1.xpose.msra.mxu0 0.0
          %3351 = vmatprep.subr.mxu0 0.0
          %3352 = vmatpush1.xpose.msra.mxu0 0.0
          %3353 = vmatprep.subr.mxu0 0.0
          %3354 = vmatpush1.xpose.msra.mxu0 0.0
          %3355 = vmatprep.subr.mxu0 0.0
          %3356 = vmatpush1.xpose.msra.mxu0 0.0
          %3357 = vmatprep.subr.mxu0 0.0
          %3358 = vmatpush1.xpose.msra.mxu0 0.0
          %3359 = vmatprep.subr.mxu0 0.0
          %3360 = vmatpush1.xpose.msra.mxu0 0.0
          %3361 = vmatprep.subr.mxu0 0.0
          %3362 = vmatpush1.xpose.msra.mxu0 0.0
          %3363 = vmatprep.subr.mxu0 0.0
          %3364 = vmatpush1.xpose.msra.mxu0 0.0
          %3365 = vmatprep.subr.mxu0 0.0
          %3366 = vmatpush1.xpose.msra.mxu0 0.0
          %3367 = vmatprep.subr.mxu0 0.0
          %3368 = vmatpush1.xpose.msra.mxu0 0.0
          %3369 = vmatprep.subr.mxu0 0.0
          %3370 = vmatpush1.xpose.msra.mxu0 0.0
          %3371 = vmatprep.subr.mxu0 0.0
          %3372 = vmatpush1.xpose.msra.mxu0 0.0
          %3373 = vmatprep.subr.mxu0 0.0
          %3374 = vmatpush1.xpose.msra.mxu0 0.0
          %3375 = vmatprep.subr.mxu0 0.0
          %3376 = vmatpush1.xpose.msra.mxu0 0.0
          %3377 = vmatprep.subr.mxu0 0.0
          %3378 = vmatpush1.xpose.msra.mxu0 0.0
          %3379 = vmatprep.subr.mxu0 0.0
          %3380 = vmatpush1.xpose.msra.mxu0 0.0
          %3381 = vmatprep.mubr.f32.mxu0 0.0
          %v3382 = vand.u32 %v3012, 4294901760
          %3383 = vmatmul.mubr.f32.gmra.mrb[0].mxu0 %v3382
          %v3384 = vpop.f32.mrb[0].mxu0
          %v3385 = vadd.f32 %v3311, %v3384
          %v3386 = vpop.f32.mrb[0].mxu0
          %3387 = vdwg.mxu0
          %3388 = vmatprep.subr.mxu0 0.0
          %v3389 = vand.u32 %v3012, 4294901760
          %3390 = vmatpush1.xpose.msra.mxu0 %v3389
          %3391 = vmatprep.subr.mxu0 0.0
          %3392 = vmatpush1.xpose.msra.mxu0 0.0
          %3393 = vmatprep.subr.mxu0 0.0
          %3394 = vmatpush1.xpose.msra.mxu0 0.0
          %3395 = vmatprep.subr.mxu0 0.0
          %3396 = vmatpush1.xpose.msra.mxu0 0.0
          %3397 = vmatprep.subr.mxu0 0.0
          %3398 = vmatpush1.xpose.msra.mxu0 0.0
          %3399 = vmatprep.subr.mxu0 0.0
          %3400 = vmatpush1.xpose.msra.mxu0 0.0
          %3401 = vmatprep.subr.mxu0 0.0
          %3402 = vmatpush1.xpose.msra.mxu0 0.0
          %3403 = vmatprep.subr.mxu0 0.0
          %3404 = vmatpush1.xpose.msra.mxu0 0.0
          %3405 = vmatprep.subr.mxu0 0.0
          %3406 = vmatpush1.xpose.msra.mxu0 0.0
          %3407 = vmatprep.subr.mxu0 0.0
          %3408 = vmatpush1.xpose.msra.mxu0 0.0
          %3409 = vmatprep.subr.mxu0 0.0
          %3410 = vmatpush1.xpose.msra.mxu0 0.0
          %3411 = vmatprep.subr.mxu0 0.0
          %3412 = vmatpush1.xpose.msra.mxu0 0.0
          %3413 = vmatprep.subr.mxu0 0.0
          %3414 = vmatpush1.xpose.msra.mxu0 0.0
          %3415 = vmatprep.subr.mxu0 0.0
          %3416 = vmatpush1.xpose.msra.mxu0 0.0
          %3417 = vmatprep.subr.mxu0 0.0
          %3418 = vmatpush1.xpose.msra.mxu0 0.0
          %3419 = vmatprep.subr.mxu0 0.0
          %3420 = vmatpush1.xpose.msra.mxu0 0.0
          %3421 = vmatprep.subr.mxu0 0.0
          %3422 = vmatpush1.xpose.msra.mxu0 0.0
          %3423 = vmatprep.subr.mxu0 0.0
          %3424 = vmatpush1.xpose.msra.mxu0 0.0
          %3425 = vmatprep.subr.mxu0 0.0
          %3426 = vmatpush1.xpose.msra.mxu0 0.0
          %3427 = vmatprep.subr.mxu0 0.0
          %3428 = vmatpush1.xpose.msra.mxu0 0.0
          %3429 = vmatprep.subr.mxu0 0.0
          %3430 = vmatpush1.xpose.msra.mxu0 0.0
          %3431 = vmatprep.subr.mxu0 0.0
          %3432 = vmatpush1.xpose.msra.mxu0 0.0
          %3433 = vmatprep.subr.mxu0 0.0
          %3434 = vmatpush1.xpose.msra.mxu0 0.0
          %3435 = vmatprep.subr.mxu0 0.0
          %3436 = vmatpush1.xpose.msra.mxu0 0.0
          %3437 = vmatprep.subr.mxu0 0.0
          %3438 = vmatpush1.xpose.msra.mxu0 0.0
          %3439 = vmatprep.subr.mxu0 0.0
          %3440 = vmatpush1.xpose.msra.mxu0 0.0
          %3441 = vmatprep.subr.mxu0 0.0
          %3442 = vmatpush1.xpose.msra.mxu0 0.0
          %3443 = vmatprep.subr.mxu0 0.0
          %3444 = vmatpush1.xpose.msra.mxu0 0.0
          %3445 = vmatprep.subr.mxu0 0.0
          %3446 = vmatpush1.xpose.msra.mxu0 0.0
          %3447 = vmatprep.subr.mxu0 0.0
          %3448 = vmatpush1.xpose.msra.mxu0 0.0
          %3449 = vmatprep.subr.mxu0 0.0
          %3450 = vmatpush1.xpose.msra.mxu0 0.0
          %3451 = vmatprep.subr.mxu0 0.0
          %3452 = vmatpush1.xpose.msra.mxu0 0.0
          %3453 = vmatprep.mubr.f32.mxu0 0.0
          %v3454 = vand.u32 %v3012, 4294901760
          %3455 = vmatmul.mubr.f32.gmra.mrb[0].mxu0 %v3454
          %v3456 = vpop.f32.mrb[0].mxu0
          %v3457 = vadd.f32 %v3385, %v3456
          %v3458 = vpop.f32.mrb[0].mxu0
          %3459 = vdwg.mxu0
          %vm3460 = vcmp.gt.s32.totalorder %v518, %v516
          %v3461 = vsel %vm3460, 1, 0
          %v3462 = vcvt.s32.f32 %v3461
          %vm3463 = vcmp.gt.s32.totalorder %v516, %v518
          %v3464 = vsel %vm3463, 1, 0
          %v3465 = vcvt.s32.f32 %v3464
          %3466 = vrot.lane.b32.xlu0 %v986, 64
          %v3467 = vpop.permute.xlu0 %3466
          %vm3468 = vcmask 48128
          %v3470 = vsel %vm3468, %v3465, 0
          %vm3472 = vcmask 1045504
          %v3473 = vsel %vm3472, %v3467, 0
          %3475 = vmatprep.subr.mxu0 0.0
          %v3476 = vand.u32 %v3473, 4294901760
          %3477 = vmatpush1.msra.mxu0 %v3476
          %3478 = vmatprep.subr.mxu0 0.0
          %3479 = vmatpush1.msra.mxu0 0.0
          %3480 = vmatprep.subr.mxu0 0.0
          %3481 = vmatpush1.msra.mxu0 0.0
          %3482 = vmatprep.subr.mxu0 0.0
          %3483 = vmatpush1.msra.mxu0 0.0
          %3484 = vmatprep.subr.mxu0 0.0
          %3485 = vmatpush1.msra.mxu0 0.0
          %3486 = vmatprep.subr.mxu0 0.0
          %3487 = vmatpush1.msra.mxu0 0.0
          %3488 = vmatprep.subr.mxu0 0.0
          %3489 = vmatpush1.msra.mxu0 0.0
          %3490 = vmatprep.subr.mxu0 0.0
          %3491 = vmatpush1.msra.mxu0 0.0
          %3492 = vmatprep.subr.mxu0 0.0
          %3493 = vmatpush1.msra.mxu0 0.0
          %3494 = vmatprep.subr.mxu0 0.0
          %3495 = vmatpush1.msra.mxu0 0.0
          %3496 = vmatprep.subr.mxu0 0.0
          %3497 = vmatpush1.msra.mxu0 0.0
          %3498 = vmatprep.subr.mxu0 0.0
          %3499 = vmatpush1.msra.mxu0 0.0
          %3500 = vmatprep.subr.mxu0 0.0
          %3501 = vmatpush1.msra.mxu0 0.0
          %3502 = vmatprep.subr.mxu0 0.0
          %3503 = vmatpush1.msra.mxu0 0.0
          %3504 = vmatprep.subr.mxu0 0.0
          %3505 = vmatpush1.msra.mxu0 0.0
          %3506 = vmatprep.subr.mxu0 0.0
          %3507 = vmatpush1.msra.mxu0 0.0
          %3508 = vmatprep.subr.mxu0 0.0
          %3509 = vmatpush1.msra.mxu0 0.0
          %3510 = vmatprep.subr.mxu0 0.0
          %3511 = vmatpush1.msra.mxu0 0.0
          %3512 = vmatprep.subr.mxu0 0.0
          %3513 = vmatpush1.msra.mxu0 0.0
          %3514 = vmatprep.subr.mxu0 0.0
          %3515 = vmatpush1.msra.mxu0 0.0
          %3516 = vmatprep.subr.mxu0 0.0
          %3517 = vmatpush1.msra.mxu0 0.0
          %3518 = vmatprep.subr.mxu0 0.0
          %3519 = vmatpush1.msra.mxu0 0.0
          %3520 = vmatprep.subr.mxu0 0.0
          %3521 = vmatpush1.msra.mxu0 0.0
          %3522 = vmatprep.subr.mxu0 0.0
          %3523 = vmatpush1.msra.mxu0 0.0
          %3524 = vmatprep.subr.mxu0 0.0
          %3525 = vmatpush1.msra.mxu0 0.0
          %3526 = vmatprep.subr.mxu0 0.0
          %3527 = vmatpush1.msra.mxu0 0.0
          %3528 = vmatprep.subr.mxu0 0.0
          %3529 = vmatpush1.msra.mxu0 0.0
          %3530 = vmatprep.subr.mxu0 0.0
          %3531 = vmatpush1.msra.mxu0 0.0
          %3532 = vmatprep.subr.mxu0 0.0
          %3533 = vmatpush1.msra.mxu0 0.0
          %3534 = vmatprep.subr.mxu0 0.0
          %3535 = vmatpush1.msra.mxu0 0.0
          %3536 = vmatprep.subr.mxu0 0.0
          %3537 = vmatpush1.msra.mxu0 0.0
          %3538 = vmatprep.subr.mxu0 0.0
          %3539 = vmatpush1.msra.mxu0 0.0
          %3540 = vmatprep.mubr.f32.mxu0 0.0
          %v3541 = vand.u32 %v3470, 4294901760
          %v3542 = vsub.f32 %v3470, %v3541
          %v3543 = vand.u32 %v3542, 4294901760
          %v3544 = vsub.f32 %v3542, %v3543
          %v3545 = vand.u32 %v3544, 4294901760
          %3546 = vmatmul.mubr.f32.gmra.mrb[0].mxu0 %v3545
          %v3547 = vpop.f32.mrb[0].mxu0
          %v3548 = vadd.f32 0.0, %v3547
          %v3549 = vpop.f32.mrb[0].mxu0
          %3550 = vdwg.mxu0
          %3551 = vmatprep.subr.mxu0 0.0
          %v3552 = vand.u32 %v3473, 4294901760
          %v3553 = vsub.f32 %v3473, %v3552
          %v3554 = vand.u32 %v3553, 4294901760
          %v3555 = vsub.f32 %v3553, %v3554
          %v3556 = vand.u32 %v3555, 4294901760
          %3557 = vmatpush1.msra.mxu0 %v3556
          %3558 = vmatprep.subr.mxu0 0.0
          %3559 = vmatpush1.msra.mxu0 0.0
          %3560 = vmatprep.subr.mxu0 0.0
          %3561 = vmatpush1.msra.mxu0 0.0
          %3562 = vmatprep.subr.mxu0 0.0
          %3563 = vmatpush1.msra.mxu0 0.0
          %3564 = vmatprep.subr.mxu0 0.0
          %3565 = vmatpush1.msra.mxu0 0.0
          %3566 = vmatprep.subr.mxu0 0.0
          %3567 = vmatpush1.msra.mxu0 0.0
          %3568 = vmatprep.subr.mxu0 0.0
          %3569 = vmatpush1.msra.mxu0 0.0
          %3570 = vmatprep.subr.mxu0 0.0
          %3571 = vmatpush1.msra.mxu0 0.0
          %3572 = vmatprep.subr.mxu0 0.0
          %3573 = vmatpush1.msra.mxu0 0.0
          %3574 = vmatprep.subr.mxu0 0.0
          %3575 = vmatpush1.msra.mxu0 0.0
          %3576 = vmatprep.subr.mxu0 0.0
          %3577 = vmatpush1.msra.mxu0 0.0
          %3578 = vmatprep.subr.mxu0 0.0
          %3579 = vmatpush1.msra.mxu0 0.0
          %3580 = vmatprep.subr.mxu0 0.0
          %3581 = vmatpush1.msra.mxu0 0.0
          %3582 = vmatprep.subr.mxu0 0.0
          %3583 = vmatpush1.msra.mxu0 0.0
          %3584 = vmatprep.subr.mxu0 0.0
          %3585 = vmatpush1.msra.mxu0 0.0
          %3586 = vmatprep.subr.mxu0 0.0
          %3587 = vmatpush1.msra.mxu0 0.0
          %3588 = vmatprep.subr.mxu0 0.0
          %3589 = vmatpush1.msra.mxu0 0.0
          %3590 = vmatprep.subr.mxu0 0.0
          %3591 = vmatpush1.msra.mxu0 0.0
          %3592 = vmatprep.subr.mxu0 0.0
          %3593 = vmatpush1.msra.mxu0 0.0
          %3594 = vmatprep.subr.mxu0 0.0
          %3595 = vmatpush1.msra.mxu0 0.0
          %3596 = vmatprep.subr.mxu0 0.0
          %3597 = vmatpush1.msra.mxu0 0.0
          %3598 = vmatprep.subr.mxu0 0.0
          %3599 = vmatpush1.msra.mxu0 0.0
          %3600 = vmatprep.subr.mxu0 0.0
          %3601 = vmatpush1.msra.mxu0 0.0
          %3602 = vmatprep.subr.mxu0 0.0
          %3603 = vmatpush1.msra.mxu0 0.0
          %3604 = vmatprep.subr.mxu0 0.0
          %3605 = vmatpush1.msra.mxu0 0.0
          %3606 = vmatprep.subr.mxu0 0.0
          %3607 = vmatpush1.msra.mxu0 0.0
          %3608 = vmatprep.subr.mxu0 0.0
          %3609 = vmatpush1.msra.mxu0 0.0
          %3610 = vmatprep.subr.mxu0 0.0
          %3611 = vmatpush1.msra.mxu0 0.0
          %3612 = vmatprep.subr.mxu0 0.0
          %3613 = vmatpush1.msra.mxu0 0.0
          %3614 = vmatprep.subr.mxu0 0.0
          %3615 = vmatpush1.msra.mxu0 0.0
          %3616 = vmatprep.subr.mxu0 0.0
          %3617 = vmatpush1.msra.mxu0 0.0
          %3618 = vmatprep.subr.mxu0 0.0
          %3619 = vmatpush1.msra.mxu0 0.0
          %3620 = vmatprep.mubr.f32.mxu0 0.0
          %v3621 = vand.u32 %v3470, 4294901760
          %3622 = vmatmul.mubr.f32.gmra.mrb[0].mxu0 %v3621
          %v3623 = vpop.f32.mrb[0].mxu0
          %v3624 = vadd.f32 %v3548, %v3623
          %v3625 = vpop.f32.mrb[0].mxu0
          %3626 = vdwg.mxu0
          %3627 = vmatprep.subr.mxu0 0.0
          %v3628 = vand.u32 %v3473, 4294901760
          %v3629 = vsub.f32 %v3473, %v3628
          %3630 = vmatpush1.msra.mxu0 %v3629
          %3631 = vmatprep.subr.mxu0 0.0
          %3632 = vmatpush1.msra.mxu0 0.0
          %3633 = vmatprep.subr.mxu0 0.0
          %3634 = vmatpush1.msra.mxu0 0.0
          %3635 = vmatprep.subr.mxu0 0.0
          %3636 = vmatpush1.msra.mxu0 0.0
          %3637 = vmatprep.subr.mxu0 0.0
          %3638 = vmatpush1.msra.mxu0 0.0
          %3639 = vmatprep.subr.mxu0 0.0
          %3640 = vmatpush1.msra.mxu0 0.0
          %3641 = vmatprep.subr.mxu0 0.0
          %3642 = vmatpush1.msra.mxu0 0.0
          %3643 = vmatprep.subr.mxu0 0.0
          %3644 = vmatpush1.msra.mxu0 0.0
          %3645 = vmatprep.subr.mxu0 0.0
          %3646 = vmatpush1.msra.mxu0 0.0
          %3647 = vmatprep.subr.mxu0 0.0
          %3648 = vmatpush1.msra.mxu0 0.0
          %3649 = vmatprep.subr.mxu0 0.0
          %3650 = vmatpush1.msra.mxu0 0.0
          %3651 = vmatprep.subr.mxu0 0.0
          %3652 = vmatpush1.msra.mxu0 0.0
          %3653 = vmatprep.subr.mxu0 0.0
          %3654 = vmatpush1.msra.mxu0 0.0
          %3655 = vmatprep.subr.mxu0 0.0
          %3656 = vmatpush1.msra.mxu0 0.0
          %3657 = vmatprep.subr.mxu0 0.0
          %3658 = vmatpush1.msra.mxu0 0.0
          %3659 = vmatprep.subr.mxu0 0.0
          %3660 = vmatpush1.msra.mxu0 0.0
          %3661 = vmatprep.subr.mxu0 0.0
          %3662 = vmatpush1.msra.mxu0 0.0
          %3663 = vmatprep.subr.mxu0 0.0
          %3664 = vmatpush1.msra.mxu0 0.0
          %3665 = vmatprep.subr.mxu0 0.0
          %3666 = vmatpush1.msra.mxu0 0.0
          %3667 = vmatprep.subr.mxu0 0.0
          %3668 = vmatpush1.msra.mxu0 0.0
          %3669 = vmatprep.subr.mxu0 0.0
          %3670 = vmatpush1.msra.mxu0 0.0
          %3671 = vmatprep.subr.mxu0 0.0
          %3672 = vmatpush1.msra.mxu0 0.0
          %3673 = vmatprep.subr.mxu0 0.0
          %3674 = vmatpush1.msra.mxu0 0.0
          %3675 = vmatprep.subr.mxu0 0.0
          %3676 = vmatpush1.msra.mxu0 0.0
          %3677 = vmatprep.subr.mxu0 0.0
          %3678 = vmatpush1.msra.mxu0 0.0
          %3679 = vmatprep.subr.mxu0 0.0
          %3680 = vmatpush1.msra.mxu0 0.0
          %3681 = vmatprep.subr.mxu0 0.0
          %3682 = vmatpush1.msra.mxu0 0.0
          %3683 = vmatprep.subr.mxu0 0.0
          %3684 = vmatpush1.msra.mxu0 0.0
          %3685 = vmatprep.subr.mxu0 0.0
          %3686 = vmatpush1.msra.mxu0 0.0
          %3687 = vmatprep.subr.mxu0 0.0
          %3688 = vmatpush1.msra.mxu0 0.0
          %3689 = vmatprep.subr.mxu0 0.0
          %3690 = vmatpush1.msra.mxu0 0.0
          %3691 = vmatprep.subr.mxu0 0.0
          %3692 = vmatpush1.msra.mxu0 0.0
          %3693 = vmatprep.mubr.f32.mxu0 0.0
          %v3694 = vand.u32 %v3470, 4294901760
          %v3695 = vsub.f32 %v3470, %v3694
          %3696 = vmatmul.mubr.f32.gmra.mrb[0].mxu0 %v3695
          %v3697 = vpop.f32.mrb[0].mxu0
          %v3698 = vadd.f32 %v3624, %v3697
          %v3699 = vpop.f32.mrb[0].mxu0
          %3700 = vdwg.mxu0
          %3701 = vmatprep.subr.mxu0 0.0
          %v3702 = vand.u32 %v3473, 4294901760
          %3703 = vmatpush1.msra.mxu0 %v3702
          %3704 = vmatprep.subr.mxu0 0.0
          %3705 = vmatpush1.msra.mxu0 0.0
          %3706 = vmatprep.subr.mxu0 0.0
          %3707 = vmatpush1.msra.mxu0 0.0
          %3708 = vmatprep.subr.mxu0 0.0
          %3709 = vmatpush1.msra.mxu0 0.0
          %3710 = vmatprep.subr.mxu0 0.0
          %3711 = vmatpush1.msra.mxu0 0.0
          %3712 = vmatprep.subr.mxu0 0.0
          %3713 = vmatpush1.msra.mxu0 0.0
          %3714 = vmatprep.subr.mxu0 0.0
          %3715 = vmatpush1.msra.mxu0 0.0
          %3716 = vmatprep.subr.mxu0 0.0
          %3717 = vmatpush1.msra.mxu0 0.0
          %3718 = vmatprep.subr.mxu0 0.0
          %3719 = vmatpush1.msra.mxu0 0.0
          %3720 = vmatprep.subr.mxu0 0.0
          %3721 = vmatpush1.msra.mxu0 0.0
          %3722 = vmatprep.subr.mxu0 0.0
          %3723 = vmatpush1.msra.mxu0 0.0
          %3724 = vmatprep.subr.mxu0 0.0
          %3725 = vmatpush1.msra.mxu0 0.0
          %3726 = vmatprep.subr.mxu0 0.0
          %3727 = vmatpush1.msra.mxu0 0.0
          %3728 = vmatprep.subr.mxu0 0.0
          %3729 = vmatpush1.msra.mxu0 0.0
          %3730 = vmatprep.subr.mxu0 0.0
          %3731 = vmatpush1.msra.mxu0 0.0
          %3732 = vmatprep.subr.mxu0 0.0
          %3733 = vmatpush1.msra.mxu0 0.0
          %3734 = vmatprep.subr.mxu0 0.0
          %3735 = vmatpush1.msra.mxu0 0.0
          %3736 = vmatprep.subr.mxu0 0.0
          %3737 = vmatpush1.msra.mxu0 0.0
          %3738 = vmatprep.subr.mxu0 0.0
          %3739 = vmatpush1.msra.mxu0 0.0
          %3740 = vmatprep.subr.mxu0 0.0
          %3741 = vmatpush1.msra.mxu0 0.0
          %3742 = vmatprep.subr.mxu0 0.0
          %3743 = vmatpush1.msra.mxu0 0.0
          %3744 = vmatprep.subr.mxu0 0.0
          %3745 = vmatpush1.msra.mxu0 0.0
          %3746 = vmatprep.subr.mxu0 0.0
          %3747 = vmatpush1.msra.mxu0 0.0
          %3748 = vmatprep.subr.mxu0 0.0
          %3749 = vmatpush1.msra.mxu0 0.0
          %3750 = vmatprep.subr.mxu0 0.0
          %3751 = vmatpush1.msra.mxu0 0.0
          %3752 = vmatprep.subr.mxu0 0.0
          %3753 = vmatpush1.msra.mxu0 0.0
          %3754 = vmatprep.subr.mxu0 0.0
          %3755 = vmatpush1.msra.mxu0 0.0
          %3756 = vmatprep.subr.mxu0 0.0
          %3757 = vmatpush1.msra.mxu0 0.0
          %3758 = vmatprep.subr.mxu0 0.0
          %3759 = vmatpush1.msra.mxu0 0.0
          %3760 = vmatprep.subr.mxu0 0.0
          %3761 = vmatpush1.msra.mxu0 0.0
          %3762 = vmatprep.subr.mxu0 0.0
          %3763 = vmatpush1.msra.mxu0 0.0
          %3764 = vmatprep.subr.mxu0 0.0
          %3765 = vmatpush1.msra.mxu0 0.0
          %3766 = vmatprep.mubr.f32.mxu0 0.0
          %v3767 = vand.u32 %v3470, 4294901760
          %v3768 = vsub.f32 %v3470, %v3767
          %v3769 = vand.u32 %v3768, 4294901760
          %3770 = vmatmul.mubr.f32.gmra.mrb[0].mxu0 %v3769
          %v3771 = vpop.f32.mrb[0].mxu0
          %v3772 = vadd.f32 %v3698, %v3771
          %v3773 = vpop.f32.mrb[0].mxu0
          %3774 = vdwg.mxu0
          %3775 = vmatprep.subr.mxu0 0.0
          %v3776 = vand.u32 %v3473, 4294901760
          %v3777 = vsub.f32 %v3473, %v3776
          %v3778 = vand.u32 %v3777, 4294901760
          %3779 = vmatpush1.msra.mxu0 %v3778
          %3780 = vmatprep.subr.mxu0 0.0
          %3781 = vmatpush1.msra.mxu0 0.0
          %3782 = vmatprep.subr.mxu0 0.0
          %3783 = vmatpush1.msra.mxu0 0.0
          %3784 = vmatprep.subr.mxu0 0.0
          %3785 = vmatpush1.msra.mxu0 0.0
          %3786 = vmatprep.subr.mxu0 0.0
          %3787 = vmatpush1.msra.mxu0 0.0
          %3788 = vmatprep.subr.mxu0 0.0
          %3789 = vmatpush1.msra.mxu0 0.0
          %3790 = vmatprep.subr.mxu0 0.0
          %3791 = vmatpush1.msra.mxu0 0.0
          %3792 = vmatprep.subr.mxu0 0.0
          %3793 = vmatpush1.msra.mxu0 0.0
          %3794 = vmatprep.subr.mxu0 0.0
          %3795 = vmatpush1.msra.mxu0 0.0
          %3796 = vmatprep.subr.mxu0 0.0
          %3797 = vmatpush1.msra.mxu0 0.0
          %3798 = vmatprep.subr.mxu0 0.0
          %3799 = vmatpush1.msra.mxu0 0.0
          %3800 = vmatprep.subr.mxu0 0.0
          %3801 = vmatpush1.msra.mxu0 0.0
          %3802 = vmatprep.subr.mxu0 0.0
          %3803 = vmatpush1.msra.mxu0 0.0
          %3804 = vmatprep.subr.mxu0 0.0
          %3805 = vmatpush1.msra.mxu0 0.0
          %3806 = vmatprep.subr.mxu0 0.0
          %3807 = vmatpush1.msra.mxu0 0.0
          %3808 = vmatprep.subr.mxu0 0.0
          %3809 = vmatpush1.msra.mxu0 0.0
          %3810 = vmatprep.subr.mxu0 0.0
          %3811 = vmatpush1.msra.mxu0 0.0
          %3812 = vmatprep.subr.mxu0 0.0
          %3813 = vmatpush1.msra.mxu0 0.0
          %3814 = vmatprep.subr.mxu0 0.0
          %3815 = vmatpush1.msra.mxu0 0.0
          %3816 = vmatprep.subr.mxu0 0.0
          %3817 = vmatpush1.msra.mxu0 0.0
          %3818 = vmatprep.subr.mxu0 0.0
          %3819 = vmatpush1.msra.mxu0 0.0
          %3820 = vmatprep.subr.mxu0 0.0
          %3821 = vmatpush1.msra.mxu0 0.0
          %3822 = vmatprep.subr.mxu0 0.0
          %3823 = vmatpush1.msra.mxu0 0.0
          %3824 = vmatprep.subr.mxu0 0.0
          %3825 = vmatpush1.msra.mxu0 0.0
          %3826 = vmatprep.subr.mxu0 0.0
          %3827 = vmatpush1.msra.mxu0 0.0
          %3828 = vmatprep.subr.mxu0 0.0
          %3829 = vmatpush1.msra.mxu0 0.0
          %3830 = vmatprep.subr.mxu0 0.0
          %3831 = vmatpush1.msra.mxu0 0.0
          %3832 = vmatprep.subr.mxu0 0.0
          %3833 = vmatpush1.msra.mxu0 0.0
          %3834 = vmatprep.subr.mxu0 0.0
          %3835 = vmatpush1.msra.mxu0 0.0
          %3836 = vmatprep.subr.mxu0 0.0
          %3837 = vmatpush1.msra.mxu0 0.0
          %3838 = vmatprep.subr.mxu0 0.0
          %3839 = vmatpush1.msra.mxu0 0.0
          %3840 = vmatprep.subr.mxu0 0.0
          %3841 = vmatpush1.msra.mxu0 0.0
          %3842 = vmatprep.mubr.f32.mxu0 0.0
          %v3843 = vand.u32 %v3470, 4294901760
          %3844 = vmatmul.mubr.f32.gmra.mrb[0].mxu0 %v3843
          %v3845 = vpop.f32.mrb[0].mxu0
          %v3846 = vadd.f32 %v3772, %v3845
          %v3847 = vpop.f32.mrb[0].mxu0
          %3848 = vdwg.mxu0
          %3849 = vmatprep.subr.mxu0 0.0
          %v3850 = vand.u32 %v3473, 4294901760
          %3851 = vmatpush1.msra.mxu0 %v3850
          %3852 = vmatprep.subr.mxu0 0.0
          %3853 = vmatpush1.msra.mxu0 0.0
          %3854 = vmatprep.subr.mxu0 0.0
          %3855 = vmatpush1.msra.mxu0 0.0
          %3856 = vmatprep.subr.mxu0 0.0
          %3857 = vmatpush1.msra.mxu0 0.0
          %3858 = vmatprep.subr.mxu0 0.0
          %3859 = vmatpush1.msra.mxu0 0.0
          %3860 = vmatprep.subr.mxu0 0.0
          %3861 = vmatpush1.msra.mxu0 0.0
          %3862 = vmatprep.subr.mxu0 0.0
          %3863 = vmatpush1.msra.mxu0 0.0
          %3864 = vmatprep.subr.mxu0 0.0
          %3865 = vmatpush1.msra.mxu0 0.0
          %3866 = vmatprep.subr.mxu0 0.0
          %3867 = vmatpush1.msra.mxu0 0.0
          %3868 = vmatprep.subr.mxu0 0.0
          %3869 = vmatpush1.msra.mxu0 0.0
          %3870 = vmatprep.subr.mxu0 0.0
          %3871 = vmatpush1.msra.mxu0 0.0
          %3872 = vmatprep.subr.mxu0 0.0
          %3873 = vmatpush1.msra.mxu0 0.0
          %3874 = vmatprep.subr.mxu0 0.0
          %3875 = vmatpush1.msra.mxu0 0.0
          %3876 = vmatprep.subr.mxu0 0.0
          %3877 = vmatpush1.msra.mxu0 0.0
          %3878 = vmatprep.subr.mxu0 0.0
          %3879 = vmatpush1.msra.mxu0 0.0
          %3880 = vmatprep.subr.mxu0 0.0
          %3881 = vmatpush1.msra.mxu0 0.0
          %3882 = vmatprep.subr.mxu0 0.0
          %3883 = vmatpush1.msra.mxu0 0.0
          %3884 = vmatprep.subr.mxu0 0.0
          %3885 = vmatpush1.msra.mxu0 0.0
          %3886 = vmatprep.subr.mxu0 0.0
          %3887 = vmatpush1.msra.mxu0 0.0
          %3888 = vmatprep.subr.mxu0 0.0
          %3889 = vmatpush1.msra.mxu0 0.0
          %3890 = vmatprep.subr.mxu0 0.0
          %3891 = vmatpush1.msra.mxu0 0.0
          %3892 = vmatprep.subr.mxu0 0.0
          %3893 = vmatpush1.msra.mxu0 0.0
          %3894 = vmatprep.subr.mxu0 0.0
          %3895 = vmatpush1.msra.mxu0 0.0
          %3896 = vmatprep.subr.mxu0 0.0
          %3897 = vmatpush1.msra.mxu0 0.0
          %3898 = vmatprep.subr.mxu0 0.0
          %3899 = vmatpush1.msra.mxu0 0.0
          %3900 = vmatprep.subr.mxu0 0.0
          %3901 = vmatpush1.msra.mxu0 0.0
          %3902 = vmatprep.subr.mxu0 0.0
          %3903 = vmatpush1.msra.mxu0 0.0
          %3904 = vmatprep.subr.mxu0 0.0
          %3905 = vmatpush1.msra.mxu0 0.0
          %3906 = vmatprep.subr.mxu0 0.0
          %3907 = vmatpush1.msra.mxu0 0.0
          %3908 = vmatprep.subr.mxu0 0.0
          %3909 = vmatpush1.msra.mxu0 0.0
          %3910 = vmatprep.subr.mxu0 0.0
          %3911 = vmatpush1.msra.mxu0 0.0
          %3912 = vmatprep.subr.mxu0 0.0
          %3913 = vmatpush1.msra.mxu0 0.0
          %3914 = vmatprep.mubr.f32.mxu0 0.0
          %v3915 = vand.u32 %v3470, 4294901760
          %3916 = vmatmul.mubr.f32.gmra.mrb[0].mxu0 %v3915
          %v3917 = vpop.f32.mrb[0].mxu0
          %v3918 = vadd.f32 %v3846, %v3917
          %v3919 = vpop.f32.mrb[0].mxu0
          %3920 = vdwg.mxu0
          %v3921 = vmul.f32 %v3462, %v3457
          %v3923 = vsel %vm3468, %v3921, 0
          %3925 = vmatprep.subr.mxu0 0.0
          %v3926 = vand.u32 %v3473, 4294901760
          %3927 = vmatpush1.msra.mxu0 %v3926
          %3928 = vmatprep.subr.mxu0 0.0
          %3929 = vmatpush1.msra.mxu0 0.0
          %3930 = vmatprep.subr.mxu0 0.0
          %3931 = vmatpush1.msra.mxu0 0.0
          %3932 = vmatprep.subr.mxu0 0.0
          %3933 = vmatpush1.msra.mxu0 0.0
          %3934 = vmatprep.subr.mxu0 0.0
          %3935 = vmatpush1.msra.mxu0 0.0
          %3936 = vmatprep.subr.mxu0 0.0
          %3937 = vmatpush1.msra.mxu0 0.0
          %3938 = vmatprep.subr.mxu0 0.0
          %3939 = vmatpush1.msra.mxu0 0.0
          %3940 = vmatprep.subr.mxu0 0.0
          %3941 = vmatpush1.msra.mxu0 0.0
          %3942 = vmatprep.subr.mxu0 0.0
          %3943 = vmatpush1.msra.mxu0 0.0
          %3944 = vmatprep.subr.mxu0 0.0
          %3945 = vmatpush1.msra.mxu0 0.0
          %3946 = vmatprep.subr.mxu0 0.0
          %3947 = vmatpush1.msra.mxu0 0.0
          %3948 = vmatprep.subr.mxu0 0.0
          %3949 = vmatpush1.msra.mxu0 0.0
          %3950 = vmatprep.subr.mxu0 0.0
          %3951 = vmatpush1.msra.mxu0 0.0
          %3952 = vmatprep.subr.mxu0 0.0
          %3953 = vmatpush1.msra.mxu0 0.0
          %3954 = vmatprep.subr.mxu0 0.0
          %3955 = vmatpush1.msra.mxu0 0.0
          %3956 = vmatprep.subr.mxu0 0.0
          %3957 = vmatpush1.msra.mxu0 0.0
          %3958 = vmatprep.subr.mxu0 0.0
          %3959 = vmatpush1.msra.mxu0 0.0
          %3960 = vmatprep.subr.mxu0 0.0
          %3961 = vmatpush1.msra.mxu0 0.0
          %3962 = vmatprep.subr.mxu0 0.0
          %3963 = vmatpush1.msra.mxu0 0.0
          %3964 = vmatprep.subr.mxu0 0.0
          %3965 = vmatpush1.msra.mxu0 0.0
          %3966 = vmatprep.subr.mxu0 0.0
          %3967 = vmatpush1.msra.mxu0 0.0
          %3968 = vmatprep.subr.mxu0 0.0
          %3969 = vmatpush1.msra.mxu0 0.0
          %3970 = vmatprep.subr.mxu0 0.0
          %3971 = vmatpush1.msra.mxu0 0.0
          %3972 = vmatprep.subr.mxu0 0.0
          %3973 = vmatpush1.msra.mxu0 0.0
          %3974 = vmatprep.subr.mxu0 0.0
          %3975 = vmatpush1.msra.mxu0 0.0
          %3976 = vmatprep.subr.mxu0 0.0
          %3977 = vmatpush1.msra.mxu0 0.0
          %3978 = vmatprep.subr.mxu0 0.0
          %3979 = vmatpush1.msra.mxu0 0.0
          %3980 = vmatprep.subr.mxu0 0.0
          %3981 = vmatpush1.msra.mxu0 0.0
          %3982 = vmatprep.subr.mxu0 0.0
          %3983 = vmatpush1.msra.mxu0 0.0
          %3984 = vmatprep.subr.mxu0 0.0
          %3985 = vmatpush1.msra.mxu0 0.0
          %3986 = vmatprep.subr.mxu0 0.0
          %3987 = vmatpush1.msra.mxu0 0.0
          %3988 = vmatprep.subr.mxu0 0.0
          %3989 = vmatpush1.msra.mxu0 0.0
          %3990 = vmatprep.mubr.f32.mxu0 0.0
          %v3991 = vand.u32 %v3923, 4294901760
          %v3992 = vsub.f32 %v3923, %v3991
          %v3993 = vand.u32 %v3992, 4294901760
          %v3994 = vsub.f32 %v3992, %v3993
          %v3995 = vand.u32 %v3994, 4294901760
          %3996 = vmatmul.mubr.f32.gmra.mrb[0].mxu0 %v3995
          %v3997 = vpop.f32.mrb[0].mxu0
          %v3998 = vadd.f32 0.0, %v3997
          %v3999 = vpop.f32.mrb[0].mxu0
          %4000 = vdwg.mxu0
          %4001 = vmatprep.subr.mxu0 0.0
          %v4002 = vand.u32 %v3473, 4294901760
          %v4003 = vsub.f32 %v3473, %v4002
          %v4004 = vand.u32 %v4003, 4294901760
          %v4005 = vsub.f32 %v4003, %v4004
          %v4006 = vand.u32 %v4005, 4294901760
          %4007 = vmatpush1.msra.mxu0 %v4006
          %4008 = vmatprep.subr.mxu0 0.0
          %4009 = vmatpush1.msra.mxu0 0.0
          %4010 = vmatprep.subr.mxu0 0.0
          %4011 = vmatpush1.msra.mxu0 0.0
          %4012 = vmatprep.subr.mxu0 0.0
          %4013 = vmatpush1.msra.mxu0 0.0
          %4014 = vmatprep.subr.mxu0 0.0
          %4015 = vmatpush1.msra.mxu0 0.0
          %4016 = vmatprep.subr.mxu0 0.0
          %4017 = vmatpush1.msra.mxu0 0.0
          %4018 = vmatprep.subr.mxu0 0.0
          %4019 = vmatpush1.msra.mxu0 0.0
          %4020 = vmatprep.subr.mxu0 0.0
          %4021 = vmatpush1.msra.mxu0 0.0
          %4022 = vmatprep.subr.mxu0 0.0
          %4023 = vmatpush1.msra.mxu0 0.0
          %4024 = vmatprep.subr.mxu0 0.0
          %4025 = vmatpush1.msra.mxu0 0.0
          %4026 = vmatprep.subr.mxu0 0.0
          %4027 = vmatpush1.msra.mxu0 0.0
          %4028 = vmatprep.subr.mxu0 0.0
          %4029 = vmatpush1.msra.mxu0 0.0
          %4030 = vmatprep.subr.mxu0 0.0
          %4031 = vmatpush1.msra.mxu0 0.0
          %4032 = vmatprep.subr.mxu0 0.0
          %4033 = vmatpush1.msra.mxu0 0.0
          %4034 = vmatprep.subr.mxu0 0.0
          %4035 = vmatpush1.msra.mxu0 0.0
          %4036 = vmatprep.subr.mxu0 0.0
          %4037 = vmatpush1.msra.mxu0 0.0
          %4038 = vmatprep.subr.mxu0 0.0
          %4039 = vmatpush1.msra.mxu0 0.0
          %4040 = vmatprep.subr.mxu0 0.0
          %4041 = vmatpush1.msra.mxu0 0.0
          %4042 = vmatprep.subr.mxu0 0.0
          %4043 = vmatpush1.msra.mxu0 0.0
          %4044 = vmatprep.subr.mxu0 0.0
          %4045 = vmatpush1.msra.mxu0 0.0
          %4046 = vmatprep.subr.mxu0 0.0
          %4047 = vmatpush1.msra.mxu0 0.0
          %4048 = vmatprep.subr.mxu0 0.0
          %4049 = vmatpush1.msra.mxu0 0.0
          %4050 = vmatprep.subr.mxu0 0.0
          %4051 = vmatpush1.msra.mxu0 0.0
          %4052 = vmatprep.subr.mxu0 0.0
          %4053 = vmatpush1.msra.mxu0 0.0
          %4054 = vmatprep.subr.mxu0 0.0
          %4055 = vmatpush1.msra.mxu0 0.0
          %4056 = vmatprep.subr.mxu0 0.0
          %4057 = vmatpush1.msra.mxu0 0.0
          %4058 = vmatprep.subr.mxu0 0.0
          %4059 = vmatpush1.msra.mxu0 0.0
          %4060 = vmatprep.subr.mxu0 0.0
          %4061 = vmatpush1.msra.mxu0 0.0
          %4062 = vmatprep.subr.mxu0 0.0
          %4063 = vmatpush1.msra.mxu0 0.0
          %4064 = vmatprep.subr.mxu0 0.0
          %4065 = vmatpush1.msra.mxu0 0.0
          %4066 = vmatprep.subr.mxu0 0.0
          %4067 = vmatpush1.msra.mxu0 0.0
          %4068 = vmatprep.subr.mxu0 0.0
          %4069 = vmatpush1.msra.mxu0 0.0
          %4070 = vmatprep.mubr.f32.mxu0 0.0
          %v4071 = vand.u32 %v3923, 4294901760
          %4072 = vmatmul.mubr.f32.gmra.mrb[0].mxu0 %v4071
          %v4073 = vpop.f32.mrb[0].mxu0
          %v4074 = vadd.f32 %v3998, %v4073
          %v4075 = vpop.f32.mrb[0].mxu0
          %4076 = vdwg.mxu0
          %4077 = vmatprep.subr.mxu0 0.0
          %v4078 = vand.u32 %v3473, 4294901760
          %v4079 = vsub.f32 %v3473, %v4078
          %4080 = vmatpush1.msra.mxu0 %v4079
          %4081 = vmatprep.subr.mxu0 0.0
          %4082 = vmatpush1.msra.mxu0 0.0
          %4083 = vmatprep.subr.mxu0 0.0
          %4084 = vmatpush1.msra.mxu0 0.0
          %4085 = vmatprep.subr.mxu0 0.0
          %4086 = vmatpush1.msra.mxu0 0.0
          %4087 = vmatprep.subr.mxu0 0.0
          %4088 = vmatpush1.msra.mxu0 0.0
          %4089 = vmatprep.subr.mxu0 0.0
          %4090 = vmatpush1.msra.mxu0 0.0
          %4091 = vmatprep.subr.mxu0 0.0
          %4092 = vmatpush1.msra.mxu0 0.0
          %4093 = vmatprep.subr.mxu0 0.0
          %4094 = vmatpush1.msra.mxu0 0.0
          %4095 = vmatprep.subr.mxu0 0.0
          %4096 = vmatpush1.msra.mxu0 0.0
          %4097 = vmatprep.subr.mxu0 0.0
          %4098 = vmatpush1.msra.mxu0 0.0
          %4099 = vmatprep.subr.mxu0 0.0
          %4100 = vmatpush1.msra.mxu0 0.0
          %4101 = vmatprep.subr.mxu0 0.0
          %4102 = vmatpush1.msra.mxu0 0.0
          %4103 = vmatprep.subr.mxu0 0.0
          %4104 = vmatpush1.msra.mxu0 0.0
          %4105 = vmatprep.subr.mxu0 0.0
          %4106 = vmatpush1.msra.mxu0 0.0
          %4107 = vmatprep.subr.mxu0 0.0
          %4108 = vmatpush1.msra.mxu0 0.0
          %4109 = vmatprep.subr.mxu0 0.0
          %4110 = vmatpush1.msra.mxu0 0.0
          %4111 = vmatprep.subr.mxu0 0.0
          %4112 = vmatpush1.msra.mxu0 0.0
          %4113 = vmatprep.subr.mxu0 0.0
          %4114 = vmatpush1.msra.mxu0 0.0
          %4115 = vmatprep.subr.mxu0 0.0
          %4116 = vmatpush1.msra.mxu0 0.0
          %4117 = vmatprep.subr.mxu0 0.0
          %4118 = vmatpush1.msra.mxu0 0.0
          %4119 = vmatprep.subr.mxu0 0.0
          %4120 = vmatpush1.msra.mxu0 0.0
          %4121 = vmatprep.subr.mxu0 0.0
          %4122 = vmatpush1.msra.mxu0 0.0
          %4123 = vmatprep.subr.mxu0 0.0
          %4124 = vmatpush1.msra.mxu0 0.0
          %4125 = vmatprep.subr.mxu0 0.0
          %4126 = vmatpush1.msra.mxu0 0.0
          %4127 = vmatprep.subr.mxu0 0.0
          %4128 = vmatpush1.msra.mxu0 0.0
          %4129 = vmatprep.subr.mxu0 0.0
          %4130 = vmatpush1.msra.mxu0 0.0
          %4131 = vmatprep.subr.mxu0 0.0
          %4132 = vmatpush1.msra.mxu0 0.0
          %4133 = vmatprep.subr.mxu0 0.0
          %4134 = vmatpush1.msra.mxu0 0.0
          %4135 = vmatprep.subr.mxu0 0.0
          %4136 = vmatpush1.msra.mxu0 0.0
          %4137 = vmatprep.subr.mxu0 0.0
          %4138 = vmatpush1.msra.mxu0 0.0
          %4139 = vmatprep.subr.mxu0 0.0
          %4140 = vmatpush1.msra.mxu0 0.0
          %4141 = vmatprep.subr.mxu0 0.0
          %4142 = vmatpush1.msra.mxu0 0.0
          %4143 = vmatprep.mubr.f32.mxu0 0.0
          %v4144 = vand.u32 %v3923, 4294901760
          %v4145 = vsub.f32 %v3923, %v4144
          %4146 = vmatmul.mubr.f32.gmra.mrb[0].mxu0 %v4145
          %v4147 = vpop.f32.mrb[0].mxu0
          %v4148 = vadd.f32 %v4074, %v4147
          %v4149 = vpop.f32.mrb[0].mxu0
          %4150 = vdwg.mxu0
          %4151 = vmatprep.subr.mxu0 0.0
          %v4152 = vand.u32 %v3473, 4294901760
          %4153 = vmatpush1.msra.mxu0 %v4152
          %4154 = vmatprep.subr.mxu0 0.0
          %4155 = vmatpush1.msra.mxu0 0.0
          %4156 = vmatprep.subr.mxu0 0.0
          %4157 = vmatpush1.msra.mxu0 0.0
          %4158 = vmatprep.subr.mxu0 0.0
          %4159 = vmatpush1.msra.mxu0 0.0
          %4160 = vmatprep.subr.mxu0 0.0
          %4161 = vmatpush1.msra.mxu0 0.0
          %4162 = vmatprep.subr.mxu0 0.0
          %4163 = vmatpush1.msra.mxu0 0.0
          %4164 = vmatprep.subr.mxu0 0.0
          %4165 = vmatpush1.msra.mxu0 0.0
          %4166 = vmatprep.subr.mxu0 0.0
          %4167 = vmatpush1.msra.mxu0 0.0
          %4168 = vmatprep.subr.mxu0 0.0
          %4169 = vmatpush1.msra.mxu0 0.0
          %4170 = vmatprep.subr.mxu0 0.0
          %4171 = vmatpush1.msra.mxu0 0.0
          %4172 = vmatprep.subr.mxu0 0.0
          %4173 = vmatpush1.msra.mxu0 0.0
          %4174 = vmatprep.subr.mxu0 0.0
          %4175 = vmatpush1.msra.mxu0 0.0
          %4176 = vmatprep.subr.mxu0 0.0
          %4177 = vmatpush1.msra.mxu0 0.0
          %4178 = vmatprep.subr.mxu0 0.0
          %4179 = vmatpush1.msra.mxu0 0.0
          %4180 = vmatprep.subr.mxu0 0.0
          %4181 = vmatpush1.msra.mxu0 0.0
          %4182 = vmatprep.subr.mxu0 0.0
          %4183 = vmatpush1.msra.mxu0 0.0
          %4184 = vmatprep.subr.mxu0 0.0
          %4185 = vmatpush1.msra.mxu0 0.0
          %4186 = vmatprep.subr.mxu0 0.0
          %4187 = vmatpush1.msra.mxu0 0.0
          %4188 = vmatprep.subr.mxu0 0.0
          %4189 = vmatpush1.msra.mxu0 0.0
          %4190 = vmatprep.subr.mxu0 0.0
          %4191 = vmatpush1.msra.mxu0 0.0
          %4192 = vmatprep.subr.mxu0 0.0
          %4193 = vmatpush1.msra.mxu0 0.0
          %4194 = vmatprep.subr.mxu0 0.0
          %4195 = vmatpush1.msra.mxu0 0.0
          %4196 = vmatprep.subr.mxu0 0.0
          %4197 = vmatpush1.msra.mxu0 0.0
          %4198 = vmatprep.subr.mxu0 0.0
          %4199 = vmatpush1.msra.mxu0 0.0
          %4200 = vmatprep.subr.mxu0 0.0
          %4201 = vmatpush1.msra.mxu0 0.0
          %4202 = vmatprep.subr.mxu0 0.0
          %4203 = vmatpush1.msra.mxu0 0.0
          %4204 = vmatprep.subr.mxu0 0.0
          %4205 = vmatpush1.msra.mxu0 0.0
          %4206 = vmatprep.subr.mxu0 0.0
          %4207 = vmatpush1.msra.mxu0 0.0
          %4208 = vmatprep.subr.mxu0 0.0
          %4209 = vmatpush1.msra.mxu0 0.0
          %4210 = vmatprep.subr.mxu0 0.0
          %4211 = vmatpush1.msra.mxu0 0.0
          %4212 = vmatprep.subr.mxu0 0.0
          %4213 = vmatpush1.msra.mxu0 0.0
          %4214 = vmatprep.subr.mxu0 0.0
          %4215 = vmatpush1.msra.mxu0 0.0
          %4216 = vmatprep.mubr.f32.mxu0 0.0
          %v4217 = vand.u32 %v3923, 4294901760
          %v4218 = vsub.f32 %v3923, %v4217
          %v4219 = vand.u32 %v4218, 4294901760
          %4220 = vmatmul.mubr.f32.gmra.mrb[0].mxu0 %v4219
          %v4221 = vpop.f32.mrb[0].mxu0
          %v4222 = vadd.f32 %v4148, %v4221
          %v4223 = vpop.f32.mrb[0].mxu0
          %4224 = vdwg.mxu0
          %4225 = vmatprep.subr.mxu0 0.0
          %v4226 = vand.u32 %v3473, 4294901760
          %v4227 = vsub.f32 %v3473, %v4226
          %v4228 = vand.u32 %v4227, 4294901760
          %4229 = vmatpush1.msra.mxu0 %v4228
          %4230 = vmatprep.subr.mxu0 0.0
          %4231 = vmatpush1.msra.mxu0 0.0
          %4232 = vmatprep.subr.mxu0 0.0
          %4233 = vmatpush1.msra.mxu0 0.0
          %4234 = vmatprep.subr.mxu0 0.0
          %4235 = vmatpush1.msra.mxu0 0.0
          %4236 = vmatprep.subr.mxu0 0.0
          %4237 = vmatpush1.msra.mxu0 0.0
          %4238 = vmatprep.subr.mxu0 0.0
          %4239 = vmatpush1.msra.mxu0 0.0
          %4240 = vmatprep.subr.mxu0 0.0
          %4241 = vmatpush1.msra.mxu0 0.0
          %4242 = vmatprep.subr.mxu0 0.0
          %4243 = vmatpush1.msra.mxu0 0.0
          %4244 = vmatprep.subr.mxu0 0.0
          %4245 = vmatpush1.msra.mxu0 0.0
          %4246 = vmatprep.subr.mxu0 0.0
          %4247 = vmatpush1.msra.mxu0 0.0
          %4248 = vmatprep.subr.mxu0 0.0
          %4249 = vmatpush1.msra.mxu0 0.0
          %4250 = vmatprep.subr.mxu0 0.0
          %4251 = vmatpush1.msra.mxu0 0.0
          %4252 = vmatprep.subr.mxu0 0.0
          %4253 = vmatpush1.msra.mxu0 0.0
          %4254 = vmatprep.subr.mxu0 0.0
          %4255 = vmatpush1.msra.mxu0 0.0
          %4256 = vmatprep.subr.mxu0 0.0
          %4257 = vmatpush1.msra.mxu0 0.0
          %4258 = vmatprep.subr.mxu0 0.0
          %4259 = vmatpush1.msra.mxu0 0.0
          %4260 = vmatprep.subr.mxu0 0.0
          %4261 = vmatpush1.msra.mxu0 0.0
          %4262 = vmatprep.subr.mxu0 0.0
          %4263 = vmatpush1.msra.mxu0 0.0
          %4264 = vmatprep.subr.mxu0 0.0
          %4265 = vmatpush1.msra.mxu0 0.0
          %4266 = vmatprep.subr.mxu0 0.0
          %4267 = vmatpush1.msra.mxu0 0.0
          %4268 = vmatprep.subr.mxu0 0.0
          %4269 = vmatpush1.msra.mxu0 0.0
          %4270 = vmatprep.subr.mxu0 0.0
          %4271 = vmatpush1.msra.mxu0 0.0
          %4272 = vmatprep.subr.mxu0 0.0
          %4273 = vmatpush1.msra.mxu0 0.0
          %4274 = vmatprep.subr.mxu0 0.0
          %4275 = vmatpush1.msra.mxu0 0.0
          %4276 = vmatprep.subr.mxu0 0.0
          %4277 = vmatpush1.msra.mxu0 0.0
          %4278 = vmatprep.subr.mxu0 0.0
          %4279 = vmatpush1.msra.mxu0 0.0
          %4280 = vmatprep.subr.mxu0 0.0
          %4281 = vmatpush1.msra.mxu0 0.0
          %4282 = vmatprep.subr.mxu0 0.0
          %4283 = vmatpush1.msra.mxu0 0.0
          %4284 = vmatprep.subr.mxu0 0.0
          %4285 = vmatpush1.msra.mxu0 0.0
          %4286 = vmatprep.subr.mxu0 0.0
          %4287 = vmatpush1.msra.mxu0 0.0
          %4288 = vmatprep.subr.mxu0 0.0
          %4289 = vmatpush1.msra.mxu0 0.0
          %4290 = vmatprep.subr.mxu0 0.0
          %4291 = vmatpush1.msra.mxu0 0.0
          %4292 = vmatprep.mubr.f32.mxu0 0.0
          %v4293 = vand.u32 %v3923, 4294901760
          %4294 = vmatmul.mubr.f32.gmra.mrb[0].mxu0 %v4293
          %v4295 = vpop.f32.mrb[0].mxu0
          %v4296 = vadd.f32 %v4222, %v4295
          %v4297 = vpop.f32.mrb[0].mxu0
          %4298 = vdwg.mxu0
          %4299 = vmatprep.subr.mxu0 0.0
          %v4300 = vand.u32 %v3473, 4294901760
          %4301 = vmatpush1.msra.mxu0 %v4300
          %4302 = vmatprep.subr.mxu0 0.0
          %4303 = vmatpush1.msra.mxu0 0.0
          %4304 = vmatprep.subr.mxu0 0.0
          %4305 = vmatpush1.msra.mxu0 0.0
          %4306 = vmatprep.subr.mxu0 0.0
          %4307 = vmatpush1.msra.mxu0 0.0
          %4308 = vmatprep.subr.mxu0 0.0
          %4309 = vmatpush1.msra.mxu0 0.0
          %4310 = vmatprep.subr.mxu0 0.0
          %4311 = vmatpush1.msra.mxu0 0.0
          %4312 = vmatprep.subr.mxu0 0.0
          %4313 = vmatpush1.msra.mxu0 0.0
          %4314 = vmatprep.subr.mxu0 0.0
          %4315 = vmatpush1.msra.mxu0 0.0
          %4316 = vmatprep.subr.mxu0 0.0
          %4317 = vmatpush1.msra.mxu0 0.0
          %4318 = vmatprep.subr.mxu0 0.0
          %4319 = vmatpush1.msra.mxu0 0.0
          %4320 = vmatprep.subr.mxu0 0.0
          %4321 = vmatpush1.msra.mxu0 0.0
          %4322 = vmatprep.subr.mxu0 0.0
          %4323 = vmatpush1.msra.mxu0 0.0
          %4324 = vmatprep.subr.mxu0 0.0
          %4325 = vmatpush1.msra.mxu0 0.0
          %4326 = vmatprep.subr.mxu0 0.0
          %4327 = vmatpush1.msra.mxu0 0.0
          %4328 = vmatprep.subr.mxu0 0.0
          %4329 = vmatpush1.msra.mxu0 0.0
          %4330 = vmatprep.subr.mxu0 0.0
          %4331 = vmatpush1.msra.mxu0 0.0
          %4332 = vmatprep.subr.mxu0 0.0
          %4333 = vmatpush1.msra.mxu0 0.0
          %4334 = vmatprep.subr.mxu0 0.0
          %4335 = vmatpush1.msra.mxu0 0.0
          %4336 = vmatprep.subr.mxu0 0.0
          %4337 = vmatpush1.msra.mxu0 0.0
          %4338 = vmatprep.subr.mxu0 0.0
          %4339 = vmatpush1.msra.mxu0 0.0
          %4340 = vmatprep.subr.mxu0 0.0
          %4341 = vmatpush1.msra.mxu0 0.0
          %4342 = vmatprep.subr.mxu0 0.0
          %4343 = vmatpush1.msra.mxu0 0.0
          %4344 = vmatprep.subr.mxu0 0.0
          %4345 = vmatpush1.msra.mxu0 0.0
          %4346 = vmatprep.subr.mxu0 0.0
          %4347 = vmatpush1.msra.mxu0 0.0
          %4348 = vmatprep.subr.mxu0 0.0
          %4349 = vmatpush1.msra.mxu0 0.0
          %4350 = vmatprep.subr.mxu0 0.0
          %4351 = vmatpush1.msra.mxu0 0.0
          %4352 = vmatprep.subr.mxu0 0.0
          %4353 = vmatpush1.msra.mxu0 0.0
          %4354 = vmatprep.subr.mxu0 0.0
          %4355 = vmatpush1.msra.mxu0 0.0
          %4356 = vmatprep.subr.mxu0 0.0
          %4357 = vmatpush1.msra.mxu0 0.0
          %4358 = vmatprep.subr.mxu0 0.0
          %4359 = vmatpush1.msra.mxu0 0.0
          %4360 = vmatprep.subr.mxu0 0.0
          %4361 = vmatpush1.msra.mxu0 0.0
          %4362 = vmatprep.subr.mxu0 0.0
          %4363 = vmatpush1.msra.mxu0 0.0
          %4364 = vmatprep.mubr.f32.mxu0 0.0
          %v4365 = vand.u32 %v3923, 4294901760
          %4366 = vmatmul.mubr.f32.gmra.mrb[0].mxu0 %v4365
          %v4367 = vpop.f32.mrb[0].mxu0
          %v4368 = vadd.f32 %v4296, %v4367
          %v4369 = vpop.f32.mrb[0].mxu0
          %4370 = vdwg.mxu0
          %v4371 = vmul.f32 %v3465, %v3457
          %v4373 = vsel %vm3468, %v4371, 0
          %4375 = vmatprep.subr.mxu0 0.0
          %v4376 = vand.u32 %v3473, 4294901760
          %4377 = vmatpush1.msra.mxu0 %v4376
          %4378 = vmatprep.subr.mxu0 0.0
          %4379 = vmatpush1.msra.mxu0 0.0
          %4380 = vmatprep.subr.mxu0 0.0
          %4381 = vmatpush1.msra.mxu0 0.0
          %4382 = vmatprep.subr.mxu0 0.0
          %4383 = vmatpush1.msra.mxu0 0.0
          %4384 = vmatprep.subr.mxu0 0.0
          %4385 = vmatpush1.msra.mxu0 0.0
          %4386 = vmatprep.subr.mxu0 0.0
          %4387 = vmatpush1.msra.mxu0 0.0
          %4388 = vmatprep.subr.mxu0 0.0
          %4389 = vmatpush1.msra.mxu0 0.0
          %4390 = vmatprep.subr.mxu0 0.0
          %4391 = vmatpush1.msra.mxu0 0.0
          %4392 = vmatprep.subr.mxu0 0.0
          %4393 = vmatpush1.msra.mxu0 0.0
          %4394 = vmatprep.subr.mxu0 0.0
          %4395 = vmatpush1.msra.mxu0 0.0
          %4396 = vmatprep.subr.mxu0 0.0
          %4397 = vmatpush1.msra.mxu0 0.0
          %4398 = vmatprep.subr.mxu0 0.0
          %4399 = vmatpush1.msra.mxu0 0.0
          %4400 = vmatprep.subr.mxu0 0.0
          %4401 = vmatpush1.msra.mxu0 0.0
          %4402 = vmatprep.subr.mxu0 0.0
          %4403 = vmatpush1.msra.mxu0 0.0
          %4404 = vmatprep.subr.mxu0 0.0
          %4405 = vmatpush1.msra.mxu0 0.0
          %4406 = vmatprep.subr.mxu0 0.0
          %4407 = vmatpush1.msra.mxu0 0.0
          %4408 = vmatprep.subr.mxu0 0.0
          %4409 = vmatpush1.msra.mxu0 0.0
          %4410 = vmatprep.subr.mxu0 0.0
          %4411 = vmatpush1.msra.mxu0 0.0
          %4412 = vmatprep.subr.mxu0 0.0
          %4413 = vmatpush1.msra.mxu0 0.0
          %4414 = vmatprep.subr.mxu0 0.0
          %4415 = vmatpush1.msra.mxu0 0.0
          %4416 = vmatprep.subr.mxu0 0.0
          %4417 = vmatpush1.msra.mxu0 0.0
          %4418 = vmatprep.subr.mxu0 0.0
          %4419 = vmatpush1.msra.mxu0 0.0
          %4420 = vmatprep.subr.mxu0 0.0
          %4421 = vmatpush1.msra.mxu0 0.0
          %4422 = vmatprep.subr.mxu0 0.0
          %4423 = vmatpush1.msra.mxu0 0.0
          %4424 = vmatprep.subr.mxu0 0.0
          %4425 = vmatpush1.msra.mxu0 0.0
          %4426 = vmatprep.subr.mxu0 0.0
          %4427 = vmatpush1.msra.mxu0 0.0
          %4428 = vmatprep.subr.mxu0 0.0
          %4429 = vmatpush1.msra.mxu0 0.0
          %4430 = vmatprep.subr.mxu0 0.0
          %4431 = vmatpush1.msra.mxu0 0.0
          %4432 = vmatprep.subr.mxu0 0.0
          %4433 = vmatpush1.msra.mxu0 0.0
          %4434 = vmatprep.subr.mxu0 0.0
          %4435 = vmatpush1.msra.mxu0 0.0
          %4436 = vmatprep.subr.mxu0 0.0
          %4437 = vmatpush1.msra.mxu0 0.0
          %4438 = vmatprep.subr.mxu0 0.0
          %4439 = vmatpush1.msra.mxu0 0.0
          %4440 = vmatprep.mubr.f32.mxu0 0.0
          %v4441 = vand.u32 %v4373, 4294901760
          %v4442 = vsub.f32 %v4373, %v4441
          %v4443 = vand.u32 %v4442, 4294901760
          %v4444 = vsub.f32 %v4442, %v4443
          %v4445 = vand.u32 %v4444, 4294901760
          %4446 = vmatmul.mubr.f32.gmra.mrb[0].mxu0 %v4445
          %v4447 = vpop.f32.mrb[0].mxu0
          %v4448 = vadd.f32 0.0, %v4447
          %v4449 = vpop.f32.mrb[0].mxu0
          %4450 = vdwg.mxu0
          %4451 = vmatprep.subr.mxu0 0.0
          %v4452 = vand.u32 %v3473, 4294901760
          %v4453 = vsub.f32 %v3473, %v4452
          %v4454 = vand.u32 %v4453, 4294901760
          %v4455 = vsub.f32 %v4453, %v4454
          %v4456 = vand.u32 %v4455, 4294901760
          %4457 = vmatpush1.msra.mxu0 %v4456
          %4458 = vmatprep.subr.mxu0 0.0
          %4459 = vmatpush1.msra.mxu0 0.0
          %4460 = vmatprep.subr.mxu0 0.0
          %4461 = vmatpush1.msra.mxu0 0.0
          %4462 = vmatprep.subr.mxu0 0.0
          %4463 = vmatpush1.msra.mxu0 0.0
          %4464 = vmatprep.subr.mxu0 0.0
          %4465 = vmatpush1.msra.mxu0 0.0
          %4466 = vmatprep.subr.mxu0 0.0
          %4467 = vmatpush1.msra.mxu0 0.0
          %4468 = vmatprep.subr.mxu0 0.0
          %4469 = vmatpush1.msra.mxu0 0.0
          %4470 = vmatprep.subr.mxu0 0.0
          %4471 = vmatpush1.msra.mxu0 0.0
          %4472 = vmatprep.subr.mxu0 0.0
          %4473 = vmatpush1.msra.mxu0 0.0
          %4474 = vmatprep.subr.mxu0 0.0
          %4475 = vmatpush1.msra.mxu0 0.0
          %4476 = vmatprep.subr.mxu0 0.0
          %4477 = vmatpush1.msra.mxu0 0.0
          %4478 = vmatprep.subr.mxu0 0.0
          %4479 = vmatpush1.msra.mxu0 0.0
          %4480 = vmatprep.subr.mxu0 0.0
          %4481 = vmatpush1.msra.mxu0 0.0
          %4482 = vmatprep.subr.mxu0 0.0
          %4483 = vmatpush1.msra.mxu0 0.0
          %4484 = vmatprep.subr.mxu0 0.0
          %4485 = vmatpush1.msra.mxu0 0.0
          %4486 = vmatprep.subr.mxu0 0.0
          %4487 = vmatpush1.msra.mxu0 0.0
          %4488 = vmatprep.subr.mxu0 0.0
          %4489 = vmatpush1.msra.mxu0 0.0
          %4490 = vmatprep.subr.mxu0 0.0
          %4491 = vmatpush1.msra.mxu0 0.0
          %4492 = vmatprep.subr.mxu0 0.0
          %4493 = vmatpush1.msra.mxu0 0.0
          %4494 = vmatprep.subr.mxu0 0.0
          %4495 = vmatpush1.msra.mxu0 0.0
          %4496 = vmatprep.subr.mxu0 0.0
          %4497 = vmatpush1.msra.mxu0 0.0
          %4498 = vmatprep.subr.mxu0 0.0
          %4499 = vmatpush1.msra.mxu0 0.0
          %4500 = vmatprep.subr.mxu0 0.0
          %4501 = vmatpush1.msra.mxu0 0.0
          %4502 = vmatprep.subr.mxu0 0.0
          %4503 = vmatpush1.msra.mxu0 0.0
          %4504 = vmatprep.subr.mxu0 0.0
          %4505 = vmatpush1.msra.mxu0 0.0
          %4506 = vmatprep.subr.mxu0 0.0
          %4507 = vmatpush1.msra.mxu0 0.0
          %4508 = vmatprep.subr.mxu0 0.0
          %4509 = vmatpush1.msra.mxu0 0.0
          %4510 = vmatprep.subr.mxu0 0.0
          %4511 = vmatpush1.msra.mxu0 0.0
          %4512 = vmatprep.subr.mxu0 0.0
          %4513 = vmatpush1.msra.mxu0 0.0
          %4514 = vmatprep.subr.mxu0 0.0
          %4515 = vmatpush1.msra.mxu0 0.0
          %4516 = vmatprep.subr.mxu0 0.0
          %4517 = vmatpush1.msra.mxu0 0.0
          %4518 = vmatprep.subr.mxu0 0.0
          %4519 = vmatpush1.msra.mxu0 0.0
          %4520 = vmatprep.mubr.f32.mxu0 0.0
          %v4521 = vand.u32 %v4373, 4294901760
          %4522 = vmatmul.mubr.f32.gmra.mrb[0].mxu0 %v4521
          %v4523 = vpop.f32.mrb[0].mxu0
          %v4524 = vadd.f32 %v4448, %v4523
          %v4525 = vpop.f32.mrb[0].mxu0
          %4526 = vdwg.mxu0
          %4527 = vmatprep.subr.mxu0 0.0
          %v4528 = vand.u32 %v3473, 4294901760
          %v4529 = vsub.f32 %v3473, %v4528
          %4530 = vmatpush1.msra.mxu0 %v4529
          %4531 = vmatprep.subr.mxu0 0.0
          %4532 = vmatpush1.msra.mxu0 0.0
          %4533 = vmatprep.subr.mxu0 0.0
          %4534 = vmatpush1.msra.mxu0 0.0
          %4535 = vmatprep.subr.mxu0 0.0
          %4536 = vmatpush1.msra.mxu0 0.0
          %4537 = vmatprep.subr.mxu0 0.0
          %4538 = vmatpush1.msra.mxu0 0.0
          %4539 = vmatprep.subr.mxu0 0.0
          %4540 = vmatpush1.msra.mxu0 0.0
          %4541 = vmatprep.subr.mxu0 0.0
          %4542 = vmatpush1.msra.mxu0 0.0
          %4543 = vmatprep.subr.mxu0 0.0
          %4544 = vmatpush1.msra.mxu0 0.0
          %4545 = vmatprep.subr.mxu0 0.0
          %4546 = vmatpush1.msra.mxu0 0.0
          %4547 = vmatprep.subr.mxu0 0.0
          %4548 = vmatpush1.msra.mxu0 0.0
          %4549 = vmatprep.subr.mxu0 0.0
          %4550 = vmatpush1.msra.mxu0 0.0
          %4551 = vmatprep.subr.mxu0 0.0
          %4552 = vmatpush1.msra.mxu0 0.0
          %4553 = vmatprep.subr.mxu0 0.0
          %4554 = vmatpush1.msra.mxu0 0.0
          %4555 = vmatprep.subr.mxu0 0.0
          %4556 = vmatpush1.msra.mxu0 0.0
          %4557 = vmatprep.subr.mxu0 0.0
          %4558 = vmatpush1.msra.mxu0 0.0
          %4559 = vmatprep.subr.mxu0 0.0
          %4560 = vmatpush1.msra.mxu0 0.0
          %4561 = vmatprep.subr.mxu0 0.0
          %4562 = vmatpush1.msra.mxu0 0.0
          %4563 = vmatprep.subr.mxu0 0.0
          %4564 = vmatpush1.msra.mxu0 0.0
          %4565 = vmatprep.subr.mxu0 0.0
          %4566 = vmatpush1.msra.mxu0 0.0
          %4567 = vmatprep.subr.mxu0 0.0
          %4568 = vmatpush1.msra.mxu0 0.0
          %4569 = vmatprep.subr.mxu0 0.0
          %4570 = vmatpush1.msra.mxu0 0.0
          %4571 = vmatprep.subr.mxu0 0.0
          %4572 = vmatpush1.msra.mxu0 0.0
          %4573 = vmatprep.subr.mxu0 0.0
          %4574 = vmatpush1.msra.mxu0 0.0
          %4575 = vmatprep.subr.mxu0 0.0
          %4576 = vmatpush1.msra.mxu0 0.0
          %4577 = vmatprep.subr.mxu0 0.0
          %4578 = vmatpush1.msra.mxu0 0.0
          %4579 = vmatprep.subr.mxu0 0.0
          %4580 = vmatpush1.msra.mxu0 0.0
          %4581 = vmatprep.subr.mxu0 0.0
          %4582 = vmatpush1.msra.mxu0 0.0
          %4583 = vmatprep.subr.mxu0 0.0
          %4584 = vmatpush1.msra.mxu0 0.0
          %4585 = vmatprep.subr.mxu0 0.0
          %4586 = vmatpush1.msra.mxu0 0.0
          %4587 = vmatprep.subr.mxu0 0.0
          %4588 = vmatpush1.msra.mxu0 0.0
          %4589 = vmatprep.subr.mxu0 0.0
          %4590 = vmatpush1.msra.mxu0 0.0
          %4591 = vmatprep.subr.mxu0 0.0
          %4592 = vmatpush1.msra.mxu0 0.0
          %4593 = vmatprep.mubr.f32.mxu0 0.0
          %v4594 = vand.u32 %v4373, 4294901760
          %v4595 = vsub.f32 %v4373, %v4594
          %4596 = vmatmul.mubr.f32.gmra.mrb[0].mxu0 %v4595
          %v4597 = vpop.f32.mrb[0].mxu0
          %v4598 = vadd.f32 %v4524, %v4597
          %v4599 = vpop.f32.mrb[0].mxu0
          %4600 = vdwg.mxu0
          %4601 = vmatprep.subr.mxu0 0.0
          %v4602 = vand.u32 %v3473, 4294901760
          %4603 = vmatpush1.msra.mxu0 %v4602
          %4604 = vmatprep.subr.mxu0 0.0
          %4605 = vmatpush1.msra.mxu0 0.0
          %4606 = vmatprep.subr.mxu0 0.0
          %4607 = vmatpush1.msra.mxu0 0.0
          %4608 = vmatprep.subr.mxu0 0.0
          %4609 = vmatpush1.msra.mxu0 0.0
          %4610 = vmatprep.subr.mxu0 0.0
          %4611 = vmatpush1.msra.mxu0 0.0
          %4612 = vmatprep.subr.mxu0 0.0
          %4613 = vmatpush1.msra.mxu0 0.0
          %4614 = vmatprep.subr.mxu0 0.0
          %4615 = vmatpush1.msra.mxu0 0.0
          %4616 = vmatprep.subr.mxu0 0.0
          %4617 = vmatpush1.msra.mxu0 0.0
          %4618 = vmatprep.subr.mxu0 0.0
          %4619 = vmatpush1.msra.mxu0 0.0
          %4620 = vmatprep.subr.mxu0 0.0
          %4621 = vmatpush1.msra.mxu0 0.0
          %4622 = vmatprep.subr.mxu0 0.0
          %4623 = vmatpush1.msra.mxu0 0.0
          %4624 = vmatprep.subr.mxu0 0.0
          %4625 = vmatpush1.msra.mxu0 0.0
          %4626 = vmatprep.subr.mxu0 0.0
          %4627 = vmatpush1.msra.mxu0 0.0
          %4628 = vmatprep.subr.mxu0 0.0
          %4629 = vmatpush1.msra.mxu0 0.0
          %4630 = vmatprep.subr.mxu0 0.0
          %4631 = vmatpush1.msra.mxu0 0.0
          %4632 = vmatprep.subr.mxu0 0.0
          %4633 = vmatpush1.msra.mxu0 0.0
          %4634 = vmatprep.subr.mxu0 0.0
          %4635 = vmatpush1.msra.mxu0 0.0
          %4636 = vmatprep.subr.mxu0 0.0
          %4637 = vmatpush1.msra.mxu0 0.0
          %4638 = vmatprep.subr.mxu0 0.0
          %4639 = vmatpush1.msra.mxu0 0.0
          %4640 = vmatprep.subr.mxu0 0.0
          %4641 = vmatpush1.msra.mxu0 0.0
          %4642 = vmatprep.subr.mxu0 0.0
          %4643 = vmatpush1.msra.mxu0 0.0
          %4644 = vmatprep.subr.mxu0 0.0
          %4645 = vmatpush1.msra.mxu0 0.0
          %4646 = vmatprep.subr.mxu0 0.0
          %4647 = vmatpush1.msra.mxu0 0.0
          %4648 = vmatprep.subr.mxu0 0.0
          %4649 = vmatpush1.msra.mxu0 0.0
          %4650 = vmatprep.subr.mxu0 0.0
          %4651 = vmatpush1.msra.mxu0 0.0
          %4652 = vmatprep.subr.mxu0 0.0
          %4653 = vmatpush1.msra.mxu0 0.0
          %4654 = vmatprep.subr.mxu0 0.0
          %4655 = vmatpush1.msra.mxu0 0.0
          %4656 = vmatprep.subr.mxu0 0.0
          %4657 = vmatpush1.msra.mxu0 0.0
          %4658 = vmatprep.subr.mxu0 0.0
          %4659 = vmatpush1.msra.mxu0 0.0
          %4660 = vmatprep.subr.mxu0 0.0
          %4661 = vmatpush1.msra.mxu0 0.0
          %4662 = vmatprep.subr.mxu0 0.0
          %4663 = vmatpush1.msra.mxu0 0.0
          %4664 = vmatprep.subr.mxu0 0.0
          %4665 = vmatpush1.msra.mxu0 0.0
          %4666 = vmatprep.mubr.f32.mxu0 0.0
          %v4667 = vand.u32 %v4373, 4294901760
          %v4668 = vsub.f32 %v4373, %v4667
          %v4669 = vand.u32 %v4668, 4294901760
          %4670 = vmatmul.mubr.f32.gmra.mrb[0].mxu0 %v4669
          %v4671 = vpop.f32.mrb[0].mxu0
          %v4672 = vadd.f32 %v4598, %v4671
          %v4673 = vpop.f32.mrb[0].mxu0
          %4674 = vdwg.mxu0
          %4675 = vmatprep.subr.mxu0 0.0
          %v4676 = vand.u32 %v3473, 4294901760
          %v4677 = vsub.f32 %v3473, %v4676
          %v4678 = vand.u32 %v4677, 4294901760
          %4679 = vmatpush1.msra.mxu0 %v4678
          %4680 = vmatprep.subr.mxu0 0.0
          %4681 = vmatpush1.msra.mxu0 0.0
          %4682 = vmatprep.subr.mxu0 0.0
          %4683 = vmatpush1.msra.mxu0 0.0
          %4684 = vmatprep.subr.mxu0 0.0
          %4685 = vmatpush1.msra.mxu0 0.0
          %4686 = vmatprep.subr.mxu0 0.0
          %4687 = vmatpush1.msra.mxu0 0.0
          %4688 = vmatprep.subr.mxu0 0.0
          %4689 = vmatpush1.msra.mxu0 0.0
          %4690 = vmatprep.subr.mxu0 0.0
          %4691 = vmatpush1.msra.mxu0 0.0
          %4692 = vmatprep.subr.mxu0 0.0
          %4693 = vmatpush1.msra.mxu0 0.0
          %4694 = vmatprep.subr.mxu0 0.0
          %4695 = vmatpush1.msra.mxu0 0.0
          %4696 = vmatprep.subr.mxu0 0.0
          %4697 = vmatpush1.msra.mxu0 0.0
          %4698 = vmatprep.subr.mxu0 0.0
          %4699 = vmatpush1.msra.mxu0 0.0
          %4700 = vmatprep.subr.mxu0 0.0
          %4701 = vmatpush1.msra.mxu0 0.0
          %4702 = vmatprep.subr.mxu0 0.0
          %4703 = vmatpush1.msra.mxu0 0.0
          %4704 = vmatprep.subr.mxu0 0.0
          %4705 = vmatpush1.msra.mxu0 0.0
          %4706 = vmatprep.subr.mxu0 0.0
          %4707 = vmatpush1.msra.mxu0 0.0
          %4708 = vmatprep.subr.mxu0 0.0
          %4709 = vmatpush1.msra.mxu0 0.0
          %4710 = vmatprep.subr.mxu0 0.0
          %4711 = vmatpush1.msra.mxu0 0.0
          %4712 = vmatprep.subr.mxu0 0.0
          %4713 = vmatpush1.msra.mxu0 0.0
          %4714 = vmatprep.subr.mxu0 0.0
          %4715 = vmatpush1.msra.mxu0 0.0
          %4716 = vmatprep.subr.mxu0 0.0
          %4717 = vmatpush1.msra.mxu0 0.0
          %4718 = vmatprep.subr.mxu0 0.0
          %4719 = vmatpush1.msra.mxu0 0.0
          %4720 = vmatprep.subr.mxu0 0.0
          %4721 = vmatpush1.msra.mxu0 0.0
          %4722 = vmatprep.subr.mxu0 0.0
          %4723 = vmatpush1.msra.mxu0 0.0
          %4724 = vmatprep.subr.mxu0 0.0
          %4725 = vmatpush1.msra.mxu0 0.0
          %4726 = vmatprep.subr.mxu0 0.0
          %4727 = vmatpush1.msra.mxu0 0.0
          %4728 = vmatprep.subr.mxu0 0.0
          %4729 = vmatpush1.msra.mxu0 0.0
          %4730 = vmatprep.subr.mxu0 0.0
          %4731 = vmatpush1.msra.mxu0 0.0
          %4732 = vmatprep.subr.mxu0 0.0
          %4733 = vmatpush1.msra.mxu0 0.0
          %4734 = vmatprep.subr.mxu0 0.0
          %4735 = vmatpush1.msra.mxu0 0.0
          %4736 = vmatprep.subr.mxu0 0.0
          %4737 = vmatpush1.msra.mxu0 0.0
          %4738 = vmatprep.subr.mxu0 0.0
          %4739 = vmatpush1.msra.mxu0 0.0
          %4740 = vmatprep.subr.mxu0 0.0
          %4741 = vmatpush1.msra.mxu0 0.0
          %4742 = vmatprep.mubr.f32.mxu0 0.0
          %v4743 = vand.u32 %v4373, 4294901760
          %4744 = vmatmul.mubr.f32.gmra.mrb[0].mxu0 %v4743
          %v4745 = vpop.f32.mrb[0].mxu0
          %v4746 = vadd.f32 %v4672, %v4745
          %v4747 = vpop.f32.mrb[0].mxu0
          %4748 = vdwg.mxu0
          %4749 = vmatprep.subr.mxu0 0.0
          %v4750 = vand.u32 %v3473, 4294901760
          %4751 = vmatpush1.msra.mxu0 %v4750
          %4752 = vmatprep.subr.mxu0 0.0
          %4753 = vmatpush1.msra.mxu0 0.0
          %4754 = vmatprep.subr.mxu0 0.0
          %4755 = vmatpush1.msra.mxu0 0.0
          %4756 = vmatprep.subr.mxu0 0.0
          %4757 = vmatpush1.msra.mxu0 0.0
          %4758 = vmatprep.subr.mxu0 0.0
          %4759 = vmatpush1.msra.mxu0 0.0
          %4760 = vmatprep.subr.mxu0 0.0
          %4761 = vmatpush1.msra.mxu0 0.0
          %4762 = vmatprep.subr.mxu0 0.0
          %4763 = vmatpush1.msra.mxu0 0.0
          %4764 = vmatprep.subr.mxu0 0.0
          %4765 = vmatpush1.msra.mxu0 0.0
          %4766 = vmatprep.subr.mxu0 0.0
          %4767 = vmatpush1.msra.mxu0 0.0
          %4768 = vmatprep.subr.mxu0 0.0
          %4769 = vmatpush1.msra.mxu0 0.0
          %4770 = vmatprep.subr.mxu0 0.0
          %4771 = vmatpush1.msra.mxu0 0.0
          %4772 = vmatprep.subr.mxu0 0.0
          %4773 = vmatpush1.msra.mxu0 0.0
          %4774 = vmatprep.subr.mxu0 0.0
          %4775 = vmatpush1.msra.mxu0 0.0
          %4776 = vmatprep.subr.mxu0 0.0
          %4777 = vmatpush1.msra.mxu0 0.0
          %4778 = vmatprep.subr.mxu0 0.0
          %4779 = vmatpush1.msra.mxu0 0.0
          %4780 = vmatprep.subr.mxu0 0.0
          %4781 = vmatpush1.msra.mxu0 0.0
          %4782 = vmatprep.subr.mxu0 0.0
          %4783 = vmatpush1.msra.mxu0 0.0
          %4784 = vmatprep.subr.mxu0 0.0
          %4785 = vmatpush1.msra.mxu0 0.0
          %4786 = vmatprep.subr.mxu0 0.0
          %4787 = vmatpush1.msra.mxu0 0.0
          %4788 = vmatprep.subr.mxu0 0.0
          %4789 = vmatpush1.msra.mxu0 0.0
          %4790 = vmatprep.subr.mxu0 0.0
          %4791 = vmatpush1.msra.mxu0 0.0
          %4792 = vmatprep.subr.mxu0 0.0
          %4793 = vmatpush1.msra.mxu0 0.0
          %4794 = vmatprep.subr.mxu0 0.0
          %4795 = vmatpush1.msra.mxu0 0.0
          %4796 = vmatprep.subr.mxu0 0.0
          %4797 = vmatpush1.msra.mxu0 0.0
          %4798 = vmatprep.subr.mxu0 0.0
          %4799 = vmatpush1.msra.mxu0 0.0
          %4800 = vmatprep.subr.mxu0 0.0
          %4801 = vmatpush1.msra.mxu0 0.0
          %4802 = vmatprep.subr.mxu0 0.0
          %4803 = vmatpush1.msra.mxu0 0.0
          %4804 = vmatprep.subr.mxu0 0.0
          %4805 = vmatpush1.msra.mxu0 0.0
          %4806 = vmatprep.subr.mxu0 0.0
          %4807 = vmatpush1.msra.mxu0 0.0
          %4808 = vmatprep.subr.mxu0 0.0
          %4809 = vmatpush1.msra.mxu0 0.0
          %4810 = vmatprep.subr.mxu0 0.0
          %4811 = vmatpush1.msra.mxu0 0.0
          %4812 = vmatprep.subr.mxu0 0.0
          %4813 = vmatpush1.msra.mxu0 0.0
          %4814 = vmatprep.mubr.f32.mxu0 0.0
          %v4815 = vand.u32 %v4373, 4294901760
          %4816 = vmatmul.mubr.f32.gmra.mrb[0].mxu0 %v4815
          %v4817 = vpop.f32.mrb[0].mxu0
          %v4818 = vadd.f32 %v4746, %v4817
          %v4819 = vpop.f32.mrb[0].mxu0
          %4820 = vdwg.mxu0
          %4822 = vrot.lane.b32.xlu0 %v3918, 64
          %v4823 = vpop.permute.xlu0 %4822
          %v4825 = vmul.f32 %v986, %v4823
          %v4826 = vsub.f32 %v4818, %v4368
          %4828 = vrot.lane.b32.xlu0 %v4826, 64
          %v4829 = vpop.permute.xlu0 %4828
          %v4831 = vmul.f32 %v4825, %v4829
          %v4832 = vsel %vm2930, %v4831, 0.0
          %v4833 = vrot.slane %v4832, 4
          %v4834 = vadd.f32 %v4832, %v4833
          %v4835 = vrot.slane %v4834, 2
          %v4836 = vadd.f32 %v4834, %v4835
          %v4837 = vrot.slane %v4836, 1
          %v4838 = vadd.f32 %v4836, %v4837
          %v4839 = vld [vmem:[%s3 + $0x30] sm:$0xf]
          %v4840 = vld [vmem:[%s3 + $0x38] sm:$0xf]
          %v4842 = vsel %vm2476, %v2959, 0
          %v4845 = vsel %vm2480, %v4840, 0
          %4847 = vmatprep.subr.mxu0 0.0
          %v4848 = vand.u32 %v4845, 4294901760
          %4849 = vmatpush1.msra.mxu0 %v4848
          %4850 = vmatprep.subr.mxu0 0.0
          %4851 = vmatpush1.msra.mxu0 0.0
          %4852 = vmatprep.subr.mxu0 0.0
          %4853 = vmatpush1.msra.mxu0 0.0
          %4854 = vmatprep.subr.mxu0 0.0
          %4855 = vmatpush1.msra.mxu0 0.0
          %4856 = vmatprep.subr.mxu0 0.0
          %4857 = vmatpush1.msra.mxu0 0.0
          %4858 = vmatprep.subr.mxu0 0.0
          %4859 = vmatpush1.msra.mxu0 0.0
          %4860 = vmatprep.subr.mxu0 0.0
          %4861 = vmatpush1.msra.mxu0 0.0
          %4862 = vmatprep.subr.mxu0 0.0
          %4863 = vmatpush1.msra.mxu0 0.0
          %4864 = vmatprep.subr.mxu0 0.0
          %4865 = vmatpush1.msra.mxu0 0.0
          %4866 = vmatprep.subr.mxu0 0.0
          %4867 = vmatpush1.msra.mxu0 0.0
          %4868 = vmatprep.subr.mxu0 0.0
          %4869 = vmatpush1.msra.mxu0 0.0
          %4870 = vmatprep.subr.mxu0 0.0
          %4871 = vmatpush1.msra.mxu0 0.0
          %4872 = vmatprep.subr.mxu0 0.0
          %4873 = vmatpush1.msra.mxu0 0.0
          %4874 = vmatprep.subr.mxu0 0.0
          %4875 = vmatpush1.msra.mxu0 0.0
          %4876 = vmatprep.subr.mxu0 0.0
          %4877 = vmatpush1.msra.mxu0 0.0
          %4878 = vmatprep.subr.mxu0 0.0
          %4879 = vmatpush1.msra.mxu0 0.0
          %4880 = vmatprep.subr.mxu0 0.0
          %4881 = vmatpush1.msra.mxu0 0.0
          %4882 = vmatprep.subr.mxu0 0.0
          %4883 = vmatpush1.msra.mxu0 0.0
          %4884 = vmatprep.subr.mxu0 0.0
          %4885 = vmatpush1.msra.mxu0 0.0
          %4886 = vmatprep.subr.mxu0 0.0
          %4887 = vmatpush1.msra.mxu0 0.0
          %4888 = vmatprep.subr.mxu0 0.0
          %4889 = vmatpush1.msra.mxu0 0.0
          %4890 = vmatprep.subr.mxu0 0.0
          %4891 = vmatpush1.msra.mxu0 0.0
          %4892 = vmatprep.subr.mxu0 0.0
          %4893 = vmatpush1.msra.mxu0 0.0
          %4894 = vmatprep.subr.mxu0 0.0
          %4895 = vmatpush1.msra.mxu0 0.0
          %4896 = vmatprep.subr.mxu0 0.0
          %4897 = vmatpush1.msra.mxu0 0.0
          %4898 = vmatprep.subr.mxu0 0.0
          %4899 = vmatpush1.msra.mxu0 0.0
          %4900 = vmatprep.subr.mxu0 0.0
          %4901 = vmatpush1.msra.mxu0 0.0
          %4902 = vmatprep.subr.mxu0 0.0
          %4903 = vmatpush1.msra.mxu0 0.0
          %4904 = vmatprep.subr.mxu0 0.0
          %4905 = vmatpush1.msra.mxu0 0.0
          %4906 = vmatprep.subr.mxu0 0.0
          %4907 = vmatpush1.msra.mxu0 0.0
          %4908 = vmatprep.subr.mxu0 0.0
          %4909 = vmatpush1.msra.mxu0 0.0
          %4910 = vmatprep.subr.mxu0 0.0
          %4911 = vmatpush1.msra.mxu0 0.0
          %4912 = vmatprep.mubr.f32.mxu0 0.0
          %v4913 = vand.u32 %v4842, 4294901760
          %v4914 = vsub.f32 %v4842, %v4913
          %v4915 = vand.u32 %v4914, 4294901760
          %v4916 = vsub.f32 %v4914, %v4915
          %v4917 = vand.u32 %v4916, 4294901760
          %4918 = vmatmul.mubr.f32.gmra.mrb[0].mxu0 %v4917
          %v4919 = vpop.f32.mrb[0].mxu0
          %v4920 = vadd.f32 0.0, %v4919
          %v4921 = vpop.f32.mrb[0].mxu0
          %4922 = vdwg.mxu0
          %4923 = vmatprep.subr.mxu0 0.0
          %v4924 = vand.u32 %v4845, 4294901760
          %v4925 = vsub.f32 %v4845, %v4924
          %v4926 = vand.u32 %v4925, 4294901760
          %v4927 = vsub.f32 %v4925, %v4926
          %v4928 = vand.u32 %v4927, 4294901760
          %4929 = vmatpush1.msra.mxu0 %v4928
          %4930 = vmatprep.subr.mxu0 0.0
          %4931 = vmatpush1.msra.mxu0 0.0
          %4932 = vmatprep.subr.mxu0 0.0
          %4933 = vmatpush1.msra.mxu0 0.0
          %4934 = vmatprep.subr.mxu0 0.0
          %4935 = vmatpush1.msra.mxu0 0.0
          %4936 = vmatprep.subr.mxu0 0.0
          %4937 = vmatpush1.msra.mxu0 0.0
          %4938 = vmatprep.subr.mxu0 0.0
          %4939 = vmatpush1.msra.mxu0 0.0
          %4940 = vmatprep.subr.mxu0 0.0
          %4941 = vmatpush1.msra.mxu0 0.0
          %4942 = vmatprep.subr.mxu0 0.0
          %4943 = vmatpush1.msra.mxu0 0.0
          %4944 = vmatprep.subr.mxu0 0.0
          %4945 = vmatpush1.msra.mxu0 0.0
          %4946 = vmatprep.subr.mxu0 0.0
          %4947 = vmatpush1.msra.mxu0 0.0
          %4948 = vmatprep.subr.mxu0 0.0
          %4949 = vmatpush1.msra.mxu0 0.0
          %4950 = vmatprep.subr.mxu0 0.0
          %4951 = vmatpush1.msra.mxu0 0.0
          %4952 = vmatprep.subr.mxu0 0.0
          %4953 = vmatpush1.msra.mxu0 0.0
          %4954 = vmatprep.subr.mxu0 0.0
          %4955 = vmatpush1.msra.mxu0 0.0
          %4956 = vmatprep.subr.mxu0 0.0
          %4957 = vmatpush1.msra.mxu0 0.0
          %4958 = vmatprep.subr.mxu0 0.0
          %4959 = vmatpush1.msra.mxu0 0.0
          %4960 = vmatprep.subr.mxu0 0.0
          %4961 = vmatpush1.msra.mxu0 0.0
          %4962 = vmatprep.subr.mxu0 0.0
          %4963 = vmatpush1.msra.mxu0 0.0
          %4964 = vmatprep.subr.mxu0 0.0
          %4965 = vmatpush1.msra.mxu0 0.0
          %4966 = vmatprep.subr.mxu0 0.0
          %4967 = vmatpush1.msra.mxu0 0.0
          %4968 = vmatprep.subr.mxu0 0.0
          %4969 = vmatpush1.msra.mxu0 0.0
          %4970 = vmatprep.subr.mxu0 0.0
          %4971 = vmatpush1.msra.mxu0 0.0
          %4972 = vmatprep.subr.mxu0 0.0
          %4973 = vmatpush1.msra.mxu0 0.0
          %4974 = vmatprep.subr.mxu0 0.0
          %4975 = vmatpush1.msra.mxu0 0.0
          %4976 = vmatprep.subr.mxu0 0.0
          %4977 = vmatpush1.msra.mxu0 0.0
          %4978 = vmatprep.subr.mxu0 0.0
          %4979 = vmatpush1.msra.mxu0 0.0
          %4980 = vmatprep.subr.mxu0 0.0
          %4981 = vmatpush1.msra.mxu0 0.0
          %4982 = vmatprep.subr.mxu0 0.0
          %4983 = vmatpush1.msra.mxu0 0.0
          %4984 = vmatprep.subr.mxu0 0.0
          %4985 = vmatpush1.msra.mxu0 0.0
          %4986 = vmatprep.subr.mxu0 0.0
          %4987 = vmatpush1.msra.mxu0 0.0
          %4988 = vmatprep.subr.mxu0 0.0
          %4989 = vmatpush1.msra.mxu0 0.0
          %4990 = vmatprep.subr.mxu0 0.0
          %4991 = vmatpush1.msra.mxu0 0.0
          %4992 = vmatprep.mubr.f32.mxu0 0.0
          %v4993 = vand.u32 %v4842, 4294901760
          %4994 = vmatmul.mubr.f32.gmra.mrb[0].mxu0 %v4993
          %v4995 = vpop.f32.mrb[0].mxu0
          %v4996 = vadd.f32 %v4920, %v4995
          %v4997 = vpop.f32.mrb[0].mxu0
          %4998 = vdwg.mxu0
          %4999 = vmatprep.subr.mxu0 0.0
          %v5000 = vand.u32 %v4845, 4294901760
          %v5001 = vsub.f32 %v4845, %v5000
          %5002 = vmatpush1.msra.mxu0 %v5001
          %5003 = vmatprep.subr.mxu0 0.0
          %5004 = vmatpush1.msra.mxu0 0.0
          %5005 = vmatprep.subr.mxu0 0.0
          %5006 = vmatpush1.msra.mxu0 0.0
          %5007 = vmatprep.subr.mxu0 0.0
          %5008 = vmatpush1.msra.mxu0 0.0
          %5009 = vmatprep.subr.mxu0 0.0
          %5010 = vmatpush1.msra.mxu0 0.0
          %5011 = vmatprep.subr.mxu0 0.0
          %5012 = vmatpush1.msra.mxu0 0.0
          %5013 = vmatprep.subr.mxu0 0.0
          %5014 = vmatpush1.msra.mxu0 0.0
          %5015 = vmatprep.subr.mxu0 0.0
          %5016 = vmatpush1.msra.mxu0 0.0
          %5017 = vmatprep.subr.mxu0 0.0
          %5018 = vmatpush1.msra.mxu0 0.0
          %5019 = vmatprep.subr.mxu0 0.0
          %5020 = vmatpush1.msra.mxu0 0.0
          %5021 = vmatprep.subr.mxu0 0.0
          %5022 = vmatpush1.msra.mxu0 0.0
          %5023 = vmatprep.subr.mxu0 0.0
          %5024 = vmatpush1.msra.mxu0 0.0
          %5025 = vmatprep.subr.mxu0 0.0
          %5026 = vmatpush1.msra.mxu0 0.0
          %5027 = vmatprep.subr.mxu0 0.0
          %5028 = vmatpush1.msra.mxu0 0.0
          %5029 = vmatprep.subr.mxu0 0.0
          %5030 = vmatpush1.msra.mxu0 0.0
          %5031 = vmatprep.subr.mxu0 0.0
          %5032 = vmatpush1.msra.mxu0 0.0
          %5033 = vmatprep.subr.mxu0 0.0
          %5034 = vmatpush1.msra.mxu0 0.0
          %5035 = vmatprep.subr.mxu0 0.0
          %5036 = vmatpush1.msra.mxu0 0.0
          %5037 = vmatprep.subr.mxu0 0.0
          %5038 = vmatpush1.msra.mxu0 0.0
          %5039 = vmatprep.subr.mxu0 0.0
          %5040 = vmatpush1.msra.mxu0 0.0
          %5041 = vmatprep.subr.mxu0 0.0
          %5042 = vmatpush1.msra.mxu0 0.0
          %5043 = vmatprep.subr.mxu0 0.0
          %5044 = vmatpush1.msra.mxu0 0.0
          %5045 = vmatprep.subr.mxu0 0.0
          %5046 = vmatpush1.msra.mxu0 0.0
          %5047 = vmatprep.subr.mxu0 0.0
          %5048 = vmatpush1.msra.mxu0 0.0
          %5049 = vmatprep.subr.mxu0 0.0
          %5050 = vmatpush1.msra.mxu0 0.0
          %5051 = vmatprep.subr.mxu0 0.0
          %5052 = vmatpush1.msra.mxu0 0.0
          %5053 = vmatprep.subr.mxu0 0.0
          %5054 = vmatpush1.msra.mxu0 0.0
          %5055 = vmatprep.subr.mxu0 0.0
          %5056 = vmatpush1.msra.mxu0 0.0
          %5057 = vmatprep.subr.mxu0 0.0
          %5058 = vmatpush1.msra.mxu0 0.0
          %5059 = vmatprep.subr.mxu0 0.0
          %5060 = vmatpush1.msra.mxu0 0.0
          %5061 = vmatprep.subr.mxu0 0.0
          %5062 = vmatpush1.msra.mxu0 0.0
          %5063 = vmatprep.subr.mxu0 0.0
          %5064 = vmatpush1.msra.mxu0 0.0
          %5065 = vmatprep.mubr.f32.mxu0 0.0
          %v5066 = vand.u32 %v4842, 4294901760
          %v5067 = vsub.f32 %v4842, %v5066
          %5068 = vmatmul.mubr.f32.gmra.mrb[0].mxu0 %v5067
          %v5069 = vpop.f32.mrb[0].mxu0
          %v5070 = vadd.f32 %v4996, %v5069
          %v5071 = vpop.f32.mrb[0].mxu0
          %5072 = vdwg.mxu0
          %5073 = vmatprep.subr.mxu0 0.0
          %v5074 = vand.u32 %v4845, 4294901760
          %5075 = vmatpush1.msra.mxu0 %v5074
          %5076 = vmatprep.subr.mxu0 0.0
          %5077 = vmatpush1.msra.mxu0 0.0
          %5078 = vmatprep.subr.mxu0 0.0
          %5079 = vmatpush1.msra.mxu0 0.0
          %5080 = vmatprep.subr.mxu0 0.0
          %5081 = vmatpush1.msra.mxu0 0.0
          %5082 = vmatprep.subr.mxu0 0.0
          %5083 = vmatpush1.msra.mxu0 0.0
          %5084 = vmatprep.subr.mxu0 0.0
          %5085 = vmatpush1.msra.mxu0 0.0
          %5086 = vmatprep.subr.mxu0 0.0
          %5087 = vmatpush1.msra.mxu0 0.0
          %5088 = vmatprep.subr.mxu0 0.0
          %5089 = vmatpush1.msra.mxu0 0.0
          %5090 = vmatprep.subr.mxu0 0.0
          %5091 = vmatpush1.msra.mxu0 0.0
          %5092 = vmatprep.subr.mxu0 0.0
          %5093 = vmatpush1.msra.mxu0 0.0
          %5094 = vmatprep.subr.mxu0 0.0
          %5095 = vmatpush1.msra.mxu0 0.0
          %5096 = vmatprep.subr.mxu0 0.0
          %5097 = vmatpush1.msra.mxu0 0.0
          %5098 = vmatprep.subr.mxu0 0.0
          %5099 = vmatpush1.msra.mxu0 0.0
          %5100 = vmatprep.subr.mxu0 0.0
          %5101 = vmatpush1.msra.mxu0 0.0
          %5102 = vmatprep.subr.mxu0 0.0
          %5103 = vmatpush1.msra.mxu0 0.0
          %5104 = vmatprep.subr.mxu0 0.0
          %5105 = vmatpush1.msra.mxu0 0.0
          %5106 = vmatprep.subr.mxu0 0.0
          %5107 = vmatpush1.msra.mxu0 0.0
          %5108 = vmatprep.subr.mxu0 0.0
          %5109 = vmatpush1.msra.mxu0 0.0
          %5110 = vmatprep.subr.mxu0 0.0
          %5111 = vmatpush1.msra.mxu0 0.0
          %5112 = vmatprep.subr.mxu0 0.0
          %5113 = vmatpush1.msra.mxu0 0.0
          %5114 = vmatprep.subr.mxu0 0.0
          %5115 = vmatpush1.msra.mxu0 0.0
          %5116 = vmatprep.subr.mxu0 0.0
          %5117 = vmatpush1.msra.mxu0 0.0
          %5118 = vmatprep.subr.mxu0 0.0
          %5119 = vmatpush1.msra.mxu0 0.0
          %5120 = vmatprep.subr.mxu0 0.0
          %5121 = vmatpush1.msra.mxu0 0.0
          %5122 = vmatprep.subr.mxu0 0.0
          %5123 = vmatpush1.msra.mxu0 0.0
          %5124 = vmatprep.subr.mxu0 0.0
          %5125 = vmatpush1.msra.mxu0 0.0
          %5126 = vmatprep.subr.mxu0 0.0
          %5127 = vmatpush1.msra.mxu0 0.0
          %5128 = vmatprep.subr.mxu0 0.0
          %5129 = vmatpush1.msra.mxu0 0.0
          %5130 = vmatprep.subr.mxu0 0.0
          %5131 = vmatpush1.msra.mxu0 0.0
          %5132 = vmatprep.subr.mxu0 0.0
          %5133 = vmatpush1.msra.mxu0 0.0
          %5134 = vmatprep.subr.mxu0 0.0
          %5135 = vmatpush1.msra.mxu0 0.0
          %5136 = vmatprep.subr.mxu0 0.0
          %5137 = vmatpush1.msra.mxu0 0.0
          %5138 = vmatprep.mubr.f32.mxu0 0.0
          %v5139 = vand.u32 %v4842, 4294901760
          %v5140 = vsub.f32 %v4842, %v5139
          %v5141 = vand.u32 %v5140, 4294901760
          %5142 = vmatmul.mubr.f32.gmra.mrb[0].mxu0 %v5141
          %v5143 = vpop.f32.mrb[0].mxu0
          %v5144 = vadd.f32 %v5070, %v5143
          %v5145 = vpop.f32.mrb[0].mxu0
          %5146 = vdwg.mxu0
          %5147 = vmatprep.subr.mxu0 0.0
          %v5148 = vand.u32 %v4845, 4294901760
          %v5149 = vsub.f32 %v4845, %v5148
          %v5150 = vand.u32 %v5149, 4294901760
          %5151 = vmatpush1.msra.mxu0 %v5150
          %5152 = vmatprep.subr.mxu0 0.0
          %5153 = vmatpush1.msra.mxu0 0.0
          %5154 = vmatprep.subr.mxu0 0.0
          %5155 = vmatpush1.msra.mxu0 0.0
          %5156 = vmatprep.subr.mxu0 0.0
          %5157 = vmatpush1.msra.mxu0 0.0
          %5158 = vmatprep.subr.mxu0 0.0
          %5159 = vmatpush1.msra.mxu0 0.0
          %5160 = vmatprep.subr.mxu0 0.0
          %5161 = vmatpush1.msra.mxu0 0.0
          %5162 = vmatprep.subr.mxu0 0.0
          %5163 = vmatpush1.msra.mxu0 0.0
          %5164 = vmatprep.subr.mxu0 0.0
          %5165 = vmatpush1.msra.mxu0 0.0
          %5166 = vmatprep.subr.mxu0 0.0
          %5167 = vmatpush1.msra.mxu0 0.0
          %5168 = vmatprep.subr.mxu0 0.0
          %5169 = vmatpush1.msra.mxu0 0.0
          %5170 = vmatprep.subr.mxu0 0.0
          %5171 = vmatpush1.msra.mxu0 0.0
          %5172 = vmatprep.subr.mxu0 0.0
          %5173 = vmatpush1.msra.mxu0 0.0
          %5174 = vmatprep.subr.mxu0 0.0
          %5175 = vmatpush1.msra.mxu0 0.0
          %5176 = vmatprep.subr.mxu0 0.0
          %5177 = vmatpush1.msra.mxu0 0.0
          %5178 = vmatprep.subr.mxu0 0.0
          %5179 = vmatpush1.msra.mxu0 0.0
          %5180 = vmatprep.subr.mxu0 0.0
          %5181 = vmatpush1.msra.mxu0 0.0
          %5182 = vmatprep.subr.mxu0 0.0
          %5183 = vmatpush1.msra.mxu0 0.0
          %5184 = vmatprep.subr.mxu0 0.0
          %5185 = vmatpush1.msra.mxu0 0.0
          %5186 = vmatprep.subr.mxu0 0.0
          %5187 = vmatpush1.msra.mxu0 0.0
          %5188 = vmatprep.subr.mxu0 0.0
          %5189 = vmatpush1.msra.mxu0 0.0
          %5190 = vmatprep.subr.mxu0 0.0
          %5191 = vmatpush1.msra.mxu0 0.0
          %5192 = vmatprep.subr.mxu0 0.0
          %5193 = vmatpush1.msra.mxu0 0.0
          %5194 = vmatprep.subr.mxu0 0.0
          %5195 = vmatpush1.msra.mxu0 0.0
          %5196 = vmatprep.subr.mxu0 0.0
          %5197 = vmatpush1.msra.mxu0 0.0
          %5198 = vmatprep.subr.mxu0 0.0
          %5199 = vmatpush1.msra.mxu0 0.0
          %5200 = vmatprep.subr.mxu0 0.0
          %5201 = vmatpush1.msra.mxu0 0.0
          %5202 = vmatprep.subr.mxu0 0.0
          %5203 = vmatpush1.msra.mxu0 0.0
          %5204 = vmatprep.subr.mxu0 0.0
          %5205 = vmatpush1.msra.mxu0 0.0
          %5206 = vmatprep.subr.mxu0 0.0
          %5207 = vmatpush1.msra.mxu0 0.0
          %5208 = vmatprep.subr.mxu0 0.0
          %5209 = vmatpush1.msra.mxu0 0.0
          %5210 = vmatprep.subr.mxu0 0.0
          %5211 = vmatpush1.msra.mxu0 0.0
          %5212 = vmatprep.subr.mxu0 0.0
          %5213 = vmatpush1.msra.mxu0 0.0
          %5214 = vmatprep.mubr.f32.mxu0 0.0
          %v5215 = vand.u32 %v4842, 4294901760
          %5216 = vmatmul.mubr.f32.gmra.mrb[0].mxu0 %v5215
          %v5217 = vpop.f32.mrb[0].mxu0
          %v5218 = vadd.f32 %v5144, %v5217
          %v5219 = vpop.f32.mrb[0].mxu0
          %5220 = vdwg.mxu0
          %5221 = vmatprep.subr.mxu0 0.0
          %v5222 = vand.u32 %v4845, 4294901760
          %5223 = vmatpush1.msra.mxu0 %v5222
          %5224 = vmatprep.subr.mxu0 0.0
          %5225 = vmatpush1.msra.mxu0 0.0
          %5226 = vmatprep.subr.mxu0 0.0
          %5227 = vmatpush1.msra.mxu0 0.0
          %5228 = vmatprep.subr.mxu0 0.0
          %5229 = vmatpush1.msra.mxu0 0.0
          %5230 = vmatprep.subr.mxu0 0.0
          %5231 = vmatpush1.msra.mxu0 0.0
          %5232 = vmatprep.subr.mxu0 0.0
          %5233 = vmatpush1.msra.mxu0 0.0
          %5234 = vmatprep.subr.mxu0 0.0
          %5235 = vmatpush1.msra.mxu0 0.0
          %5236 = vmatprep.subr.mxu0 0.0
          %5237 = vmatpush1.msra.mxu0 0.0
          %5238 = vmatprep.subr.mxu0 0.0
          %5239 = vmatpush1.msra.mxu0 0.0
          %5240 = vmatprep.subr.mxu0 0.0
          %5241 = vmatpush1.msra.mxu0 0.0
          %5242 = vmatprep.subr.mxu0 0.0
          %5243 = vmatpush1.msra.mxu0 0.0
          %5244 = vmatprep.subr.mxu0 0.0
          %5245 = vmatpush1.msra.mxu0 0.0
          %5246 = vmatprep.subr.mxu0 0.0
          %5247 = vmatpush1.msra.mxu0 0.0
          %5248 = vmatprep.subr.mxu0 0.0
          %5249 = vmatpush1.msra.mxu0 0.0
          %5250 = vmatprep.subr.mxu0 0.0
          %5251 = vmatpush1.msra.mxu0 0.0
          %5252 = vmatprep.subr.mxu0 0.0
          %5253 = vmatpush1.msra.mxu0 0.0
          %5254 = vmatprep.subr.mxu0 0.0
          %5255 = vmatpush1.msra.mxu0 0.0
          %5256 = vmatprep.subr.mxu0 0.0
          %5257 = vmatpush1.msra.mxu0 0.0
          %5258 = vmatprep.subr.mxu0 0.0
          %5259 = vmatpush1.msra.mxu0 0.0
          %5260 = vmatprep.subr.mxu0 0.0
          %5261 = vmatpush1.msra.mxu0 0.0
          %5262 = vmatprep.subr.mxu0 0.0
          %5263 = vmatpush1.msra.mxu0 0.0
          %5264 = vmatprep.subr.mxu0 0.0
          %5265 = vmatpush1.msra.mxu0 0.0
          %5266 = vmatprep.subr.mxu0 0.0
          %5267 = vmatpush1.msra.mxu0 0.0
          %5268 = vmatprep.subr.mxu0 0.0
          %5269 = vmatpush1.msra.mxu0 0.0
          %5270 = vmatprep.subr.mxu0 0.0
          %5271 = vmatpush1.msra.mxu0 0.0
          %5272 = vmatprep.subr.mxu0 0.0
          %5273 = vmatpush1.msra.mxu0 0.0
          %5274 = vmatprep.subr.mxu0 0.0
          %5275 = vmatpush1.msra.mxu0 0.0
          %5276 = vmatprep.subr.mxu0 0.0
          %5277 = vmatpush1.msra.mxu0 0.0
          %5278 = vmatprep.subr.mxu0 0.0
          %5279 = vmatpush1.msra.mxu0 0.0
          %5280 = vmatprep.subr.mxu0 0.0
          %5281 = vmatpush1.msra.mxu0 0.0
          %5282 = vmatprep.subr.mxu0 0.0
          %5283 = vmatpush1.msra.mxu0 0.0
          %5284 = vmatprep.subr.mxu0 0.0
          %5285 = vmatpush1.msra.mxu0 0.0
          %5286 = vmatprep.mubr.f32.mxu0 0.0
          %v5287 = vand.u32 %v4842, 4294901760
          %5288 = vmatmul.mubr.f32.gmra.mrb[0].mxu0 %v5287
          %v5289 = vpop.f32.mrb[0].mxu0
          %v5290 = vadd.f32 %v5218, %v5289
          %v5291 = vpop.f32.mrb[0].mxu0
          %5292 = vdwg.mxu0
          %v5294 = vsel %vm2476, %v2985, 0
          %v5297 = vsel %vm2480, %v4839, 0
          %5299 = vmatprep.subr.mxu0 0.0
          %v5300 = vand.u32 %v5297, 4294901760
          %5301 = vmatpush1.msra.mxu0 %v5300
          %5302 = vmatprep.subr.mxu0 0.0
          %5303 = vmatpush1.msra.mxu0 0.0
          %5304 = vmatprep.subr.mxu0 0.0
          %5305 = vmatpush1.msra.mxu0 0.0
          %5306 = vmatprep.subr.mxu0 0.0
          %5307 = vmatpush1.msra.mxu0 0.0
          %5308 = vmatprep.subr.mxu0 0.0
          %5309 = vmatpush1.msra.mxu0 0.0
          %5310 = vmatprep.subr.mxu0 0.0
          %5311 = vmatpush1.msra.mxu0 0.0
          %5312 = vmatprep.subr.mxu0 0.0
          %5313 = vmatpush1.msra.mxu0 0.0
          %5314 = vmatprep.subr.mxu0 0.0
          %5315 = vmatpush1.msra.mxu0 0.0
          %5316 = vmatprep.subr.mxu0 0.0
          %5317 = vmatpush1.msra.mxu0 0.0
          %5318 = vmatprep.subr.mxu0 0.0
          %5319 = vmatpush1.msra.mxu0 0.0
          %5320 = vmatprep.subr.mxu0 0.0
          %5321 = vmatpush1.msra.mxu0 0.0
          %5322 = vmatprep.subr.mxu0 0.0
          %5323 = vmatpush1.msra.mxu0 0.0
          %5324 = vmatprep.subr.mxu0 0.0
          %5325 = vmatpush1.msra.mxu0 0.0
          %5326 = vmatprep.subr.mxu0 0.0
          %5327 = vmatpush1.msra.mxu0 0.0
          %5328 = vmatprep.subr.mxu0 0.0
          %5329 = vmatpush1.msra.mxu0 0.0
          %5330 = vmatprep.subr.mxu0 0.0
          %5331 = vmatpush1.msra.mxu0 0.0
          %5332 = vmatprep.subr.mxu0 0.0
          %5333 = vmatpush1.msra.mxu0 0.0
          %5334 = vmatprep.subr.mxu0 0.0
          %5335 = vmatpush1.msra.mxu0 0.0
          %5336 = vmatprep.subr.mxu0 0.0
          %5337 = vmatpush1.msra.mxu0 0.0
          %5338 = vmatprep.subr.mxu0 0.0
          %5339 = vmatpush1.msra.mxu0 0.0
          %5340 = vmatprep.subr.mxu0 0.0
          %5341 = vmatpush1.msra.mxu0 0.0
          %5342 = vmatprep.subr.mxu0 0.0
          %5343 = vmatpush1.msra.mxu0 0.0
          %5344 = vmatprep.subr.mxu0 0.0
          %5345 = vmatpush1.msra.mxu0 0.0
          %5346 = vmatprep.subr.mxu0 0.0
          %5347 = vmatpush1.msra.mxu0 0.0
          %5348 = vmatprep.subr.mxu0 0.0
          %5349 = vmatpush1.msra.mxu0 0.0
          %5350 = vmatprep.subr.mxu0 0.0
          %5351 = vmatpush1.msra.mxu0 0.0
          %5352 = vmatprep.subr.mxu0 0.0
          %5353 = vmatpush1.msra.mxu0 0.0
          %5354 = vmatprep.subr.mxu0 0.0
          %5355 = vmatpush1.msra.mxu0 0.0
          %5356 = vmatprep.subr.mxu0 0.0
          %5357 = vmatpush1.msra.mxu0 0.0
          %5358 = vmatprep.subr.mxu0 0.0
          %5359 = vmatpush1.msra.mxu0 0.0
          %5360 = vmatprep.subr.mxu0 0.0
          %5361 = vmatpush1.msra.mxu0 0.0
          %5362 = vmatprep.subr.mxu0 0.0
          %5363 = vmatpush1.msra.mxu0 0.0
          %5364 = vmatprep.mubr.f32.mxu0 0.0
          %v5365 = vand.u32 %v5294, 4294901760
          %v5366 = vsub.f32 %v5294, %v5365
          %v5367 = vand.u32 %v5366, 4294901760
          %v5368 = vsub.f32 %v5366, %v5367
          %v5369 = vand.u32 %v5368, 4294901760
          %5370 = vmatmul.mubr.f32.gmra.mrb[0].mxu0 %v5369
          %v5371 = vpop.f32.mrb[0].mxu0
          %v5372 = vadd.f32 %v5290, %v5371
          %v5373 = vpop.f32.mrb[0].mxu0
          %5374 = vdwg.mxu0
          %5375 = vmatprep.subr.mxu0 0.0
          %v5376 = vand.u32 %v5297, 4294901760
          %v5377 = vsub.f32 %v5297, %v5376
          %v5378 = vand.u32 %v5377, 4294901760
          %v5379 = vsub.f32 %v5377, %v5378
          %v5380 = vand.u32 %v5379, 4294901760
          %5381 = vmatpush1.msra.mxu0 %v5380
          %5382 = vmatprep.subr.mxu0 0.0
          %5383 = vmatpush1.msra.mxu0 0.0
          %5384 = vmatprep.subr.mxu0 0.0
          %5385 = vmatpush1.msra.mxu0 0.0
          %5386 = vmatprep.subr.mxu0 0.0
          %5387 = vmatpush1.msra.mxu0 0.0
          %5388 = vmatprep.subr.mxu0 0.0
          %5389 = vmatpush1.msra.mxu0 0.0
          %5390 = vmatprep.subr.mxu0 0.0
          %5391 = vmatpush1.msra.mxu0 0.0
          %5392 = vmatprep.subr.mxu0 0.0
          %5393 = vmatpush1.msra.mxu0 0.0
          %5394 = vmatprep.subr.mxu0 0.0
          %5395 = vmatpush1.msra.mxu0 0.0
          %5396 = vmatprep.subr.mxu0 0.0
          %5397 = vmatpush1.msra.mxu0 0.0
          %5398 = vmatprep.subr.mxu0 0.0
          %5399 = vmatpush1.msra.mxu0 0.0
          %5400 = vmatprep.subr.mxu0 0.0
          %5401 = vmatpush1.msra.mxu0 0.0
          %5402 = vmatprep.subr.mxu0 0.0
          %5403 = vmatpush1.msra.mxu0 0.0
          %5404 = vmatprep.subr.mxu0 0.0
          %5405 = vmatpush1.msra.mxu0 0.0
          %5406 = vmatprep.subr.mxu0 0.0
          %5407 = vmatpush1.msra.mxu0 0.0
          %5408 = vmatprep.subr.mxu0 0.0
          %5409 = vmatpush1.msra.mxu0 0.0
          %5410 = vmatprep.subr.mxu0 0.0
          %5411 = vmatpush1.msra.mxu0 0.0
          %5412 = vmatprep.subr.mxu0 0.0
          %5413 = vmatpush1.msra.mxu0 0.0
          %5414 = vmatprep.subr.mxu0 0.0
          %5415 = vmatpush1.msra.mxu0 0.0
          %5416 = vmatprep.subr.mxu0 0.0
          %5417 = vmatpush1.msra.mxu0 0.0
          %5418 = vmatprep.subr.mxu0 0.0
          %5419 = vmatpush1.msra.mxu0 0.0
          %5420 = vmatprep.subr.mxu0 0.0
          %5421 = vmatpush1.msra.mxu0 0.0
          %5422 = vmatprep.subr.mxu0 0.0
          %5423 = vmatpush1.msra.mxu0 0.0
          %5424 = vmatprep.subr.mxu0 0.0
          %5425 = vmatpush1.msra.mxu0 0.0
          %5426 = vmatprep.subr.mxu0 0.0
          %5427 = vmatpush1.msra.mxu0 0.0
          %5428 = vmatprep.subr.mxu0 0.0
          %5429 = vmatpush1.msra.mxu0 0.0
          %5430 = vmatprep.subr.mxu0 0.0
          %5431 = vmatpush1.msra.mxu0 0.0
          %5432 = vmatprep.subr.mxu0 0.0
          %5433 = vmatpush1.msra.mxu0 0.0
          %5434 = vmatprep.subr.mxu0 0.0
          %5435 = vmatpush1.msra.mxu0 0.0
          %5436 = vmatprep.subr.mxu0 0.0
          %5437 = vmatpush1.msra.mxu0 0.0
          %5438 = vmatprep.subr.mxu0 0.0
          %5439 = vmatpush1.msra.mxu0 0.0
          %5440 = vmatprep.subr.mxu0 0.0
          %5441 = vmatpush1.msra.mxu0 0.0
          %5442 = vmatprep.subr.mxu0 0.0
          %5443 = vmatpush1.msra.mxu0 0.0
          %5444 = vmatprep.mubr.f32.mxu0 0.0
          %v5445 = vand.u32 %v5294, 4294901760
          %5446 = vmatmul.mubr.f32.gmra.mrb[0].mxu0 %v5445
          %v5447 = vpop.f32.mrb[0].mxu0
          %v5448 = vadd.f32 %v5372, %v5447
          %v5449 = vpop.f32.mrb[0].mxu0
          %5450 = vdwg.mxu0
          %5451 = vmatprep.subr.mxu0 0.0
          %v5452 = vand.u32 %v5297, 4294901760
          %v5453 = vsub.f32 %v5297, %v5452
          %5454 = vmatpush1.msra.mxu0 %v5453
          %5455 = vmatprep.subr.mxu0 0.0
          %5456 = vmatpush1.msra.mxu0 0.0
          %5457 = vmatprep.subr.mxu0 0.0
          %5458 = vmatpush1.msra.mxu0 0.0
          %5459 = vmatprep.subr.mxu0 0.0
          %5460 = vmatpush1.msra.mxu0 0.0
          %5461 = vmatprep.subr.mxu0 0.0
          %5462 = vmatpush1.msra.mxu0 0.0
          %5463 = vmatprep.subr.mxu0 0.0
          %5464 = vmatpush1.msra.mxu0 0.0
          %5465 = vmatprep.subr.mxu0 0.0
          %5466 = vmatpush1.msra.mxu0 0.0
          %5467 = vmatprep.subr.mxu0 0.0
          %5468 = vmatpush1.msra.mxu0 0.0
          %5469 = vmatprep.subr.mxu0 0.0
          %5470 = vmatpush1.msra.mxu0 0.0
          %5471 = vmatprep.subr.mxu0 0.0
          %5472 = vmatpush1.msra.mxu0 0.0
          %5473 = vmatprep.subr.mxu0 0.0
          %5474 = vmatpush1.msra.mxu0 0.0
          %5475 = vmatprep.subr.mxu0 0.0
          %5476 = vmatpush1.msra.mxu0 0.0
          %5477 = vmatprep.subr.mxu0 0.0
          %5478 = vmatpush1.msra.mxu0 0.0
          %5479 = vmatprep.subr.mxu0 0.0
          %5480 = vmatpush1.msra.mxu0 0.0
          %5481 = vmatprep.subr.mxu0 0.0
          %5482 = vmatpush1.msra.mxu0 0.0
          %5483 = vmatprep.subr.mxu0 0.0
          %5484 = vmatpush1.msra.mxu0 0.0
          %5485 = vmatprep.subr.mxu0 0.0
          %5486 = vmatpush1.msra.mxu0 0.0
          %5487 = vmatprep.subr.mxu0 0.0
          %5488 = vmatpush1.msra.mxu0 0.0
          %5489 = vmatprep.subr.mxu0 0.0
          %5490 = vmatpush1.msra.mxu0 0.0
          %5491 = vmatprep.subr.mxu0 0.0
          %5492 = vmatpush1.msra.mxu0 0.0
          %5493 = vmatprep.subr.mxu0 0.0
          %5494 = vmatpush1.msra.mxu0 0.0
          %5495 = vmatprep.subr.mxu0 0.0
          %5496 = vmatpush1.msra.mxu0 0.0
          %5497 = vmatprep.subr.mxu0 0.0
          %5498 = vmatpush1.msra.mxu0 0.0
          %5499 = vmatprep.subr.mxu0 0.0
          %5500 = vmatpush1.msra.mxu0 0.0
          %5501 = vmatprep.subr.mxu0 0.0
          %5502 = vmatpush1.msra.mxu0 0.0
          %5503 = vmatprep.subr.mxu0 0.0
          %5504 = vmatpush1.msra.mxu0 0.0
          %5505 = vmatprep.subr.mxu0 0.0
          %5506 = vmatpush1.msra.mxu0 0.0
          %5507 = vmatprep.subr.mxu0 0.0
          %5508 = vmatpush1.msra.mxu0 0.0
          %5509 = vmatprep.subr.mxu0 0.0
          %5510 = vmatpush1.msra.mxu0 0.0
          %5511 = vmatprep.subr.mxu0 0.0
          %5512 = vmatpush1.msra.mxu0 0.0
          %5513 = vmatprep.subr.mxu0 0.0
          %5514 = vmatpush1.msra.mxu0 0.0
          %5515 = vmatprep.subr.mxu0 0.0
          %5516 = vmatpush1.msra.mxu0 0.0
          %5517 = vmatprep.mubr.f32.mxu0 0.0
          %v5518 = vand.u32 %v5294, 4294901760
          %v5519 = vsub.f32 %v5294, %v5518
          %5520 = vmatmul.mubr.f32.gmra.mrb[0].mxu0 %v5519
          %v5521 = vpop.f32.mrb[0].mxu0
          %v5522 = vadd.f32 %v5448, %v5521
          %v5523 = vpop.f32.mrb[0].mxu0
          %5524 = vdwg.mxu0
          %5525 = vmatprep.subr.mxu0 0.0
          %v5526 = vand.u32 %v5297, 4294901760
          %5527 = vmatpush1.msra.mxu0 %v5526
          %5528 = vmatprep.subr.mxu0 0.0
          %5529 = vmatpush1.msra.mxu0 0.0
          %5530 = vmatprep.subr.mxu0 0.0
          %5531 = vmatpush1.msra.mxu0 0.0
          %5532 = vmatprep.subr.mxu0 0.0
          %5533 = vmatpush1.msra.mxu0 0.0
          %5534 = vmatprep.subr.mxu0 0.0
          %5535 = vmatpush1.msra.mxu0 0.0
          %5536 = vmatprep.subr.mxu0 0.0
          %5537 = vmatpush1.msra.mxu0 0.0
          %5538 = vmatprep.subr.mxu0 0.0
          %5539 = vmatpush1.msra.mxu0 0.0
          %5540 = vmatprep.subr.mxu0 0.0
          %5541 = vmatpush1.msra.mxu0 0.0
          %5542 = vmatprep.subr.mxu0 0.0
          %5543 = vmatpush1.msra.mxu0 0.0
          %5544 = vmatprep.subr.mxu0 0.0
          %5545 = vmatpush1.msra.mxu0 0.0
          %5546 = vmatprep.subr.mxu0 0.0
          %5547 = vmatpush1.msra.mxu0 0.0
          %5548 = vmatprep.subr.mxu0 0.0
          %5549 = vmatpush1.msra.mxu0 0.0
          %5550 = vmatprep.subr.mxu0 0.0
          %5551 = vmatpush1.msra.mxu0 0.0
          %5552 = vmatprep.subr.mxu0 0.0
          %5553 = vmatpush1.msra.mxu0 0.0
          %5554 = vmatprep.subr.mxu0 0.0
          %5555 = vmatpush1.msra.mxu0 0.0
          %5556 = vmatprep.subr.mxu0 0.0
          %5557 = vmatpush1.msra.mxu0 0.0
          %5558 = vmatprep.subr.mxu0 0.0
          %5559 = vmatpush1.msra.mxu0 0.0
          %5560 = vmatprep.subr.mxu0 0.0
          %5561 = vmatpush1.msra.mxu0 0.0
          %5562 = vmatprep.subr.mxu0 0.0
          %5563 = vmatpush1.msra.mxu0 0.0
          %5564 = vmatprep.subr.mxu0 0.0
          %5565 = vmatpush1.msra.mxu0 0.0
          %5566 = vmatprep.subr.mxu0 0.0
          %5567 = vmatpush1.msra.mxu0 0.0
          %5568 = vmatprep.subr.mxu0 0.0
          %5569 = vmatpush1.msra.mxu0 0.0
          %5570 = vmatprep.subr.mxu0 0.0
          %5571 = vmatpush1.msra.mxu0 0.0
          %5572 = vmatprep.subr.mxu0 0.0
          %5573 = vmatpush1.msra.mxu0 0.0
          %5574 = vmatprep.subr.mxu0 0.0
          %5575 = vmatpush1.msra.mxu0 0.0
          %5576 = vmatprep.subr.mxu0 0.0
          %5577 = vmatpush1.msra.mxu0 0.0
          %5578 = vmatprep.subr.mxu0 0.0
          %5579 = vmatpush1.msra.mxu0 0.0
          %5580 = vmatprep.subr.mxu0 0.0
          %5581 = vmatpush1.msra.mxu0 0.0
          %5582 = vmatprep.subr.mxu0 0.0
          %5583 = vmatpush1.msra.mxu0 0.0
          %5584 = vmatprep.subr.mxu0 0.0
          %5585 = vmatpush1.msra.mxu0 0.0
          %5586 = vmatprep.subr.mxu0 0.0
          %5587 = vmatpush1.msra.mxu0 0.0
          %5588 = vmatprep.subr.mxu0 0.0
          %5589 = vmatpush1.msra.mxu0 0.0
          %5590 = vmatprep.mubr.f32.mxu0 0.0
          %v5591 = vand.u32 %v5294, 4294901760
          %v5592 = vsub.f32 %v5294, %v5591
          %v5593 = vand.u32 %v5592, 4294901760
          %5594 = vmatmul.mubr.f32.gmra.mrb[0].mxu0 %v5593
          %v5595 = vpop.f32.mrb[0].mxu0
          %v5596 = vadd.f32 %v5522, %v5595
          %v5597 = vpop.f32.mrb[0].mxu0
          %5598 = vdwg.mxu0
          %5599 = vmatprep.subr.mxu0 0.0
          %v5600 = vand.u32 %v5297, 4294901760
          %v5601 = vsub.f32 %v5297, %v5600
          %v5602 = vand.u32 %v5601, 4294901760
          %5603 = vmatpush1.msra.mxu0 %v5602
          %5604 = vmatprep.subr.mxu0 0.0
          %5605 = vmatpush1.msra.mxu0 0.0
          %5606 = vmatprep.subr.mxu0 0.0
          %5607 = vmatpush1.msra.mxu0 0.0
          %5608 = vmatprep.subr.mxu0 0.0
          %5609 = vmatpush1.msra.mxu0 0.0
          %5610 = vmatprep.subr.mxu0 0.0
          %5611 = vmatpush1.msra.mxu0 0.0
          %5612 = vmatprep.subr.mxu0 0.0
          %5613 = vmatpush1.msra.mxu0 0.0
          %5614 = vmatprep.subr.mxu0 0.0
          %5615 = vmatpush1.msra.mxu0 0.0
          %5616 = vmatprep.subr.mxu0 0.0
          %5617 = vmatpush1.msra.mxu0 0.0
          %5618 = vmatprep.subr.mxu0 0.0
          %5619 = vmatpush1.msra.mxu0 0.0
          %5620 = vmatprep.subr.mxu0 0.0
          %5621 = vmatpush1.msra.mxu0 0.0
          %5622 = vmatprep.subr.mxu0 0.0
          %5623 = vmatpush1.msra.mxu0 0.0
          %5624 = vmatprep.subr.mxu0 0.0
          %5625 = vmatpush1.msra.mxu0 0.0
          %5626 = vmatprep.subr.mxu0 0.0
          %5627 = vmatpush1.msra.mxu0 0.0
          %5628 = vmatprep.subr.mxu0 0.0
          %5629 = vmatpush1.msra.mxu0 0.0
          %5630 = vmatprep.subr.mxu0 0.0
          %5631 = vmatpush1.msra.mxu0 0.0
          %5632 = vmatprep.subr.mxu0 0.0
          %5633 = vmatpush1.msra.mxu0 0.0
          %5634 = vmatprep.subr.mxu0 0.0
          %5635 = vmatpush1.msra.mxu0 0.0
          %5636 = vmatprep.subr.mxu0 0.0
          %5637 = vmatpush1.msra.mxu0 0.0
          %5638 = vmatprep.subr.mxu0 0.0
          %5639 = vmatpush1.msra.mxu0 0.0
          %5640 = vmatprep.subr.mxu0 0.0
          %5641 = vmatpush1.msra.mxu0 0.0
          %5642 = vmatprep.subr.mxu0 0.0
          %5643 = vmatpush1.msra.mxu0 0.0
          %5644 = vmatprep.subr.mxu0 0.0
          %5645 = vmatpush1.msra.mxu0 0.0
          %5646 = vmatprep.subr.mxu0 0.0
          %5647 = vmatpush1.msra.mxu0 0.0
          %5648 = vmatprep.subr.mxu0 0.0
          %5649 = vmatpush1.msra.mxu0 0.0
          %5650 = vmatprep.subr.mxu0 0.0
          %5651 = vmatpush1.msra.mxu0 0.0
          %5652 = vmatprep.subr.mxu0 0.0
          %5653 = vmatpush1.msra.mxu0 0.0
          %5654 = vmatprep.subr.mxu0 0.0
          %5655 = vmatpush1.msra.mxu0 0.0
          %5656 = vmatprep.subr.mxu0 0.0
          %5657 = vmatpush1.msra.mxu0 0.0
          %5658 = vmatprep.subr.mxu0 0.0
          %5659 = vmatpush1.msra.mxu0 0.0
          %5660 = vmatprep.subr.mxu0 0.0
          %5661 = vmatpush1.msra.mxu0 0.0
          %5662 = vmatprep.subr.mxu0 0.0
          %5663 = vmatpush1.msra.mxu0 0.0
          %5664 = vmatprep.subr.mxu0 0.0
          %5665 = vmatpush1.msra.mxu0 0.0
          %5666 = vmatprep.mubr.f32.mxu0 0.0
          %v5667 = vand.u32 %v5294, 4294901760
          %5668 = vmatmul.mubr.f32.gmra.mrb[0].mxu0 %v5667
          %v5669 = vpop.f32.mrb[0].mxu0
          %v5670 = vadd.f32 %v5596, %v5669
          %v5671 = vpop.f32.mrb[0].mxu0
          %5672 = vdwg.mxu0
          %5673 = vmatprep.subr.mxu0 0.0
          %v5674 = vand.u32 %v5297, 4294901760
          %5675 = vmatpush1.msra.mxu0 %v5674
          %5676 = vmatprep.subr.mxu0 0.0
          %5677 = vmatpush1.msra.mxu0 0.0
          %5678 = vmatprep.subr.mxu0 0.0
          %5679 = vmatpush1.msra.mxu0 0.0
          %5680 = vmatprep.subr.mxu0 0.0
          %5681 = vmatpush1.msra.mxu0 0.0
          %5682 = vmatprep.subr.mxu0 0.0
          %5683 = vmatpush1.msra.mxu0 0.0
          %5684 = vmatprep.subr.mxu0 0.0
          %5685 = vmatpush1.msra.mxu0 0.0
          %5686 = vmatprep.subr.mxu0 0.0
          %5687 = vmatpush1.msra.mxu0 0.0
          %5688 = vmatprep.subr.mxu0 0.0
          %5689 = vmatpush1.msra.mxu0 0.0
          %5690 = vmatprep.subr.mxu0 0.0
          %5691 = vmatpush1.msra.mxu0 0.0
          %5692 = vmatprep.subr.mxu0 0.0
          %5693 = vmatpush1.msra.mxu0 0.0
          %5694 = vmatprep.subr.mxu0 0.0
          %5695 = vmatpush1.msra.mxu0 0.0
          %5696 = vmatprep.subr.mxu0 0.0
          %5697 = vmatpush1.msra.mxu0 0.0
          %5698 = vmatprep.subr.mxu0 0.0
          %5699 = vmatpush1.msra.mxu0 0.0
          %5700 = vmatprep.subr.mxu0 0.0
          %5701 = vmatpush1.msra.mxu0 0.0
          %5702 = vmatprep.subr.mxu0 0.0
          %5703 = vmatpush1.msra.mxu0 0.0
          %5704 = vmatprep.subr.mxu0 0.0
          %5705 = vmatpush1.msra.mxu0 0.0
          %5706 = vmatprep.subr.mxu0 0.0
          %5707 = vmatpush1.msra.mxu0 0.0
          %5708 = vmatprep.subr.mxu0 0.0
          %5709 = vmatpush1.msra.mxu0 0.0
          %5710 = vmatprep.subr.mxu0 0.0
          %5711 = vmatpush1.msra.mxu0 0.0
          %5712 = vmatprep.subr.mxu0 0.0
          %5713 = vmatpush1.msra.mxu0 0.0
          %5714 = vmatprep.subr.mxu0 0.0
          %5715 = vmatpush1.msra.mxu0 0.0
          %5716 = vmatprep.subr.mxu0 0.0
          %5717 = vmatpush1.msra.mxu0 0.0
          %5718 = vmatprep.subr.mxu0 0.0
          %5719 = vmatpush1.msra.mxu0 0.0
          %5720 = vmatprep.subr.mxu0 0.0
          %5721 = vmatpush1.msra.mxu0 0.0
          %5722 = vmatprep.subr.mxu0 0.0
          %5723 = vmatpush1.msra.mxu0 0.0
          %5724 = vmatprep.subr.mxu0 0.0
          %5725 = vmatpush1.msra.mxu0 0.0
          %5726 = vmatprep.subr.mxu0 0.0
          %5727 = vmatpush1.msra.mxu0 0.0
          %5728 = vmatprep.subr.mxu0 0.0
          %5729 = vmatpush1.msra.mxu0 0.0
          %5730 = vmatprep.subr.mxu0 0.0
          %5731 = vmatpush1.msra.mxu0 0.0
          %5732 = vmatprep.subr.mxu0 0.0
          %5733 = vmatpush1.msra.mxu0 0.0
          %5734 = vmatprep.subr.mxu0 0.0
          %5735 = vmatpush1.msra.mxu0 0.0
          %5736 = vmatprep.subr.mxu0 0.0
          %5737 = vmatpush1.msra.mxu0 0.0
          %5738 = vmatprep.mubr.f32.mxu0 0.0
          %v5739 = vand.u32 %v5294, 4294901760
          %5740 = vmatmul.mubr.f32.gmra.mrb[0].mxu0 %v5739
          %v5741 = vpop.f32.mrb[0].mxu0
          %v5742 = vadd.f32 %v5670, %v5741
          %v5743 = vpop.f32.mrb[0].mxu0
          %5744 = vdwg.mxu0
          %v5745 = vld [vmem:[%s3 + $0x40] ss:$0 sm:$0xff]
          %5747 = vset.pattern.permute.xlu0 64
          %5748 = vperm.xlu0 %5747, %v2995
          %v5749 = vpop.permute.xlu0 %5748
          %v5751 = vmul.f32 %v5749, %v5745
          %v5752 = vadd.f32 %v5742, %v5751
          %v5753 = vld [vmem:[%s3 + $0x48] ss:$0 sm:$0xff]
          %5755 = vset.pattern.permute.xlu0 64
          %5756 = vperm.xlu0 %5755, %v4838
          %v5757 = vpop.permute.xlu0 %5756
          %v5759 = vmul.f32 %v5757, %v5753
          %v5760 = vadd.f32 %v5752, %v5759
          %v5761 = vld [vmem:[%s3 + $0x50] ss:$0 sm:$0xff]
          %v5762 = vadd.f32 %v5760, %v5761
          %v5763 = vmax.f32 %v5762, 0.0
          %vm5764 = vcmask 122880
          %5765 = vst.msk [vmem:[#allocation3] sm:$0x1] %vm5764, %v5763
        $region48: #{tpu_custom_call.1} parent=35 // pred_fallthru
          _
        // Predicated region
        $region49: #{tpu_custom_call.1} parent=35 // pred_check
          %p5766 = pneg %p123
        $region50: #{tpu_custom_call.1} parent=35 // pred_check_branch
          %5768 = sbr.rel (%p5766) target = $region52
        $region51: #{tpu_custom_call.1} parent=35 // pred_region
          %s5770 = ssub.s32 16, 16
          %5771 = vsyncadd [#allocation4], %s5770
          %s5773 = sshll.u32 [#allocation3], 4
          %s5774 = int_to_ptr.vmem [resolvable:$true] %s5773
          %5776 = dma.vmem_to_hbm [thread:$0]  %s5774, 16, %s4, [#allocation4]
        $region52: #{tpu_custom_call.1} parent=35 // pred_fallthru
          _
        // Predicated region
        $region53: #{tpu_custom_call.1} parent=35 // pred_check
          %p5777 = pneg %p123
        $region54: #{tpu_custom_call.1} parent=35 // pred_check_branch
          %5779 = sbr.rel (%p5777) target = $region56
        $region55: #{tpu_custom_call.1} parent=35 // pred_region
          %5780 = dma.done [#allocation4], 16
        $region56: #{tpu_custom_call.1} parent=35 // pred_fallthru
          _
      $region36: #{tpu_custom_call.1} parent=5 // pred_fallthru
        _
      %p5781 = scmp.le.s32.totalorder 2, %s11
      // Predicated region
      $region57: #{tpu_custom_call.1} parent=5 // pred_check
        %p5782 = pneg %p5781
      $region58: #{tpu_custom_call.1} parent=5 // pred_check_branch
        %5784 = sbr.rel (%p5782) target = $region60
      $region59: #{tpu_custom_call.1} parent=5 // pred_region
        %s5785 = ssub.s32 %s11, 2
      $region60: #{tpu_custom_call.1} parent=5 // pred_fallthru
        _
    $region6: #{tpu_custom_call.1} parent=1 // loop_footer
      %s15 = sadd.s32 1, %s11
    $region7: #{tpu_custom_call.1} parent=1 // loop_footer_branch
      %10 = sbr.rel target = $region3
    $region8: #{tpu_custom_call.1} parent=1 // loop_exit
      _
    %5786 = vsyncpa [#allocation4], 1
    %s5787 = scalar_lea.sflag [#allocation4], 1
    %5788 = vsyncpa %s5787, 1

</llo_original>
